<compile_context>
chip_gen: v5e
topology: v5e:2x2
jax: 0.10.0
libtpu: 0.0.40
codegen_flags: <defaults>
</compile_context>

<pallas_src>
import functools

import jax
import jax.numpy as jnp
from jax import lax
from jax.experimental import pallas as pl
from jax.experimental.pallas import tpu as pltpu


# ----------------------------- Pallas kernel ------------------------------ #
def _conv_bn_relu_kernel(x_ref, w_ref, shift_ref, o_ref, *, kh, kw, stride):
    # x_ref:     (s*s, Hs, Ws, Cin)    bf16  polyphase (space-to-depth) padded image
    # w_ref:     (kh*kw, Cin, Co_pad)  bf16  conv weight with BN scale folded in
    # shift_ref: (1, Co_pad)           f32   beta - mean * scale
    # o_ref:     (Ho, Wo, Co_pad)      f32   conv+BN+ReLU output (lane-dense)
    Ho, Wo, Co_pad = o_ref.shape
    Cin = w_ref.shape[1]
    s = stride

    # Start the accumulator at the BN shift so the epilogue is just a ReLU.
    acc = jnp.broadcast_to(shift_ref[...], (Ho * Wo, Co_pad)).astype(jnp.float32)

    for i in range(kh):                       # static, unrolled tap loop
        for j in range(kw):
            phase = (i % s) * s + (j % s)     # which polyphase slab this tap reads
            bi, bj = i // s, j // s           # row/col offset inside that slab
            patch = x_ref[phase, bi:bi + Ho, bj:bj + Wo, :]     # (Ho, Wo, Cin)
            patch = patch.reshape(Ho * Wo, Cin)
            acc = acc + jnp.dot(patch, w_ref[i * kw + j],
                                preferred_element_type=jnp.float32)

    y = jnp.maximum(acc, 0.0)                 # fused ReLU
    o_ref[...] = y.reshape(Ho, Wo, Co_pad).astype(o_ref.dtype)


# ------------------------------- wrapper ----------------------------------- #
@functools.partial(jax.jit, static_argnames=("stride", "padding"))
def basic_conv2d(x, weight, gamma, beta, running_mean, running_var,
                 *, stride, padding, eps=1e-3):
    """x: (N, C_in, H, W) NCHW; weight: (C_out, C_in, kh, kw). Returns NCHW f32."""
    N, C, H, W = x.shape
    Co, Ci, kh, kw = weight.shape
    assert Ci == C
    s = stride

    Hp, Wp = H + 2 * padding, W + 2 * padding
    Ho = (Hp - kh) // s + 1                  # PyTorch conv output dims
    Wo = (Wp - kw) // s + 1

    # Polyphase (space-to-depth) decomposition of the padded image: slab (p, q)
    # holds xp[p::s, q::s].  Tap (i, j) of the conv then reads a plain static
    # slice of slab (i % s, j % s) -- so a strided conv needs no strided loads.
    Hs, Ws = -(-Hp // s), -(-Wp // s)        # ceil-div
    Hp2, Wp2 = Hs * s, Ws * s                # round padded dims up to stride mult

    x_nhwc = jnp.transpose(x, (0, 2, 3, 1)).astype(jnp.bfloat16)
    xp = jnp.pad(x_nhwc, ((0, 0),
                          (padding, Hp2 - H - padding),
                          (padding, Wp2 - W - padding),
                          (0, 0)))
    xph = xp.reshape(N, Hs, s, Ws, s, C).transpose(0, 2, 4, 1, 3, 5)
    xph = xph.reshape(N, s * s, Hs, Ws, C)   # stride=1 -> identity layout

    # Fold eval-mode BatchNorm: scale into the weights, keep only the shift.
    inv = gamma * lax.rsqrt(running_var + eps)                  # (Co,)
    shift = (beta - running_mean * inv).astype(jnp.float32)     # (Co,)

    Co_pad = pl.cdiv(Co, 128) * 128          # lane-dense output channels
    w_taps = (weight * inv[:, None, None, None]).transpose(2, 3, 1, 0)  # (kh,kw,Ci,Co)
    w_taps = w_taps.reshape(kh * kw, Ci, Co)
    if Co_pad != Co:
        w_taps = jnp.pad(w_taps, ((0, 0), (0, 0), (0, Co_pad - Co)))
        shift = jnp.pad(shift, (0, Co_pad - Co))
    w_taps = w_taps.astype(jnp.bfloat16)
    shift = shift.reshape(1, Co_pad)

    out = pl.pallas_call(
        functools.partial(_conv_bn_relu_kernel, kh=kh, kw=kw, stride=s),
        out_shape=jax.ShapeDtypeStruct((N, Ho, Wo, Co_pad), jnp.float32),
        grid_spec=pltpu.PrefetchScalarGridSpec(
            num_scalar_prefetch=0,
            grid=(N,),
            in_specs=[
                pl.BlockSpec((None, s * s, Hs, Ws, C), lambda n: (n, 0, 0, 0, 0)),
                pl.BlockSpec((kh * kw, C, Co_pad), lambda n: (0, 0, 0)),
                pl.BlockSpec((1, Co_pad), lambda n: (0, 0)),
            ],
            out_specs=pl.BlockSpec((None, Ho, Wo, Co_pad),
                                   lambda n: (n, 0, 0, 0)),
        ),
        compiler_params=pltpu.CompilerParams(
            dimension_semantics=("parallel",),
            vmem_limit_bytes=32 * 1024 * 1024),
    )(xph, w_taps, shift)

    out = out[..., :Co]                      # drop channel padding
    return jnp.transpose(out, (0, 3, 1, 2))  # NCHW only at the boundary


# ------------------------------ reference ---------------------------------- #
def _reference(x, weight, gamma, beta, running_mean, running_var,
               *, stride, padding, eps=1e-3):
    y = lax.conv_general_dilated(
        x, weight, window_strides=(stride, stride),
        padding=[(padding, padding), (padding, padding)],
        dimension_numbers=("NCHW", "OIHW", "NCHW"))
    scale = (gamma / jnp.sqrt(running_var + eps)).reshape(1, -1, 1, 1)
    shift = (beta - running_mean * gamma / jnp.sqrt(running_var + eps)).reshape(1, -1, 1, 1)
    return jnp.maximum(y * scale + shift, 0.0)


if __name__ == "__main__":
    # BasicConv2d(in_planes=4, out_planes=8, kernel_size=3, ...)
    N, Cin, H, W = 2, 4, 16, 16
    Cout, k = 8, 3

    key = jax.random.PRNGKey(0)
    kx, kw_, kg, kb, km, kv = jax.random.split(key, 6)
    x = jax.random.normal(kx, (N, Cin, H, W), dtype=jnp.float32)
    weight = jax.random.normal(kw_, (Cout, Cin, k, k), dtype=jnp.float32) * 0.1
    gamma = 1.0 + 0.1 * jax.random.normal(kg, (Cout,), dtype=jnp.float32)
    beta = 0.1 * jax.random.normal(kb, (Cout,), dtype=jnp.float32)
    running_mean = 0.1 * jax.random.normal(km, (Cout,), dtype=jnp.float32)
    running_var = jnp.abs(1.0 + 0.1 * jax.random.normal(kv, (Cout,), dtype=jnp.float32))

    # stride=1 (the common BasicConv2d case) and stride=2 (stem-style) paths.
    for stride, padding in ((1, 1), (2, 1)):
        out = basic_conv2d(x, weight, gamma, beta, running_mean, running_var,
                           stride=stride, padding=padding)
        out = jax.block_until_ready(out)
        ref = _reference(x, weight, gamma, beta, running_mean, running_var,
                         stride=stride, padding=padding)
        assert out.shape == ref.shape, (out.shape, ref.shape)
        # bf16 MXU inputs with f32 accumulation -> loosened tolerance vs f32 ref.
        err = jnp.max(jnp.abs(out - ref))
        assert err < 5e-2, f"mismatch vs reference (stride={stride}): {err}"

    print("KERNEL_OK")
</pallas_src>

<mosaic_0001>
module attributes {stable_mosaic.version = 11 : i64} {
  func.func @_conv_bn_relu_kernel(%arg0: i32, %arg1: memref<1x1x18x18x4xbf16, #tpu.memory_space<vmem>>, %arg2: memref<9x4x128xbf16, #tpu.memory_space<vmem>>, %arg3: memref<1x128xf32, #tpu.memory_space<vmem>>, %arg4: memref<1x16x16x128xf32, #tpu.memory_space<vmem>>) attributes {dimension_semantics = [#tpu.dimension_semantics<parallel>], iteration_bounds = array<i64: 2>, scalar_prefetch = 0 : i64, scratch_operands = 0 : i64, tpu.core_type = #tpu.core_type<tc>, window_params = [{transform_indices = @transform_0, window_bounds = array<i64: 1, 1, 18, 18, 4>}, {pipeline_mode = #tpu.pipeline_mode<synchronous>, transform_indices = @transform_1, window_bounds = array<i64: 9, 4, 128>}, {pipeline_mode = #tpu.pipeline_mode<synchronous>, transform_indices = @transform_2, window_bounds = array<i64: 1, 128>}, {transform_indices = @transform_3, window_bounds = array<i64: 1, 16, 16, 128>}]} {
    %c0 = arith.constant 0 : index
    %c0_0 = arith.constant 0 : index
    %0 = vector.load %arg3[%c0, %c0_0] : memref<1x128xf32, #tpu.memory_space<vmem>>, vector<1x128xf32>
    %1 = vector.shape_cast %0 : vector<1x128xf32> to vector<1x128xf32>
    %2 = vector.broadcast %1 : vector<1x128xf32> to vector<256x128xf32>
    %c0_1 = arith.constant 0 : index
    %c0_2 = arith.constant 0 : index
    %c0_3 = arith.constant 0 : index
    %c0_4 = arith.constant 0 : index
    %c0_5 = arith.constant 0 : index
    %3 = vector.load %arg1[%c0_1, %c0_2, %c0_3, %c0_4, %c0_5] : memref<1x1x18x18x4xbf16, #tpu.memory_space<vmem>>, vector<1x1x16x16x4xbf16>
    %4 = vector.shape_cast %3 : vector<1x1x16x16x4xbf16> to vector<16x16x4xbf16>
    %5 = vector.shape_cast %4 : vector<16x16x4xbf16> to vector<256x4xbf16>
    %c0_6 = arith.constant 0 : index
    %c0_7 = arith.constant 0 : index
    %c0_8 = arith.constant 0 : index
    %6 = vector.load %arg2[%c0_6, %c0_7, %c0_8] : memref<9x4x128xbf16, #tpu.memory_space<vmem>>, vector<1x4x128xbf16>
    %7 = vector.shape_cast %6 : vector<1x4x128xbf16> to vector<4x128xbf16>
    %cst = arith.constant dense<0.000000e+00> : vector<256x128xf32>
    %8 = tpu.matmul %5, %7, %cst {dimension_numbers = #tpu.dot_dimension_numbers<[1], [0], [0], [1], [0, 0, 1, 1], [], []>} : vector<256x4xbf16>, vector<4x128xbf16>, vector<256x128xf32> -> vector<256x128xf32>
    %9 = arith.addf %2, %8 : vector<256x128xf32>
    %c0_9 = arith.constant 0 : index
    %c0_10 = arith.constant 0 : index
    %c0_11 = arith.constant 0 : index
    %c1 = arith.constant 1 : index
    %c0_12 = arith.constant 0 : index
    %10 = vector.load %arg1[%c0_9, %c0_10, %c0_11, %c1, %c0_12] : memref<1x1x18x18x4xbf16, #tpu.memory_space<vmem>>, vector<1x1x16x16x4xbf16>
    %11 = vector.shape_cast %10 : vector<1x1x16x16x4xbf16> to vector<16x16x4xbf16>
    %12 = vector.shape_cast %11 : vector<16x16x4xbf16> to vector<256x4xbf16>
    %c1_13 = arith.constant 1 : index
    %c0_14 = arith.constant 0 : index
    %c0_15 = arith.constant 0 : index
    %13 = vector.load %arg2[%c1_13, %c0_14, %c0_15] : memref<9x4x128xbf16, #tpu.memory_space<vmem>>, vector<1x4x128xbf16>
    %14 = vector.shape_cast %13 : vector<1x4x128xbf16> to vector<4x128xbf16>
    %cst_16 = arith.constant dense<0.000000e+00> : vector<256x128xf32>
    %15 = tpu.matmul %12, %14, %cst_16 {dimension_numbers = #tpu.dot_dimension_numbers<[1], [0], [0], [1], [0, 0, 1, 1], [], []>} : vector<256x4xbf16>, vector<4x128xbf16>, vector<256x128xf32> -> vector<256x128xf32>
    %16 = arith.addf %9, %15 : vector<256x128xf32>
    %c0_17 = arith.constant 0 : index
    %c0_18 = arith.constant 0 : index
    %c0_19 = arith.constant 0 : index
    %c2 = arith.constant 2 : index
    %c0_20 = arith.constant 0 : index
    %17 = vector.load %arg1[%c0_17, %c0_18, %c0_19, %c2, %c0_20] : memref<1x1x18x18x4xbf16, #tpu.memory_space<vmem>>, vector<1x1x16x16x4xbf16>
    %18 = vector.shape_cast %17 : vector<1x1x16x16x4xbf16> to vector<16x16x4xbf16>
    %19 = vector.shape_cast %18 : vector<16x16x4xbf16> to vector<256x4xbf16>
    %c2_21 = arith.constant 2 : index
    %c0_22 = arith.constant 0 : index
    %c0_23 = arith.constant 0 : index
    %20 = vector.load %arg2[%c2_21, %c0_22, %c0_23] : memref<9x4x128xbf16, #tpu.memory_space<vmem>>, vector<1x4x128xbf16>
    %21 = vector.shape_cast %20 : vector<1x4x128xbf16> to vector<4x128xbf16>
    %cst_24 = arith.constant dense<0.000000e+00> : vector<256x128xf32>
    %22 = tpu.matmul %19, %21, %cst_24 {dimension_numbers = #tpu.dot_dimension_numbers<[1], [0], [0], [1], [0, 0, 1, 1], [], []>} : vector<256x4xbf16>, vector<4x128xbf16>, vector<256x128xf32> -> vector<256x128xf32>
    %23 = arith.addf %16, %22 : vector<256x128xf32>
    %c0_25 = arith.constant 0 : index
    %c0_26 = arith.constant 0 : index
    %c1_27 = arith.constant 1 : index
    %c0_28 = arith.constant 0 : index
    %c0_29 = arith.constant 0 : index
    %24 = vector.load %arg1[%c0_25, %c0_26, %c1_27, %c0_28, %c0_29] : memref<1x1x18x18x4xbf16, #tpu.memory_space<vmem>>, vector<1x1x16x16x4xbf16>
    %25 = vector.shape_cast %24 : vector<1x1x16x16x4xbf16> to vector<16x16x4xbf16>
    %26 = vector.shape_cast %25 : vector<16x16x4xbf16> to vector<256x4xbf16>
    %c3 = arith.constant 3 : index
    %c0_30 = arith.constant 0 : index
    %c0_31 = arith.constant 0 : index
    %27 = vector.load %arg2[%c3, %c0_30, %c0_31] : memref<9x4x128xbf16, #tpu.memory_space<vmem>>, vector<1x4x128xbf16>
    %28 = vector.shape_cast %27 : vector<1x4x128xbf16> to vector<4x128xbf16>
    %cst_32 = arith.constant dense<0.000000e+00> : vector<256x128xf32>
    %29 = tpu.matmul %26, %28, %cst_32 {dimension_numbers = #tpu.dot_dimension_numbers<[1], [0], [0], [1], [0, 0, 1, 1], [], []>} : vector<256x4xbf16>, vector<4x128xbf16>, vector<256x128xf32> -> vector<256x128xf32>
    %30 = arith.addf %23, %29 : vector<256x128xf32>
    %c0_33 = arith.constant 0 : index
    %c0_34 = arith.constant 0 : index
    %c1_35 = arith.constant 1 : index
    %c1_36 = arith.constant 1 : index
    %c0_37 = arith.constant 0 : index
    %31 = vector.load %arg1[%c0_33, %c0_34, %c1_35, %c1_36, %c0_37] : memref<1x1x18x18x4xbf16, #tpu.memory_space<vmem>>, vector<1x1x16x16x4xbf16>
    %32 = vector.shape_cast %31 : vector<1x1x16x16x4xbf16> to vector<16x16x4xbf16>
    %33 = vector.shape_cast %32 : vector<16x16x4xbf16> to vector<256x4xbf16>
    %c4 = arith.constant 4 : index
    %c0_38 = arith.constant 0 : index
    %c0_39 = arith.constant 0 : index
    %34 = vector.load %arg2[%c4, %c0_38, %c0_39] : memref<9x4x128xbf16, #tpu.memory_space<vmem>>, vector<1x4x128xbf16>
    %35 = vector.shape_cast %34 : vector<1x4x128xbf16> to vector<4x128xbf16>
    %cst_40 = arith.constant dense<0.000000e+00> : vector<256x128xf32>
    %36 = tpu.matmul %33, %35, %cst_40 {dimension_numbers = #tpu.dot_dimension_numbers<[1], [0], [0], [1], [0, 0, 1, 1], [], []>} : vector<256x4xbf16>, vector<4x128xbf16>, vector<256x128xf32> -> vector<256x128xf32>
    %37 = arith.addf %30, %36 : vector<256x128xf32>
    %c0_41 = arith.constant 0 : index
    %c0_42 = arith.constant 0 : index
    %c1_43 = arith.constant 1 : index
    %c2_44 = arith.constant 2 : index
    %c0_45 = arith.constant 0 : index
    %38 = vector.load %arg1[%c0_41, %c0_42, %c1_43, %c2_44, %c0_45] : memref<1x1x18x18x4xbf16, #tpu.memory_space<vmem>>, vector<1x1x16x16x4xbf16>
    %39 = vector.shape_cast %38 : vector<1x1x16x16x4xbf16> to vector<16x16x4xbf16>
    %40 = vector.shape_cast %39 : vector<16x16x4xbf16> to vector<256x4xbf16>
    %c5 = arith.constant 5 : index
    %c0_46 = arith.constant 0 : index
    %c0_47 = arith.constant 0 : index
    %41 = vector.load %arg2[%c5, %c0_46, %c0_47] : memref<9x4x128xbf16, #tpu.memory_space<vmem>>, vector<1x4x128xbf16>
    %42 = vector.shape_cast %41 : vector<1x4x128xbf16> to vector<4x128xbf16>
    %cst_48 = arith.constant dense<0.000000e+00> : vector<256x128xf32>
    %43 = tpu.matmul %40, %42, %cst_48 {dimension_numbers = #tpu.dot_dimension_numbers<[1], [0], [0], [1], [0, 0, 1, 1], [], []>} : vector<256x4xbf16>, vector<4x128xbf16>, vector<256x128xf32> -> vector<256x128xf32>
    %44 = arith.addf %37, %43 : vector<256x128xf32>
    %c0_49 = arith.constant 0 : index
    %c0_50 = arith.constant 0 : index
    %c2_51 = arith.constant 2 : index
    %c0_52 = arith.constant 0 : index
    %c0_53 = arith.constant 0 : index
    %45 = vector.load %arg1[%c0_49, %c0_50, %c2_51, %c0_52, %c0_53] : memref<1x1x18x18x4xbf16, #tpu.memory_space<vmem>>, vector<1x1x16x16x4xbf16>
    %46 = vector.shape_cast %45 : vector<1x1x16x16x4xbf16> to vector<16x16x4xbf16>
    %47 = vector.shape_cast %46 : vector<16x16x4xbf16> to vector<256x4xbf16>
    %c6 = arith.constant 6 : index
    %c0_54 = arith.constant 0 : index
    %c0_55 = arith.constant 0 : index
    %48 = vector.load %arg2[%c6, %c0_54, %c0_55] : memref<9x4x128xbf16, #tpu.memory_space<vmem>>, vector<1x4x128xbf16>
    %49 = vector.shape_cast %48 : vector<1x4x128xbf16> to vector<4x128xbf16>
    %cst_56 = arith.constant dense<0.000000e+00> : vector<256x128xf32>
    %50 = tpu.matmul %47, %49, %cst_56 {dimension_numbers = #tpu.dot_dimension_numbers<[1], [0], [0], [1], [0, 0, 1, 1], [], []>} : vector<256x4xbf16>, vector<4x128xbf16>, vector<256x128xf32> -> vector<256x128xf32>
    %51 = arith.addf %44, %50 : vector<256x128xf32>
    %c0_57 = arith.constant 0 : index
    %c0_58 = arith.constant 0 : index
    %c2_59 = arith.constant 2 : index
    %c1_60 = arith.constant 1 : index
    %c0_61 = arith.constant 0 : index
    %52 = vector.load %arg1[%c0_57, %c0_58, %c2_59, %c1_60, %c0_61] : memref<1x1x18x18x4xbf16, #tpu.memory_space<vmem>>, vector<1x1x16x16x4xbf16>
    %53 = vector.shape_cast %52 : vector<1x1x16x16x4xbf16> to vector<16x16x4xbf16>
    %54 = vector.shape_cast %53 : vector<16x16x4xbf16> to vector<256x4xbf16>
    %c7 = arith.constant 7 : index
    %c0_62 = arith.constant 0 : index
    %c0_63 = arith.constant 0 : index
    %55 = vector.load %arg2[%c7, %c0_62, %c0_63] : memref<9x4x128xbf16, #tpu.memory_space<vmem>>, vector<1x4x128xbf16>
    %56 = vector.shape_cast %55 : vector<1x4x128xbf16> to vector<4x128xbf16>
    %cst_64 = arith.constant dense<0.000000e+00> : vector<256x128xf32>
    %57 = tpu.matmul %54, %56, %cst_64 {dimension_numbers = #tpu.dot_dimension_numbers<[1], [0], [0], [1], [0, 0, 1, 1], [], []>} : vector<256x4xbf16>, vector<4x128xbf16>, vector<256x128xf32> -> vector<256x128xf32>
    %58 = arith.addf %51, %57 : vector<256x128xf32>
    %c0_65 = arith.constant 0 : index
    %c0_66 = arith.constant 0 : index
    %c2_67 = arith.constant 2 : index
    %c2_68 = arith.constant 2 : index
    %c0_69 = arith.constant 0 : index
    %59 = vector.load %arg1[%c0_65, %c0_66, %c2_67, %c2_68, %c0_69] : memref<1x1x18x18x4xbf16, #tpu.memory_space<vmem>>, vector<1x1x16x16x4xbf16>
    %60 = vector.shape_cast %59 : vector<1x1x16x16x4xbf16> to vector<16x16x4xbf16>
    %61 = vector.shape_cast %60 : vector<16x16x4xbf16> to vector<256x4xbf16>
    %c8 = arith.constant 8 : index
    %c0_70 = arith.constant 0 : index
    %c0_71 = arith.constant 0 : index
    %62 = vector.load %arg2[%c8, %c0_70, %c0_71] : memref<9x4x128xbf16, #tpu.memory_space<vmem>>, vector<1x4x128xbf16>
    %63 = vector.shape_cast %62 : vector<1x4x128xbf16> to vector<4x128xbf16>
    %cst_72 = arith.constant dense<0.000000e+00> : vector<256x128xf32>
    %64 = tpu.matmul %61, %63, %cst_72 {dimension_numbers = #tpu.dot_dimension_numbers<[1], [0], [0], [1], [0, 0, 1, 1], [], []>} : vector<256x4xbf16>, vector<4x128xbf16>, vector<256x128xf32> -> vector<256x128xf32>
    %65 = arith.addf %58, %64 : vector<256x128xf32>
    %cst_73 = arith.constant 0.000000e+00 : f32
    %66 = vector.broadcast %cst_73 : f32 to vector<256x128xf32>
    %67 = arith.maximumf %65, %66 : vector<256x128xf32>
    %68 = vector.shape_cast %67 : vector<256x128xf32> to vector<16x16x128xf32>
    %c0_74 = arith.constant 0 : index
    %c0_75 = arith.constant 0 : index
    %c0_76 = arith.constant 0 : index
    %c0_77 = arith.constant 0 : index
    %69 = vector.load %arg4[%c0_74, %c0_75, %c0_76, %c0_77] : memref<1x16x16x128xf32, #tpu.memory_space<vmem>>, vector<1x16x16x128xf32>
    %70 = vector.shape_cast %69 : vector<1x16x16x128xf32> to vector<16x16x128xf32>
    %71 = vector.shape_cast %68 : vector<16x16x128xf32> to vector<1x16x16x128xf32>
    tpu.vector_store %arg4[%c0_74, %c0_75, %c0_76, %c0_77], %71 {strides = array<i32>} : memref<1x16x16x128xf32, #tpu.memory_space<vmem>>, vector<1x16x16x128xf32>,
    return
  }
  func.func @transform_0(%arg0: i32) -> (i32, i32, i32, i32, i32) {
    %c0_i32 = arith.constant 0 : i32
    %c0_i32_0 = arith.constant 0 : i32
    %c0_i32_1 = arith.constant 0 : i32
    %c0_i32_2 = arith.constant 0 : i32
    %c0_i32_3 = arith.constant 0 : i32
    return %arg0, %c0_i32, %c0_i32_0, %c0_i32_1, %c0_i32_2 : i32, i32, i32, i32, i32
  }
  func.func @transform_1(%arg0: i32) -> (i32, i32, i32) {
    %c0_i32 = arith.constant 0 : i32
    %c0_i32_0 = arith.constant 0 : i32
    %c0_i32_1 = arith.constant 0 : i32
    %c0_i32_2 = arith.constant 0 : i32
    return %c0_i32, %c0_i32_0, %c0_i32_1 : i32, i32, i32
  }
  func.func @transform_2(%arg0: i32) -> (i32, i32) {
    %c0_i32 = arith.constant 0 : i32
    %c0_i32_0 = arith.constant 0 : i32
    %c0_i32_1 = arith.constant 0 : i32
    return %c0_i32, %c0_i32_0 : i32, i32
  }
  func.func @transform_3(%arg0: i32) -> (i32, i32, i32, i32) {
    %c0_i32 = arith.constant 0 : i32
    %c0_i32_0 = arith.constant 0 : i32
    %c0_i32_1 = arith.constant 0 : i32
    %c0_i32_2 = arith.constant 0 : i32
    return %arg0, %c0_i32, %c0_i32_0, %c0_i32_1 : i32, i32, i32, i32
  }
}

</mosaic_0001>

<llo_original>
// kernel: basic_conv2d.1
$region0: #{basic_conv2d.1}
  #allocation0 [shape = 'u32[]', space=smem, size = 0x4, offset = 0x4, fixed_abs, tag = 'smem constant byte address 0x4 - core index']
  #allocation1 [shape = 'u32[72,128]{1,0:T(1,128)}', space=vmem, size = 0x9000, scoped, tag = 'internal scratch']
  %s0 = inlined_call_operand.vmem [shape: bf16[2,1,18,18,4], index: 0, kind: input, shape index: {}]
  %s1 = inlined_call_operand.vmem [shape: bf16[9,4,128], index: 1, kind: input, shape index: {}]
  %s2 = inlined_call_operand.vmem [shape: f32[1,128], index: 2, kind: input, shape index: {}]
  %s3 = inlined_call_operand.vmem [shape: f32[2,16,16,128], index: 3, kind: output, shape index: {}]
  %s4 = sld [smem:[#allocation0]]
  $region45: #{basic_conv2d.1} parent=0
    _
  %s6 = ssub.s32 1, %s4
  %s7 = scalar_select 0, %s6, %s4
  loop: start=0, step=1, limit=4
  $region2: #{basic_conv2d.1} parent=0 // loop_pre_header
    _
  $region3: #{basic_conv2d.1} parent=0 // loop_header
    %s9 = sphi 0, %s13
    %p10 = scmp.ge.s32.totalorder %s9, 4
    %s19 = sphi 0, %s21
    %s22 = sphi 0, %s19
    %s23 = sphi 0, %s22
    %s39 = sphi 0, %s23
    %s43 = sphi 0, %s43
    %s45 = sphi 0, %s43
    %s46 = sphi 0, %s45
    %s60 = sphi 0, %s46
    %s64 = sphi 0, %s64
    %s66 = sphi 0, %s64
    %s67 = sphi 0, %s66
    %s81 = sphi 0, %s67
    %s87 = sphi 0, %s89
    %s90 = sphi 0, %s87
    %s91 = sphi 0, %s90
    %s107 = sphi 0, %s91
  $region4: #{basic_conv2d.1} parent=0 // loop_header_branch
    %12 = sbr.rel (%p10) target = $region8
  $region5: #{basic_conv2d.1} parent=0 // loop_body
    %s14 = ssub.s32 %s9, 1
    %s15 = ssub.s32 %s9, 2
    %s16 = sadd.s32 %s9, 1
    %s17 = ssub.s32 %s9, %s16
    %p18 = scmp.eq.s32.totalorder %s17, 0
    %s20 = sadd.s32 %s19, 1
    %s21 = scalar_select %p18, %s19, %s20
    %p24 = pneg %p18
    %p25 = scmp.eq.s32.totalorder %s9, 1
    %p26 = por %p24, %p25
    %p27 = scmp.ne.s32.totalorder %s19, %s22
    %p28 = scmp.eq.s32.totalorder %s9, 0
    %p29 = por %p27, %p28
    %p30 = scmp.ne.s32.totalorder %s19, %s22
    %p31 = scmp.eq.s32.totalorder %s14, 1
    %p32 = por %p30, %p31
    %p33 = scmp.ne.s32.totalorder %s22, %s23
    %p34 = scmp.eq.s32.totalorder %s14, 0
    %p35 = por %p33, %p34
    %p36 = scmp.ne.s32.totalorder %s22, %s23
    %p37 = scmp.eq.s32.totalorder %s15, 1
    %p38 = por %p36, %p37
    %p40 = scmp.ne.s32.totalorder %s23, %s39
    %p41 = scmp.eq.s32.totalorder %s15, 0
    %p42 = por %p40, %p41
    %s44 = sadd.s32 %s43, 1
    %p47 = scmp.eq.s32.totalorder %s9, 1
    %p48 = scmp.ne.s32.totalorder %s43, %s45
    %p49 = scmp.eq.s32.totalorder %s9, 0
    %p50 = por %p48, %p49
    %p51 = scmp.ne.s32.totalorder %s43, %s45
    %p52 = scmp.eq.s32.totalorder %s14, 1
    %p53 = por %p51, %p52
    %p54 = scmp.ne.s32.totalorder %s45, %s46
    %p55 = scmp.eq.s32.totalorder %s14, 0
    %p56 = por %p54, %p55
    %p57 = scmp.ne.s32.totalorder %s45, %s46
    %p58 = scmp.eq.s32.totalorder %s15, 1
    %p59 = por %p57, %p58
    %p61 = scmp.ne.s32.totalorder %s46, %s60
    %p62 = scmp.eq.s32.totalorder %s15, 0
    %p63 = por %p61, %p62
    %s65 = sadd.s32 %s64, 1
    %p68 = scmp.eq.s32.totalorder %s9, 1
    %p69 = scmp.ne.s32.totalorder %s64, %s66
    %p70 = scmp.eq.s32.totalorder %s9, 0
    %p71 = por %p69, %p70
    %p72 = scmp.ne.s32.totalorder %s64, %s66
    %p73 = scmp.eq.s32.totalorder %s14, 1
    %p74 = por %p72, %p73
    %p75 = scmp.ne.s32.totalorder %s66, %s67
    %p76 = scmp.eq.s32.totalorder %s14, 0
    %p77 = por %p75, %p76
    %p78 = scmp.ne.s32.totalorder %s66, %s67
    %p79 = scmp.eq.s32.totalorder %s15, 1
    %p80 = por %p78, %p79
    %p82 = scmp.ne.s32.totalorder %s67, %s81
    %p83 = scmp.eq.s32.totalorder %s15, 0
    %p84 = por %p82, %p83
    %s85 = ssub.s32 %s9, %s16
    %p86 = scmp.eq.s32.totalorder %s85, 0
    %s88 = sadd.s32 %s87, 1
    %s89 = scalar_select %p86, %s87, %s88
    %p92 = pneg %p86
    %p93 = scmp.eq.s32.totalorder %s9, 1
    %p94 = por %p92, %p93
    %p95 = scmp.ne.s32.totalorder %s87, %s90
    %p96 = scmp.eq.s32.totalorder %s9, 0
    %p97 = por %p95, %p96
    %p98 = scmp.ne.s32.totalorder %s87, %s90
    %p99 = scmp.eq.s32.totalorder %s14, 1
    %p100 = por %p98, %p99
    %p101 = scmp.ne.s32.totalorder %s90, %s91
    %p102 = scmp.eq.s32.totalorder %s14, 0
    %p103 = por %p101, %p102
    %p104 = scmp.ne.s32.totalorder %s90, %s91
    %p105 = scmp.eq.s32.totalorder %s15, 1
    %p106 = por %p104, %p105
    %p108 = scmp.ne.s32.totalorder %s91, %s107
    %p109 = scmp.eq.s32.totalorder %s15, 0
    %p110 = por %p108, %p109
    %p111 = scmp.le.s32.totalorder 1, %s9
    %p112 = scmp.lt.s32.totalorder %s9, 3
    %p113 = pnand %p111, %p112
    %p114 = pneg %p113
    // Predicated region
    $region9: #{basic_conv2d.1} parent=5 // pred_check
      _
    $region10: #{basic_conv2d.1} parent=5 // pred_check_branch
      %116 = sbr.rel (%p113) target = $region12
    $region11: #{basic_conv2d.1} parent=5 // pred_region
      %s117 = ssub.s32 %s9, 1
      // Predicated region
      $region13: #{basic_conv2d.1} parent=11 // pred_check
        %p118 = pneg %p56
      $region14: #{basic_conv2d.1} parent=11 // pred_check_branch
        %120 = sbr.rel (%p118) target = $region16
      $region15: #{basic_conv2d.1} parent=11 // pred_region
        _
      $region16: #{basic_conv2d.1} parent=11 // pred_fallthru
        _
      // Predicated region
      $region17: #{basic_conv2d.1} parent=11 // pred_check
        %p121 = pneg %p77
      $region18: #{basic_conv2d.1} parent=11 // pred_check_branch
        %123 = sbr.rel (%p121) target = $region20
      $region19: #{basic_conv2d.1} parent=11 // pred_region
        _
      $region20: #{basic_conv2d.1} parent=11 // pred_fallthru
        _
    $region12: #{basic_conv2d.1} parent=5 // pred_fallthru
      _
    %p124 = scmp.lt.s32.totalorder %s9, 2
    // Predicated region
    $region21: #{basic_conv2d.1} parent=5 // pred_check
      %p125 = pneg %p124
    $region22: #{basic_conv2d.1} parent=5 // pred_check_branch
      %127 = sbr.rel (%p125) target = $region24
    $region23: #{basic_conv2d.1} parent=5 // pred_region
      // Predicated region
      $region25: #{basic_conv2d.1} parent=23 // pred_check
        %p128 = pneg %p29
      $region26: #{basic_conv2d.1} parent=23 // pred_check_branch
        %130 = sbr.rel (%p128) target = $region28
      $region27: #{basic_conv2d.1} parent=23 // pred_region
        %p131 = scmp.lt.s32.totalorder %s9, 1
        %s132 = scalar_select %p131, %s9, 1
        %s133 = smul.addr %s132, 54
        %s134 = smul.addr %s133, 4
        %s135 = scalar_lea.vmem %s0, %s134
      $region28: #{basic_conv2d.1} parent=23 // pred_fallthru
        _
    $region24: #{basic_conv2d.1} parent=5 // pred_fallthru
      _
    %p136 = scmp.le.s32.totalorder 1, %s9
    %p137 = scmp.lt.s32.totalorder %s9, 3
    %p138 = pnand %p136, %p137
    %p139 = pneg %p138
    // Predicated region
    $region29: #{basic_conv2d.1} parent=5 // pred_check
      _
    $region30: #{basic_conv2d.1} parent=5 // pred_check_branch
      %141 = sbr.rel (%p138) target = $region32
    $region31: #{basic_conv2d.1} parent=5 // pred_region
      %s142 = ssub.s32 %s9, 1
      %p143 = scmp.lt.s32.totalorder %s14, 1
      %s144 = scalar_select %p143, %s14, 1
      %s145 = smul.addr %s144, 54
      %s146 = smul.addr %s145, 4
      %s147 = scalar_lea.vmem %s0, %s146
      %p148 = pneg %p35
      %p149 = pneg %p32
      %p150 = pneg %p56
      %p151 = pneg %p53
      %p152 = pneg %p77
      %p153 = pneg %p74
      %p154 = pneg %p103
      %p155 = pneg %p100
      %p156 = scmp.lt.s32.totalorder %s14, 1
      %s157 = scalar_select %p156, %s14, 1
      %s158 = smul.addr %s157, 32
      %s159 = smul.addr %s158, 8
      %s160 = scalar_lea.vmem %s3, %s159
      %p161 = scmp.lt.s32.totalorder %s14, 1
      %s162 = scalar_select %p161, %s14, 1
      %s163 = smul.addr %s162, 54
      %s164 = smul.addr %s163, 4
      %s165 = scalar_lea.vmem %s0, %s164
      %p166 = scmp.lt.s32.totalorder %s14, 1
      %s167 = scalar_select %p166, %s14, 1
      %s168 = smul.addr %s167, 32
      %s169 = smul.addr %s168, 8
      %s170 = scalar_lea.vmem %s3, %s169
      %v172 = vld [vmem:[%s2] sm:$0x1]
      %v174 = vperm.slane %v172, 0
      %v176 = vld [vmem:[%s165] sm:$0xf]
      %v177 = vld [vmem:[%s165 + $0x4] sm:$0xf]
      %v178 = vld [vmem:[%s165 + $0xc] sm:$0xf]
      %v179 = vld [vmem:[%s165 + $0x10] sm:$0xf]
      %v180 = vld [vmem:[%s165 + $0x18] sm:$0xf]
      %v181 = vld [vmem:[%s165 + $0x1c] sm:$0xf]
      %v182 = vld [vmem:[%s165 + $0x24] sm:$0xf]
      %v183 = vld [vmem:[%s165 + $0x28] sm:$0xf]
      %v184 = vld [vmem:[%s165 + $0x30] sm:$0xf]
      %v185 = vld [vmem:[%s165 + $0x34] sm:$0xf]
      %v186 = vld [vmem:[%s165 + $0x3c] sm:$0xf]
      %v187 = vld [vmem:[%s165 + $0x40] sm:$0xf]
      %v188 = vld [vmem:[%s165 + $0x48] sm:$0xf]
      %v189 = vld [vmem:[%s165 + $0x4c] sm:$0xf]
      %v190 = vld [vmem:[%s165 + $0x54] sm:$0xf]
      %v191 = vld [vmem:[%s165 + $0x58] sm:$0xf]
      %v192 = vld [vmem:[%s165 + $0x60] sm:$0xf]
      %v193 = vld [vmem:[%s165 + $0x64] sm:$0xf]
      %v194 = vld [vmem:[%s165 + $0x6c] sm:$0xf]
      %v195 = vld [vmem:[%s165 + $0x70] sm:$0xf]
      %v196 = vld [vmem:[%s165 + $0x78] sm:$0xf]
      %v197 = vld [vmem:[%s165 + $0x7c] sm:$0xf]
      %v198 = vld [vmem:[%s165 + $0x84] sm:$0xf]
      %v199 = vld [vmem:[%s165 + $0x88] sm:$0xf]
      %v200 = vld [vmem:[%s165 + $0x90] sm:$0xf]
      %v201 = vld [vmem:[%s165 + $0x94] sm:$0xf]
      %v202 = vld [vmem:[%s165 + $0x9c] sm:$0xf]
      %v203 = vld [vmem:[%s165 + $0xa0] sm:$0xf]
      %v204 = vld [vmem:[%s165 + $0xa8] sm:$0xf]
      %v205 = vld [vmem:[%s165 + $0xac] sm:$0xf]
      %v206 = vld [vmem:[%s165 + $0xb4] sm:$0xf]
      %v207 = vld [vmem:[%s165 + $0xb8] sm:$0xf]
      %v208 = vld [vmem:[%s1] sm:$0x3]
      %v241 = vunpack.c.l.b16 %v176
      %v242 = vunpack.c.l.b16 %v177
      %v243 = vunpack.c.l.b16 %v178
      %v244 = vunpack.c.l.b16 %v179
      %v245 = vunpack.c.l.b16 %v180
      %v246 = vunpack.c.l.b16 %v181
      %v247 = vunpack.c.l.b16 %v182
      %v248 = vunpack.c.l.b16 %v183
      %v249 = vunpack.c.l.b16 %v184
      %v250 = vunpack.c.l.b16 %v185
      %v251 = vunpack.c.l.b16 %v186
      %v252 = vunpack.c.l.b16 %v187
      %v253 = vunpack.c.l.b16 %v188
      %v254 = vunpack.c.l.b16 %v189
      %v255 = vunpack.c.l.b16 %v190
      %v256 = vunpack.c.l.b16 %v191
      %v257 = vunpack.c.l.b16 %v192
      %v258 = vunpack.c.l.b16 %v193
      %v259 = vunpack.c.l.b16 %v194
      %v260 = vunpack.c.l.b16 %v195
      %v261 = vunpack.c.l.b16 %v196
      %v262 = vunpack.c.l.b16 %v197
      %v263 = vunpack.c.l.b16 %v198
      %v264 = vunpack.c.l.b16 %v199
      %v265 = vunpack.c.l.b16 %v200
      %v266 = vunpack.c.l.b16 %v201
      %v267 = vunpack.c.l.b16 %v202
      %v268 = vunpack.c.l.b16 %v203
      %v269 = vunpack.c.l.b16 %v204
      %v270 = vunpack.c.l.b16 %v205
      %v271 = vunpack.c.l.b16 %v206
      %v272 = vunpack.c.l.b16 %v207
      %v273 = vpack.c.b16 %v242, %v241
      %v274 = vpack.c.b16 %v244, %v243
      %v275 = vpack.c.b16 %v246, %v245
      %v276 = vpack.c.b16 %v248, %v247
      %v277 = vpack.c.b16 %v250, %v249
      %v278 = vpack.c.b16 %v252, %v251
      %v279 = vpack.c.b16 %v254, %v253
      %v280 = vpack.c.b16 %v256, %v255
      %v281 = vpack.c.b16 %v258, %v257
      %v282 = vpack.c.b16 %v260, %v259
      %v283 = vpack.c.b16 %v262, %v261
      %v284 = vpack.c.b16 %v264, %v263
      %v285 = vpack.c.b16 %v266, %v265
      %v286 = vpack.c.b16 %v268, %v267
      %v287 = vpack.c.b16 %v270, %v269
      %v288 = vpack.c.b16 %v272, %v271
      %vm289 = vcmask 31744
      %v291 = vsel %vm289, %v273, 0
      %v294 = vsel %vm289, %v274, 0
      %v297 = vsel %vm289, %v275, 0
      %v300 = vsel %vm289, %v276, 0
      %v303 = vsel %vm289, %v277, 0
      %v306 = vsel %vm289, %v278, 0
      %v309 = vsel %vm289, %v279, 0
      %v312 = vsel %vm289, %v280, 0
      %v315 = vsel %vm289, %v281, 0
      %v318 = vsel %vm289, %v282, 0
      %v321 = vsel %vm289, %v283, 0
      %v324 = vsel %vm289, %v284, 0
      %v327 = vsel %vm289, %v285, 0
      %v330 = vsel %vm289, %v286, 0
      %v333 = vsel %vm289, %v287, 0
      %v336 = vsel %vm289, %v288, 0
      %vm338 = vcmask 1041408
      %v340 = vsel %vm338, %v208, 0
      %342 = vmatpush.bf16.msra.mxu0 0
      %343 = vmatpush.bf16.msra.mxu0 0
      %344 = vmatpush.bf16.msra.mxu0 0
      %345 = vmatpush.bf16.msra.mxu0 0
      %346 = vmatpush.bf16.msra.mxu0 0
      %347 = vmatpush.bf16.msra.mxu0 0
      %348 = vmatpush.bf16.msra.mxu0 0
      %349 = vmatpush.bf16.msra.mxu0 %v340
      %350 = vmatmul.bf16.gmra.mxu0 %v291
      %v351 = vpop.f32.mrf.mxu0
      %v352 = vadd.f32 0.0, %v351
      %v353 = vpop.f32.mrf.mxu0
      %v354 = vadd.f32 0.0, %v353
      %355 = vmatmul.bf16.gmra.mxu0 %v294
      %v356 = vpop.f32.mrf.mxu0
      %v357 = vadd.f32 0.0, %v356
      %v358 = vpop.f32.mrf.mxu0
      %v359 = vadd.f32 0.0, %v358
      %360 = vmatmul.bf16.gmra.mxu0 %v297
      %v361 = vpop.f32.mrf.mxu0
      %v362 = vadd.f32 0.0, %v361
      %v363 = vpop.f32.mrf.mxu0
      %v364 = vadd.f32 0.0, %v363
      %365 = vmatmul.bf16.gmra.mxu0 %v300
      %v366 = vpop.f32.mrf.mxu0
      %v367 = vadd.f32 0.0, %v366
      %v368 = vpop.f32.mrf.mxu0
      %v369 = vadd.f32 0.0, %v368
      %370 = vmatmul.bf16.gmra.mxu0 %v303
      %v371 = vpop.f32.mrf.mxu0
      %v372 = vadd.f32 0.0, %v371
      %v373 = vpop.f32.mrf.mxu0
      %v374 = vadd.f32 0.0, %v373
      %375 = vmatmul.bf16.gmra.mxu0 %v306
      %v376 = vpop.f32.mrf.mxu0
      %v377 = vadd.f32 0.0, %v376
      %v378 = vpop.f32.mrf.mxu0
      %v379 = vadd.f32 0.0, %v378
      %380 = vmatmul.bf16.gmra.mxu0 %v309
      %v381 = vpop.f32.mrf.mxu0
      %v382 = vadd.f32 0.0, %v381
      %v383 = vpop.f32.mrf.mxu0
      %v384 = vadd.f32 0.0, %v383
      %385 = vmatmul.bf16.gmra.mxu0 %v312
      %v386 = vpop.f32.mrf.mxu0
      %v387 = vadd.f32 0.0, %v386
      %v388 = vpop.f32.mrf.mxu0
      %v389 = vadd.f32 0.0, %v388
      %390 = vmatmul.bf16.gmra.mxu0 %v315
      %v391 = vpop.f32.mrf.mxu0
      %v392 = vadd.f32 0.0, %v391
      %v393 = vpop.f32.mrf.mxu0
      %v394 = vadd.f32 0.0, %v393
      %395 = vmatmul.bf16.gmra.mxu0 %v318
      %v396 = vpop.f32.mrf.mxu0
      %v397 = vadd.f32 0.0, %v396
      %v398 = vpop.f32.mrf.mxu0
      %v399 = vadd.f32 0.0, %v398
      %400 = vmatmul.bf16.gmra.mxu0 %v321
      %v401 = vpop.f32.mrf.mxu0
      %v402 = vadd.f32 0.0, %v401
      %v403 = vpop.f32.mrf.mxu0
      %v404 = vadd.f32 0.0, %v403
      %405 = vmatmul.bf16.gmra.mxu0 %v324
      %v406 = vpop.f32.mrf.mxu0
      %v407 = vadd.f32 0.0, %v406
      %v408 = vpop.f32.mrf.mxu0
      %v409 = vadd.f32 0.0, %v408
      %410 = vmatmul.bf16.gmra.mxu0 %v327
      %v411 = vpop.f32.mrf.mxu0
      %v412 = vadd.f32 0.0, %v411
      %v413 = vpop.f32.mrf.mxu0
      %v414 = vadd.f32 0.0, %v413
      %415 = vmatmul.bf16.gmra.mxu0 %v330
      %v416 = vpop.f32.mrf.mxu0
      %v417 = vadd.f32 0.0, %v416
      %v418 = vpop.f32.mrf.mxu0
      %v419 = vadd.f32 0.0, %v418
      %420 = vmatmul.bf16.gmra.mxu0 %v333
      %v421 = vpop.f32.mrf.mxu0
      %v422 = vadd.f32 0.0, %v421
      %v423 = vpop.f32.mrf.mxu0
      %v424 = vadd.f32 0.0, %v423
      %425 = vmatmul.bf16.gmra.mxu0 %v336
      %v426 = vpop.f32.mrf.mxu0
      %v427 = vadd.f32 0.0, %v426
      %v428 = vpop.f32.mrf.mxu0
      %v429 = vadd.f32 0.0, %v428
      %430 = vdwg.mxu0
      %v431 = vadd.f32 %v174, %v352
      %v432 = vadd.f32 %v174, %v354
      %v433 = vadd.f32 %v174, %v357
      %v434 = vadd.f32 %v174, %v359
      %v435 = vadd.f32 %v174, %v362
      %v436 = vadd.f32 %v174, %v364
      %v437 = vadd.f32 %v174, %v367
      %v438 = vadd.f32 %v174, %v369
      %v439 = vadd.f32 %v174, %v372
      %v440 = vadd.f32 %v174, %v374
      %v441 = vadd.f32 %v174, %v377
      %v442 = vadd.f32 %v174, %v379
      %v443 = vadd.f32 %v174, %v382
      %v444 = vadd.f32 %v174, %v384
      %v445 = vadd.f32 %v174, %v387
      %v446 = vadd.f32 %v174, %v389
      %v447 = vadd.f32 %v174, %v392
      %v448 = vadd.f32 %v174, %v394
      %v449 = vadd.f32 %v174, %v397
      %v450 = vadd.f32 %v174, %v399
      %v451 = vadd.f32 %v174, %v402
      %v452 = vadd.f32 %v174, %v404
      %v453 = vadd.f32 %v174, %v407
      %v454 = vadd.f32 %v174, %v409
      %v455 = vadd.f32 %v174, %v412
      %v456 = vadd.f32 %v174, %v414
      %v457 = vadd.f32 %v174, %v417
      %v458 = vadd.f32 %v174, %v419
      %v459 = vadd.f32 %v174, %v422
      %v460 = vadd.f32 %v174, %v424
      %v461 = vadd.f32 %v174, %v427
      %v462 = vadd.f32 %v174, %v429
      %v463 = vld [vmem:[%s165] sm:$0xf]
      %v464 = vld [vmem:[%s165 + $0x4] sm:$0xf]
      %v465 = vld [vmem:[%s165 + $0x8] sm:$0x1]
      %v466 = vld [vmem:[%s165 + $0xc] sm:$0xf]
      %v467 = vld [vmem:[%s165 + $0x10] sm:$0xf]
      %v468 = vld [vmem:[%s165 + $0x14] sm:$0x1]
      %v469 = vld [vmem:[%s165 + $0x18] sm:$0xf]
      %v470 = vld [vmem:[%s165 + $0x1c] sm:$0xf]
      %v471 = vld [vmem:[%s165 + $0x20] sm:$0x1]
      %v472 = vld [vmem:[%s165 + $0x24] sm:$0xf]
      %v473 = vld [vmem:[%s165 + $0x28] sm:$0xf]
      %v474 = vld [vmem:[%s165 + $0x2c] sm:$0x1]
      %v475 = vld [vmem:[%s165 + $0x30] sm:$0xf]
      %v476 = vld [vmem:[%s165 + $0x34] sm:$0xf]
      %v477 = vld [vmem:[%s165 + $0x38] sm:$0x1]
      %v478 = vld [vmem:[%s165 + $0x3c] sm:$0xf]
      %v479 = vld [vmem:[%s165 + $0x40] sm:$0xf]
      %v480 = vld [vmem:[%s165 + $0x44] sm:$0x1]
      %v481 = vld [vmem:[%s165 + $0x48] sm:$0xf]
      %v482 = vld [vmem:[%s165 + $0x4c] sm:$0xf]
      %v483 = vld [vmem:[%s165 + $0x50] sm:$0x1]
      %v484 = vld [vmem:[%s165 + $0x54] sm:$0xf]
      %v485 = vld [vmem:[%s165 + $0x58] sm:$0xf]
      %v486 = vld [vmem:[%s165 + $0x5c] sm:$0x1]
      %v487 = vld [vmem:[%s165 + $0x60] sm:$0xf]
      %v488 = vld [vmem:[%s165 + $0x64] sm:$0xf]
      %v489 = vld [vmem:[%s165 + $0x68] sm:$0x1]
      %v490 = vld [vmem:[%s165 + $0x6c] sm:$0xf]
      %v491 = vld [vmem:[%s165 + $0x70] sm:$0xf]
      %v492 = vld [vmem:[%s165 + $0x74] sm:$0x1]
      %v493 = vld [vmem:[%s165 + $0x78] sm:$0xf]
      %v494 = vld [vmem:[%s165 + $0x7c] sm:$0xf]
      %v495 = vld [vmem:[%s165 + $0x80] sm:$0x1]
      %v496 = vld [vmem:[%s165 + $0x84] sm:$0xf]
      %v497 = vld [vmem:[%s165 + $0x88] sm:$0xf]
      %v498 = vld [vmem:[%s165 + $0x8c] sm:$0x1]
      %v499 = vld [vmem:[%s165 + $0x90] sm:$0xf]
      %v500 = vld [vmem:[%s165 + $0x94] sm:$0xf]
      %v501 = vld [vmem:[%s165 + $0x98] sm:$0x1]
      %v502 = vld [vmem:[%s165 + $0x9c] sm:$0xf]
      %v503 = vld [vmem:[%s165 + $0xa0] sm:$0xf]
      %v504 = vld [vmem:[%s165 + $0xa4] sm:$0x1]
      %v505 = vld [vmem:[%s165 + $0xa8] sm:$0xf]
      %v506 = vld [vmem:[%s165 + $0xac] sm:$0xf]
      %v507 = vld [vmem:[%s165 + $0xb0] sm:$0x1]
      %v508 = vld [vmem:[%s165 + $0xb4] sm:$0xf]
      %v509 = vld [vmem:[%s165 + $0xb8] sm:$0xf]
      %v510 = vld [vmem:[%s165 + $0xbc] sm:$0x1]
      %vm511 = vsmask.f32 3328
      %vm512 = vsmask.f32 7440
      %vm513 = vmor %vm511, %vm512
      %v515 = vshrl.u32 %v463, 16
      %v517 = vrot.slane %v515, 4
      %v518 = vshll.u32 %v463, 16
      %v520 = vrot.slane %v518, 5
      %v521 = vor.u32 %v517, %v520
      %v522 = vrot.slane %v521, 4
      %v524 = vshll.u32 %v464, 16
      %v526 = vrot.slane %v524, 5
      %v527 = vsel %vm513, %v522, %v526
      %v528 = vshrl.u32 %v464, 16
      %v530 = vrot.slane %v528, 4
      %v531 = vor.u32 %v530, %v526
      %v532 = vrot.slane %v531, 4
      %v534 = vshll.u32 %v465, 16
      %v536 = vrot.slane %v534, 5
      %v537 = vsel %vm513, %v532, %v536
      %v539 = vshrl.u32 %v466, 16
      %v541 = vrot.slane %v539, 4
      %v542 = vshll.u32 %v466, 16
      %v544 = vrot.slane %v542, 5
      %v545 = vor.u32 %v541, %v544
      %v546 = vrot.slane %v545, 4
      %v548 = vshll.u32 %v467, 16
      %v550 = vrot.slane %v548, 5
      %v551 = vsel %vm513, %v546, %v550
      %v552 = vshrl.u32 %v467, 16
      %v554 = vrot.slane %v552, 4
      %v555 = vor.u32 %v554, %v550
      %v556 = vrot.slane %v555, 4
      %v558 = vshll.u32 %v468, 16
      %v560 = vrot.slane %v558, 5
      %v561 = vsel %vm513, %v556, %v560
      %v563 = vshrl.u32 %v469, 16
      %v565 = vrot.slane %v563, 4
      %v566 = vshll.u32 %v469, 16
      %v568 = vrot.slane %v566, 5
      %v569 = vor.u32 %v565, %v568
      %v570 = vrot.slane %v569, 4
      %v572 = vshll.u32 %v470, 16
      %v574 = vrot.slane %v572, 5
      %v575 = vsel %vm513, %v570, %v574
      %v576 = vshrl.u32 %v470, 16
      %v578 = vrot.slane %v576, 4
      %v579 = vor.u32 %v578, %v574
      %v580 = vrot.slane %v579, 4
      %v582 = vshll.u32 %v471, 16
      %v584 = vrot.slane %v582, 5
      %v585 = vsel %vm513, %v580, %v584
      %v587 = vshrl.u32 %v472, 16
      %v589 = vrot.slane %v587, 4
      %v590 = vshll.u32 %v472, 16
      %v592 = vrot.slane %v590, 5
      %v593 = vor.u32 %v589, %v592
      %v594 = vrot.slane %v593, 4
      %v596 = vshll.u32 %v473, 16
      %v598 = vrot.slane %v596, 5
      %v599 = vsel %vm513, %v594, %v598
      %v600 = vshrl.u32 %v473, 16
      %v602 = vrot.slane %v600, 4
      %v603 = vor.u32 %v602, %v598
      %v604 = vrot.slane %v603, 4
      %v606 = vshll.u32 %v474, 16
      %v608 = vrot.slane %v606, 5
      %v609 = vsel %vm513, %v604, %v608
      %v611 = vshrl.u32 %v475, 16
      %v613 = vrot.slane %v611, 4
      %v614 = vshll.u32 %v475, 16
      %v616 = vrot.slane %v614, 5
      %v617 = vor.u32 %v613, %v616
      %v618 = vrot.slane %v617, 4
      %v620 = vshll.u32 %v476, 16
      %v622 = vrot.slane %v620, 5
      %v623 = vsel %vm513, %v618, %v622
      %v624 = vshrl.u32 %v476, 16
      %v626 = vrot.slane %v624, 4
      %v627 = vor.u32 %v626, %v622
      %v628 = vrot.slane %v627, 4
      %v630 = vshll.u32 %v477, 16
      %v632 = vrot.slane %v630, 5
      %v633 = vsel %vm513, %v628, %v632
      %v635 = vshrl.u32 %v478, 16
      %v637 = vrot.slane %v635, 4
      %v638 = vshll.u32 %v478, 16
      %v640 = vrot.slane %v638, 5
      %v641 = vor.u32 %v637, %v640
      %v642 = vrot.slane %v641, 4
      %v644 = vshll.u32 %v479, 16
      %v646 = vrot.slane %v644, 5
      %v647 = vsel %vm513, %v642, %v646
      %v648 = vshrl.u32 %v479, 16
      %v650 = vrot.slane %v648, 4
      %v651 = vor.u32 %v650, %v646
      %v652 = vrot.slane %v651, 4
      %v654 = vshll.u32 %v480, 16
      %v656 = vrot.slane %v654, 5
      %v657 = vsel %vm513, %v652, %v656
      %v659 = vshrl.u32 %v481, 16
      %v661 = vrot.slane %v659, 4
      %v662 = vshll.u32 %v481, 16
      %v664 = vrot.slane %v662, 5
      %v665 = vor.u32 %v661, %v664
      %v666 = vrot.slane %v665, 4
      %v668 = vshll.u32 %v482, 16
      %v670 = vrot.slane %v668, 5
      %v671 = vsel %vm513, %v666, %v670
      %v672 = vshrl.u32 %v482, 16
      %v674 = vrot.slane %v672, 4
      %v675 = vor.u32 %v674, %v670
      %v676 = vrot.slane %v675, 4
      %v678 = vshll.u32 %v483, 16
      %v680 = vrot.slane %v678, 5
      %v681 = vsel %vm513, %v676, %v680
      %v683 = vshrl.u32 %v484, 16
      %v685 = vrot.slane %v683, 4
      %v686 = vshll.u32 %v484, 16
      %v688 = vrot.slane %v686, 5
      %v689 = vor.u32 %v685, %v688
      %v690 = vrot.slane %v689, 4
      %v692 = vshll.u32 %v485, 16
      %v694 = vrot.slane %v692, 5
      %v695 = vsel %vm513, %v690, %v694
      %v696 = vshrl.u32 %v485, 16
      %v698 = vrot.slane %v696, 4
      %v699 = vor.u32 %v698, %v694
      %v700 = vrot.slane %v699, 4
      %v702 = vshll.u32 %v486, 16
      %v704 = vrot.slane %v702, 5
      %v705 = vsel %vm513, %v700, %v704
      %v707 = vshrl.u32 %v487, 16
      %v709 = vrot.slane %v707, 4
      %v710 = vshll.u32 %v487, 16
      %v712 = vrot.slane %v710, 5
      %v713 = vor.u32 %v709, %v712
      %v714 = vrot.slane %v713, 4
      %v716 = vshll.u32 %v488, 16
      %v718 = vrot.slane %v716, 5
      %v719 = vsel %vm513, %v714, %v718
      %v720 = vshrl.u32 %v488, 16
      %v722 = vrot.slane %v720, 4
      %v723 = vor.u32 %v722, %v718
      %v724 = vrot.slane %v723, 4
      %v726 = vshll.u32 %v489, 16
      %v728 = vrot.slane %v726, 5
      %v729 = vsel %vm513, %v724, %v728
      %v731 = vshrl.u32 %v490, 16
      %v733 = vrot.slane %v731, 4
      %v734 = vshll.u32 %v490, 16
      %v736 = vrot.slane %v734, 5
      %v737 = vor.u32 %v733, %v736
      %v738 = vrot.slane %v737, 4
      %v740 = vshll.u32 %v491, 16
      %v742 = vrot.slane %v740, 5
      %v743 = vsel %vm513, %v738, %v742
      %v744 = vshrl.u32 %v491, 16
      %v746 = vrot.slane %v744, 4
      %v747 = vor.u32 %v746, %v742
      %v748 = vrot.slane %v747, 4
      %v750 = vshll.u32 %v492, 16
      %v752 = vrot.slane %v750, 5
      %v753 = vsel %vm513, %v748, %v752
      %v755 = vshrl.u32 %v493, 16
      %v757 = vrot.slane %v755, 4
      %v758 = vshll.u32 %v493, 16
      %v760 = vrot.slane %v758, 5
      %v761 = vor.u32 %v757, %v760
      %v762 = vrot.slane %v761, 4
      %v764 = vshll.u32 %v494, 16
      %v766 = vrot.slane %v764, 5
      %v767 = vsel %vm513, %v762, %v766
      %v768 = vshrl.u32 %v494, 16
      %v770 = vrot.slane %v768, 4
      %v771 = vor.u32 %v770, %v766
      %v772 = vrot.slane %v771, 4
      %v774 = vshll.u32 %v495, 16
      %v776 = vrot.slane %v774, 5
      %v777 = vsel %vm513, %v772, %v776
      %v779 = vshrl.u32 %v496, 16
      %v781 = vrot.slane %v779, 4
      %v782 = vshll.u32 %v496, 16
      %v784 = vrot.slane %v782, 5
      %v785 = vor.u32 %v781, %v784
      %v786 = vrot.slane %v785, 4
      %v788 = vshll.u32 %v497, 16
      %v790 = vrot.slane %v788, 5
      %v791 = vsel %vm513, %v786, %v790
      %v792 = vshrl.u32 %v497, 16
      %v794 = vrot.slane %v792, 4
      %v795 = vor.u32 %v794, %v790
      %v796 = vrot.slane %v795, 4
      %v798 = vshll.u32 %v498, 16
      %v800 = vrot.slane %v798, 5
      %v801 = vsel %vm513, %v796, %v800
      %v803 = vshrl.u32 %v499, 16
      %v805 = vrot.slane %v803, 4
      %v806 = vshll.u32 %v499, 16
      %v808 = vrot.slane %v806, 5
      %v809 = vor.u32 %v805, %v808
      %v810 = vrot.slane %v809, 4
      %v812 = vshll.u32 %v500, 16
      %v814 = vrot.slane %v812, 5
      %v815 = vsel %vm513, %v810, %v814
      %v816 = vshrl.u32 %v500, 16
      %v818 = vrot.slane %v816, 4
      %v819 = vor.u32 %v818, %v814
      %v820 = vrot.slane %v819, 4
      %v822 = vshll.u32 %v501, 16
      %v824 = vrot.slane %v822, 5
      %v825 = vsel %vm513, %v820, %v824
      %v827 = vshrl.u32 %v502, 16
      %v829 = vrot.slane %v827, 4
      %v830 = vshll.u32 %v502, 16
      %v832 = vrot.slane %v830, 5
      %v833 = vor.u32 %v829, %v832
      %v834 = vrot.slane %v833, 4
      %v836 = vshll.u32 %v503, 16
      %v838 = vrot.slane %v836, 5
      %v839 = vsel %vm513, %v834, %v838
      %v840 = vshrl.u32 %v503, 16
      %v842 = vrot.slane %v840, 4
      %v843 = vor.u32 %v842, %v838
      %v844 = vrot.slane %v843, 4
      %v846 = vshll.u32 %v504, 16
      %v848 = vrot.slane %v846, 5
      %v849 = vsel %vm513, %v844, %v848
      %v851 = vshrl.u32 %v505, 16
      %v853 = vrot.slane %v851, 4
      %v854 = vshll.u32 %v505, 16
      %v856 = vrot.slane %v854, 5
      %v857 = vor.u32 %v853, %v856
      %v858 = vrot.slane %v857, 4
      %v860 = vshll.u32 %v506, 16
      %v862 = vrot.slane %v860, 5
      %v863 = vsel %vm513, %v858, %v862
      %v864 = vshrl.u32 %v506, 16
      %v866 = vrot.slane %v864, 4
      %v867 = vor.u32 %v866, %v862
      %v868 = vrot.slane %v867, 4
      %v870 = vshll.u32 %v507, 16
      %v872 = vrot.slane %v870, 5
      %v873 = vsel %vm513, %v868, %v872
      %v875 = vshrl.u32 %v508, 16
      %v877 = vrot.slane %v875, 4
      %v878 = vshll.u32 %v508, 16
      %v880 = vrot.slane %v878, 5
      %v881 = vor.u32 %v877, %v880
      %v882 = vrot.slane %v881, 4
      %v884 = vshll.u32 %v509, 16
      %v886 = vrot.slane %v884, 5
      %v887 = vsel %vm513, %v882, %v886
      %v888 = vshrl.u32 %v509, 16
      %v890 = vrot.slane %v888, 4
      %v891 = vor.u32 %v890, %v886
      %v892 = vrot.slane %v891, 4
      %v894 = vshll.u32 %v510, 16
      %v896 = vrot.slane %v894, 5
      %v897 = vsel %vm513, %v892, %v896
      %s898 = scalar_lea.vmem %s1, 2
      %v899 = vld [vmem:[%s898] sm:$0x3]
      %v900 = vunpack.c.l.b16 %v527
      %v901 = vunpack.c.l.b16 %v537
      %v902 = vunpack.c.l.b16 %v551
      %v903 = vunpack.c.l.b16 %v561
      %v904 = vunpack.c.l.b16 %v575
      %v905 = vunpack.c.l.b16 %v585
      %v906 = vunpack.c.l.b16 %v599
      %v907 = vunpack.c.l.b16 %v609
      %v908 = vunpack.c.l.b16 %v623
      %v909 = vunpack.c.l.b16 %v633
      %v910 = vunpack.c.l.b16 %v647
      %v911 = vunpack.c.l.b16 %v657
      %v912 = vunpack.c.l.b16 %v671
      %v913 = vunpack.c.l.b16 %v681
      %v914 = vunpack.c.l.b16 %v695
      %v915 = vunpack.c.l.b16 %v705
      %v916 = vunpack.c.l.b16 %v719
      %v917 = vunpack.c.l.b16 %v729
      %v918 = vunpack.c.l.b16 %v743
      %v919 = vunpack.c.l.b16 %v753
      %v920 = vunpack.c.l.b16 %v767
      %v921 = vunpack.c.l.b16 %v777
      %v922 = vunpack.c.l.b16 %v791
      %v923 = vunpack.c.l.b16 %v801
      %v924 = vunpack.c.l.b16 %v815
      %v925 = vunpack.c.l.b16 %v825
      %v926 = vunpack.c.l.b16 %v839
      %v927 = vunpack.c.l.b16 %v849
      %v928 = vunpack.c.l.b16 %v863
      %v929 = vunpack.c.l.b16 %v873
      %v930 = vunpack.c.l.b16 %v887
      %v931 = vunpack.c.l.b16 %v897
      %v932 = vpack.c.b16 %v901, %v900
      %v933 = vpack.c.b16 %v903, %v902
      %v934 = vpack.c.b16 %v905, %v904
      %v935 = vpack.c.b16 %v907, %v906
      %v936 = vpack.c.b16 %v909, %v908
      %v937 = vpack.c.b16 %v911, %v910
      %v938 = vpack.c.b16 %v913, %v912
      %v939 = vpack.c.b16 %v915, %v914
      %v940 = vpack.c.b16 %v917, %v916
      %v941 = vpack.c.b16 %v919, %v918
      %v942 = vpack.c.b16 %v921, %v920
      %v943 = vpack.c.b16 %v923, %v922
      %v944 = vpack.c.b16 %v925, %v924
      %v945 = vpack.c.b16 %v927, %v926
      %v946 = vpack.c.b16 %v929, %v928
      %v947 = vpack.c.b16 %v931, %v930
      %v949 = vsel %vm289, %v932, 0
      %v952 = vsel %vm289, %v933, 0
      %v955 = vsel %vm289, %v934, 0
      %v958 = vsel %vm289, %v935, 0
      %v961 = vsel %vm289, %v936, 0
      %v964 = vsel %vm289, %v937, 0
      %v967 = vsel %vm289, %v938, 0
      %v970 = vsel %vm289, %v939, 0
      %v973 = vsel %vm289, %v940, 0
      %v976 = vsel %vm289, %v941, 0
      %v979 = vsel %vm289, %v942, 0
      %v982 = vsel %vm289, %v943, 0
      %v985 = vsel %vm289, %v944, 0
      %v988 = vsel %vm289, %v945, 0
      %v991 = vsel %vm289, %v946, 0
      %v994 = vsel %vm289, %v947, 0
      %v997 = vsel %vm338, %v899, 0
      %999 = vmatpush.bf16.msra.mxu0 0
      %1000 = vmatpush.bf16.msra.mxu0 0
      %1001 = vmatpush.bf16.msra.mxu0 0
      %1002 = vmatpush.bf16.msra.mxu0 0
      %1003 = vmatpush.bf16.msra.mxu0 0
      %1004 = vmatpush.bf16.msra.mxu0 0
      %1005 = vmatpush.bf16.msra.mxu0 0
      %1006 = vmatpush.bf16.msra.mxu0 %v997
      %1007 = vmatmul.bf16.gmra.mxu0 %v949
      %v1008 = vpop.f32.mrf.mxu0
      %v1009 = vadd.f32 0.0, %v1008
      %v1010 = vpop.f32.mrf.mxu0
      %v1011 = vadd.f32 0.0, %v1010
      %1012 = vmatmul.bf16.gmra.mxu0 %v952
      %v1013 = vpop.f32.mrf.mxu0
      %v1014 = vadd.f32 0.0, %v1013
      %v1015 = vpop.f32.mrf.mxu0
      %v1016 = vadd.f32 0.0, %v1015
      %1017 = vmatmul.bf16.gmra.mxu0 %v955
      %v1018 = vpop.f32.mrf.mxu0
      %v1019 = vadd.f32 0.0, %v1018
      %v1020 = vpop.f32.mrf.mxu0
      %v1021 = vadd.f32 0.0, %v1020
      %1022 = vmatmul.bf16.gmra.mxu0 %v958
      %v1023 = vpop.f32.mrf.mxu0
      %v1024 = vadd.f32 0.0, %v1023
      %v1025 = vpop.f32.mrf.mxu0
      %v1026 = vadd.f32 0.0, %v1025
      %1027 = vmatmul.bf16.gmra.mxu0 %v961
      %v1028 = vpop.f32.mrf.mxu0
      %v1029 = vadd.f32 0.0, %v1028
      %v1030 = vpop.f32.mrf.mxu0
      %v1031 = vadd.f32 0.0, %v1030
      %1032 = vmatmul.bf16.gmra.mxu0 %v964
      %v1033 = vpop.f32.mrf.mxu0
      %v1034 = vadd.f32 0.0, %v1033
      %v1035 = vpop.f32.mrf.mxu0
      %v1036 = vadd.f32 0.0, %v1035
      %1037 = vmatmul.bf16.gmra.mxu0 %v967
      %v1038 = vpop.f32.mrf.mxu0
      %v1039 = vadd.f32 0.0, %v1038
      %v1040 = vpop.f32.mrf.mxu0
      %v1041 = vadd.f32 0.0, %v1040
      %1042 = vmatmul.bf16.gmra.mxu0 %v970
      %v1043 = vpop.f32.mrf.mxu0
      %v1044 = vadd.f32 0.0, %v1043
      %v1045 = vpop.f32.mrf.mxu0
      %v1046 = vadd.f32 0.0, %v1045
      %1047 = vmatmul.bf16.gmra.mxu0 %v973
      %v1048 = vpop.f32.mrf.mxu0
      %v1049 = vadd.f32 0.0, %v1048
      %v1050 = vpop.f32.mrf.mxu0
      %v1051 = vadd.f32 0.0, %v1050
      %1052 = vmatmul.bf16.gmra.mxu0 %v976
      %v1053 = vpop.f32.mrf.mxu0
      %v1054 = vadd.f32 0.0, %v1053
      %v1055 = vpop.f32.mrf.mxu0
      %v1056 = vadd.f32 0.0, %v1055
      %1057 = vmatmul.bf16.gmra.mxu0 %v979
      %v1058 = vpop.f32.mrf.mxu0
      %v1059 = vadd.f32 0.0, %v1058
      %v1060 = vpop.f32.mrf.mxu0
      %v1061 = vadd.f32 0.0, %v1060
      %1062 = vmatmul.bf16.gmra.mxu0 %v982
      %v1063 = vpop.f32.mrf.mxu0
      %v1064 = vadd.f32 0.0, %v1063
      %v1065 = vpop.f32.mrf.mxu0
      %v1066 = vadd.f32 0.0, %v1065
      %1067 = vmatmul.bf16.gmra.mxu0 %v985
      %v1068 = vpop.f32.mrf.mxu0
      %v1069 = vadd.f32 0.0, %v1068
      %v1070 = vpop.f32.mrf.mxu0
      %v1071 = vadd.f32 0.0, %v1070
      %1072 = vmatmul.bf16.gmra.mxu0 %v988
      %v1073 = vpop.f32.mrf.mxu0
      %v1074 = vadd.f32 0.0, %v1073
      %v1075 = vpop.f32.mrf.mxu0
      %v1076 = vadd.f32 0.0, %v1075
      %1077 = vmatmul.bf16.gmra.mxu0 %v991
      %v1078 = vpop.f32.mrf.mxu0
      %v1079 = vadd.f32 0.0, %v1078
      %v1080 = vpop.f32.mrf.mxu0
      %v1081 = vadd.f32 0.0, %v1080
      %1082 = vmatmul.bf16.gmra.mxu0 %v994
      %v1083 = vpop.f32.mrf.mxu0
      %v1084 = vadd.f32 0.0, %v1083
      %v1085 = vpop.f32.mrf.mxu0
      %v1086 = vadd.f32 0.0, %v1085
      %1087 = vdwg.mxu0
      %v1088 = vadd.f32 %v431, %v1009
      %v1089 = vadd.f32 %v432, %v1011
      %v1090 = vadd.f32 %v433, %v1014
      %v1091 = vadd.f32 %v434, %v1016
      %v1092 = vadd.f32 %v435, %v1019
      %v1093 = vadd.f32 %v436, %v1021
      %v1094 = vadd.f32 %v437, %v1024
      %v1095 = vadd.f32 %v438, %v1026
      %v1096 = vadd.f32 %v439, %v1029
      %v1097 = vadd.f32 %v440, %v1031
      %v1098 = vadd.f32 %v441, %v1034
      %v1099 = vadd.f32 %v442, %v1036
      %v1100 = vadd.f32 %v443, %v1039
      %v1101 = vadd.f32 %v444, %v1041
      %v1102 = vadd.f32 %v445, %v1044
      %v1103 = vadd.f32 %v446, %v1046
      %v1104 = vadd.f32 %v447, %v1049
      %v1105 = vadd.f32 %v448, %v1051
      %v1106 = vadd.f32 %v449, %v1054
      %v1107 = vadd.f32 %v450, %v1056
      %v1108 = vadd.f32 %v451, %v1059
      %v1109 = vadd.f32 %v452, %v1061
      %v1110 = vadd.f32 %v453, %v1064
      %v1111 = vadd.f32 %v454, %v1066
      %v1112 = vadd.f32 %v455, %v1069
      %v1113 = vadd.f32 %v456, %v1071
      %v1114 = vadd.f32 %v457, %v1074
      %v1115 = vadd.f32 %v458, %v1076
      %v1116 = vadd.f32 %v459, %v1079
      %v1117 = vadd.f32 %v460, %v1081
      %v1118 = vadd.f32 %v461, %v1084
      %v1119 = vadd.f32 %v462, %v1086
      %v1120 = vld [vmem:[%s165] sm:$0xe]
      %v1121 = vld [vmem:[%s165 + $0xc] sm:$0xe]
      %v1122 = vld [vmem:[%s165 + $0x18] sm:$0xe]
      %v1123 = vld [vmem:[%s165 + $0x24] sm:$0xe]
      %v1124 = vld [vmem:[%s165 + $0x30] sm:$0xe]
      %v1125 = vld [vmem:[%s165 + $0x3c] sm:$0xe]
      %v1126 = vld [vmem:[%s165 + $0x48] sm:$0xe]
      %v1127 = vld [vmem:[%s165 + $0x54] sm:$0xe]
      %v1128 = vld [vmem:[%s165 + $0x60] sm:$0xe]
      %v1129 = vld [vmem:[%s165 + $0x6c] sm:$0xe]
      %v1130 = vld [vmem:[%s165 + $0x78] sm:$0xe]
      %v1131 = vld [vmem:[%s165 + $0x84] sm:$0xe]
      %v1132 = vld [vmem:[%s165 + $0x90] sm:$0xe]
      %v1133 = vld [vmem:[%s165 + $0x9c] sm:$0xe]
      %v1134 = vld [vmem:[%s165 + $0xa8] sm:$0xe]
      %v1135 = vld [vmem:[%s165 + $0xb4] sm:$0xe]
      %vm1184 = vcmask 1042432
      %vm1185 = vcmask 1046532
      %vm1186 = vmor %vm1184, %vm1185
      %v1187 = vrot.slane %v1120, 5
      %v1188 = vrot.slane %v1187, 4
      %v1189 = vrot.slane %v464, 5
      %v1190 = vsel %vm1186, %v1188, %v1189
      %v1191 = vrot.slane %v1189, 4
      %v1192 = vrot.slane %v465, 5
      %v1193 = vsel %vm1186, %v1191, %v1192
      %v1194 = vrot.slane %v1121, 5
      %v1195 = vrot.slane %v1194, 4
      %v1196 = vrot.slane %v467, 5
      %v1197 = vsel %vm1186, %v1195, %v1196
      %v1198 = vrot.slane %v1196, 4
      %v1199 = vrot.slane %v468, 5
      %v1200 = vsel %vm1186, %v1198, %v1199
      %v1201 = vrot.slane %v1122, 5
      %v1202 = vrot.slane %v1201, 4
      %v1203 = vrot.slane %v470, 5
      %v1204 = vsel %vm1186, %v1202, %v1203
      %v1205 = vrot.slane %v1203, 4
      %v1206 = vrot.slane %v471, 5
      %v1207 = vsel %vm1186, %v1205, %v1206
      %v1208 = vrot.slane %v1123, 5
      %v1209 = vrot.slane %v1208, 4
      %v1210 = vrot.slane %v473, 5
      %v1211 = vsel %vm1186, %v1209, %v1210
      %v1212 = vrot.slane %v1210, 4
      %v1213 = vrot.slane %v474, 5
      %v1214 = vsel %vm1186, %v1212, %v1213
      %v1215 = vrot.slane %v1124, 5
      %v1216 = vrot.slane %v1215, 4
      %v1217 = vrot.slane %v476, 5
      %v1218 = vsel %vm1186, %v1216, %v1217
      %v1219 = vrot.slane %v1217, 4
      %v1220 = vrot.slane %v477, 5
      %v1221 = vsel %vm1186, %v1219, %v1220
      %v1222 = vrot.slane %v1125, 5
      %v1223 = vrot.slane %v1222, 4
      %v1224 = vrot.slane %v479, 5
      %v1225 = vsel %vm1186, %v1223, %v1224
      %v1226 = vrot.slane %v1224, 4
      %v1227 = vrot.slane %v480, 5
      %v1228 = vsel %vm1186, %v1226, %v1227
      %v1229 = vrot.slane %v1126, 5
      %v1230 = vrot.slane %v1229, 4
      %v1231 = vrot.slane %v482, 5
      %v1232 = vsel %vm1186, %v1230, %v1231
      %v1233 = vrot.slane %v1231, 4
      %v1234 = vrot.slane %v483, 5
      %v1235 = vsel %vm1186, %v1233, %v1234
      %v1236 = vrot.slane %v1127, 5
      %v1237 = vrot.slane %v1236, 4
      %v1238 = vrot.slane %v485, 5
      %v1239 = vsel %vm1186, %v1237, %v1238
      %v1240 = vrot.slane %v1238, 4
      %v1241 = vrot.slane %v486, 5
      %v1242 = vsel %vm1186, %v1240, %v1241
      %v1243 = vrot.slane %v1128, 5
      %v1244 = vrot.slane %v1243, 4
      %v1245 = vrot.slane %v488, 5
      %v1246 = vsel %vm1186, %v1244, %v1245
      %v1247 = vrot.slane %v1245, 4
      %v1248 = vrot.slane %v489, 5
      %v1249 = vsel %vm1186, %v1247, %v1248
      %v1250 = vrot.slane %v1129, 5
      %v1251 = vrot.slane %v1250, 4
      %v1252 = vrot.slane %v491, 5
      %v1253 = vsel %vm1186, %v1251, %v1252
      %v1254 = vrot.slane %v1252, 4
      %v1255 = vrot.slane %v492, 5
      %v1256 = vsel %vm1186, %v1254, %v1255
      %v1257 = vrot.slane %v1130, 5
      %v1258 = vrot.slane %v1257, 4
      %v1259 = vrot.slane %v494, 5
      %v1260 = vsel %vm1186, %v1258, %v1259
      %v1261 = vrot.slane %v1259, 4
      %v1262 = vrot.slane %v495, 5
      %v1263 = vsel %vm1186, %v1261, %v1262
      %v1264 = vrot.slane %v1131, 5
      %v1265 = vrot.slane %v1264, 4
      %v1266 = vrot.slane %v497, 5
      %v1267 = vsel %vm1186, %v1265, %v1266
      %v1268 = vrot.slane %v1266, 4
      %v1269 = vrot.slane %v498, 5
      %v1270 = vsel %vm1186, %v1268, %v1269
      %v1271 = vrot.slane %v1132, 5
      %v1272 = vrot.slane %v1271, 4
      %v1273 = vrot.slane %v500, 5
      %v1274 = vsel %vm1186, %v1272, %v1273
      %v1275 = vrot.slane %v1273, 4
      %v1276 = vrot.slane %v501, 5
      %v1277 = vsel %vm1186, %v1275, %v1276
      %v1278 = vrot.slane %v1133, 5
      %v1279 = vrot.slane %v1278, 4
      %v1280 = vrot.slane %v503, 5
      %v1281 = vsel %vm1186, %v1279, %v1280
      %v1282 = vrot.slane %v1280, 4
      %v1283 = vrot.slane %v504, 5
      %v1284 = vsel %vm1186, %v1282, %v1283
      %v1285 = vrot.slane %v1134, 5
      %v1286 = vrot.slane %v1285, 4
      %v1287 = vrot.slane %v506, 5
      %v1288 = vsel %vm1186, %v1286, %v1287
      %v1289 = vrot.slane %v1287, 4
      %v1290 = vrot.slane %v507, 5
      %v1291 = vsel %vm1186, %v1289, %v1290
      %v1292 = vrot.slane %v1135, 5
      %v1293 = vrot.slane %v1292, 4
      %v1294 = vrot.slane %v509, 5
      %v1295 = vsel %vm1186, %v1293, %v1294
      %v1296 = vrot.slane %v1294, 4
      %v1297 = vrot.slane %v510, 5
      %v1298 = vsel %vm1186, %v1296, %v1297
      %s1299 = scalar_lea.vmem %s1, 4
      %v1300 = vld [vmem:[%s1299] sm:$0x3]
      %v1301 = vunpack.c.l.b16 %v1190
      %v1302 = vunpack.c.l.b16 %v1193
      %v1303 = vunpack.c.l.b16 %v1197
      %v1304 = vunpack.c.l.b16 %v1200
      %v1305 = vunpack.c.l.b16 %v1204
      %v1306 = vunpack.c.l.b16 %v1207
      %v1307 = vunpack.c.l.b16 %v1211
      %v1308 = vunpack.c.l.b16 %v1214
      %v1309 = vunpack.c.l.b16 %v1218
      %v1310 = vunpack.c.l.b16 %v1221
      %v1311 = vunpack.c.l.b16 %v1225
      %v1312 = vunpack.c.l.b16 %v1228
      %v1313 = vunpack.c.l.b16 %v1232
      %v1314 = vunpack.c.l.b16 %v1235
      %v1315 = vunpack.c.l.b16 %v1239
      %v1316 = vunpack.c.l.b16 %v1242
      %v1317 = vunpack.c.l.b16 %v1246
      %v1318 = vunpack.c.l.b16 %v1249
      %v1319 = vunpack.c.l.b16 %v1253
      %v1320 = vunpack.c.l.b16 %v1256
      %v1321 = vunpack.c.l.b16 %v1260
      %v1322 = vunpack.c.l.b16 %v1263
      %v1323 = vunpack.c.l.b16 %v1267
      %v1324 = vunpack.c.l.b16 %v1270
      %v1325 = vunpack.c.l.b16 %v1274
      %v1326 = vunpack.c.l.b16 %v1277
      %v1327 = vunpack.c.l.b16 %v1281
      %v1328 = vunpack.c.l.b16 %v1284
      %v1329 = vunpack.c.l.b16 %v1288
      %v1330 = vunpack.c.l.b16 %v1291
      %v1331 = vunpack.c.l.b16 %v1295
      %v1332 = vunpack.c.l.b16 %v1298
      %v1333 = vpack.c.b16 %v1302, %v1301
      %v1334 = vpack.c.b16 %v1304, %v1303
      %v1335 = vpack.c.b16 %v1306, %v1305
      %v1336 = vpack.c.b16 %v1308, %v1307
      %v1337 = vpack.c.b16 %v1310, %v1309
      %v1338 = vpack.c.b16 %v1312, %v1311
      %v1339 = vpack.c.b16 %v1314, %v1313
      %v1340 = vpack.c.b16 %v1316, %v1315
      %v1341 = vpack.c.b16 %v1318, %v1317
      %v1342 = vpack.c.b16 %v1320, %v1319
      %v1343 = vpack.c.b16 %v1322, %v1321
      %v1344 = vpack.c.b16 %v1324, %v1323
      %v1345 = vpack.c.b16 %v1326, %v1325
      %v1346 = vpack.c.b16 %v1328, %v1327
      %v1347 = vpack.c.b16 %v1330, %v1329
      %v1348 = vpack.c.b16 %v1332, %v1331
      %v1350 = vsel %vm289, %v1333, 0
      %v1353 = vsel %vm289, %v1334, 0
      %v1356 = vsel %vm289, %v1335, 0
      %v1359 = vsel %vm289, %v1336, 0
      %v1362 = vsel %vm289, %v1337, 0
      %v1365 = vsel %vm289, %v1338, 0
      %v1368 = vsel %vm289, %v1339, 0
      %v1371 = vsel %vm289, %v1340, 0
      %v1374 = vsel %vm289, %v1341, 0
      %v1377 = vsel %vm289, %v1342, 0
      %v1380 = vsel %vm289, %v1343, 0
      %v1383 = vsel %vm289, %v1344, 0
      %v1386 = vsel %vm289, %v1345, 0
      %v1389 = vsel %vm289, %v1346, 0
      %v1392 = vsel %vm289, %v1347, 0
      %v1395 = vsel %vm289, %v1348, 0
      %v1398 = vsel %vm338, %v1300, 0
      %1400 = vmatpush.bf16.msra.mxu0 0
      %1401 = vmatpush.bf16.msra.mxu0 0
      %1402 = vmatpush.bf16.msra.mxu0 0
      %1403 = vmatpush.bf16.msra.mxu0 0
      %1404 = vmatpush.bf16.msra.mxu0 0
      %1405 = vmatpush.bf16.msra.mxu0 0
      %1406 = vmatpush.bf16.msra.mxu0 0
      %1407 = vmatpush.bf16.msra.mxu0 %v1398
      %1408 = vmatmul.bf16.gmra.mxu0 %v1350
      %v1409 = vpop.f32.mrf.mxu0
      %v1410 = vadd.f32 0.0, %v1409
      %v1411 = vpop.f32.mrf.mxu0
      %v1412 = vadd.f32 0.0, %v1411
      %1413 = vmatmul.bf16.gmra.mxu0 %v1353
      %v1414 = vpop.f32.mrf.mxu0
      %v1415 = vadd.f32 0.0, %v1414
      %v1416 = vpop.f32.mrf.mxu0
      %v1417 = vadd.f32 0.0, %v1416
      %1418 = vmatmul.bf16.gmra.mxu0 %v1356
      %v1419 = vpop.f32.mrf.mxu0
      %v1420 = vadd.f32 0.0, %v1419
      %v1421 = vpop.f32.mrf.mxu0
      %v1422 = vadd.f32 0.0, %v1421
      %1423 = vmatmul.bf16.gmra.mxu0 %v1359
      %v1424 = vpop.f32.mrf.mxu0
      %v1425 = vadd.f32 0.0, %v1424
      %v1426 = vpop.f32.mrf.mxu0
      %v1427 = vadd.f32 0.0, %v1426
      %1428 = vmatmul.bf16.gmra.mxu0 %v1362
      %v1429 = vpop.f32.mrf.mxu0
      %v1430 = vadd.f32 0.0, %v1429
      %v1431 = vpop.f32.mrf.mxu0
      %v1432 = vadd.f32 0.0, %v1431
      %1433 = vmatmul.bf16.gmra.mxu0 %v1365
      %v1434 = vpop.f32.mrf.mxu0
      %v1435 = vadd.f32 0.0, %v1434
      %v1436 = vpop.f32.mrf.mxu0
      %v1437 = vadd.f32 0.0, %v1436
      %1438 = vmatmul.bf16.gmra.mxu0 %v1368
      %v1439 = vpop.f32.mrf.mxu0
      %v1440 = vadd.f32 0.0, %v1439
      %v1441 = vpop.f32.mrf.mxu0
      %v1442 = vadd.f32 0.0, %v1441
      %1443 = vmatmul.bf16.gmra.mxu0 %v1371
      %v1444 = vpop.f32.mrf.mxu0
      %v1445 = vadd.f32 0.0, %v1444
      %v1446 = vpop.f32.mrf.mxu0
      %v1447 = vadd.f32 0.0, %v1446
      %1448 = vmatmul.bf16.gmra.mxu0 %v1374
      %v1449 = vpop.f32.mrf.mxu0
      %v1450 = vadd.f32 0.0, %v1449
      %v1451 = vpop.f32.mrf.mxu0
      %v1452 = vadd.f32 0.0, %v1451
      %1453 = vmatmul.bf16.gmra.mxu0 %v1377
      %v1454 = vpop.f32.mrf.mxu0
      %v1455 = vadd.f32 0.0, %v1454
      %v1456 = vpop.f32.mrf.mxu0
      %v1457 = vadd.f32 0.0, %v1456
      %1458 = vmatmul.bf16.gmra.mxu0 %v1380
      %v1459 = vpop.f32.mrf.mxu0
      %v1460 = vadd.f32 0.0, %v1459
      %v1461 = vpop.f32.mrf.mxu0
      %v1462 = vadd.f32 0.0, %v1461
      %1463 = vmatmul.bf16.gmra.mxu0 %v1383
      %v1464 = vpop.f32.mrf.mxu0
      %v1465 = vadd.f32 0.0, %v1464
      %v1466 = vpop.f32.mrf.mxu0
      %v1467 = vadd.f32 0.0, %v1466
      %1468 = vmatmul.bf16.gmra.mxu0 %v1386
      %v1469 = vpop.f32.mrf.mxu0
      %v1470 = vadd.f32 0.0, %v1469
      %v1471 = vpop.f32.mrf.mxu0
      %v1472 = vadd.f32 0.0, %v1471
      %1473 = vmatmul.bf16.gmra.mxu0 %v1389
      %v1474 = vpop.f32.mrf.mxu0
      %v1475 = vadd.f32 0.0, %v1474
      %v1476 = vpop.f32.mrf.mxu0
      %v1477 = vadd.f32 0.0, %v1476
      %1478 = vmatmul.bf16.gmra.mxu0 %v1392
      %v1479 = vpop.f32.mrf.mxu0
      %v1480 = vadd.f32 0.0, %v1479
      %v1481 = vpop.f32.mrf.mxu0
      %v1482 = vadd.f32 0.0, %v1481
      %1483 = vmatmul.bf16.gmra.mxu0 %v1395
      %v1484 = vpop.f32.mrf.mxu0
      %v1485 = vadd.f32 0.0, %v1484
      %v1486 = vpop.f32.mrf.mxu0
      %v1487 = vadd.f32 0.0, %v1486
      %1488 = vdwg.mxu0
      %v1489 = vadd.f32 %v1088, %v1410
      %v1490 = vadd.f32 %v1089, %v1412
      %v1491 = vadd.f32 %v1090, %v1415
      %v1492 = vadd.f32 %v1091, %v1417
      %v1493 = vadd.f32 %v1092, %v1420
      %v1494 = vadd.f32 %v1093, %v1422
      %v1495 = vadd.f32 %v1094, %v1425
      %v1496 = vadd.f32 %v1095, %v1427
      %v1497 = vadd.f32 %v1096, %v1430
      %v1498 = vadd.f32 %v1097, %v1432
      %v1499 = vadd.f32 %v1098, %v1435
      %v1500 = vadd.f32 %v1099, %v1437
      %v1501 = vadd.f32 %v1100, %v1440
      %v1502 = vadd.f32 %v1101, %v1442
      %v1503 = vadd.f32 %v1102, %v1445
      %v1504 = vadd.f32 %v1103, %v1447
      %v1505 = vadd.f32 %v1104, %v1450
      %v1506 = vadd.f32 %v1105, %v1452
      %v1507 = vadd.f32 %v1106, %v1455
      %v1508 = vadd.f32 %v1107, %v1457
      %v1509 = vadd.f32 %v1108, %v1460
      %v1510 = vadd.f32 %v1109, %v1462
      %v1511 = vadd.f32 %v1110, %v1465
      %v1512 = vadd.f32 %v1111, %v1467
      %v1513 = vadd.f32 %v1112, %v1470
      %v1514 = vadd.f32 %v1113, %v1472
      %v1515 = vadd.f32 %v1114, %v1475
      %v1516 = vadd.f32 %v1115, %v1477
      %v1517 = vadd.f32 %v1116, %v1480
      %v1518 = vadd.f32 %v1117, %v1482
      %v1519 = vadd.f32 %v1118, %v1485
      %v1520 = vadd.f32 %v1119, %v1487
      %s1521 = scalar_lea.vmem %s165, 12
      %v1522 = vld [vmem:[%s1521] sm:$0xf]
      %v1523 = vld [vmem:[%s1521 + $0x4] sm:$0xf]
      %v1524 = vld [vmem:[%s1521 + $0xc] sm:$0xf]
      %v1525 = vld [vmem:[%s1521 + $0x10] sm:$0xf]
      %v1526 = vld [vmem:[%s1521 + $0x18] sm:$0xf]
      %v1527 = vld [vmem:[%s1521 + $0x1c] sm:$0xf]
      %v1528 = vld [vmem:[%s1521 + $0x24] sm:$0xf]
      %v1529 = vld [vmem:[%s1521 + $0x28] sm:$0xf]
      %v1530 = vld [vmem:[%s1521 + $0x30] sm:$0xf]
      %v1531 = vld [vmem:[%s1521 + $0x34] sm:$0xf]
      %v1532 = vld [vmem:[%s1521 + $0x3c] sm:$0xf]
      %v1533 = vld [vmem:[%s1521 + $0x40] sm:$0xf]
      %v1534 = vld [vmem:[%s1521 + $0x48] sm:$0xf]
      %v1535 = vld [vmem:[%s1521 + $0x4c] sm:$0xf]
      %v1536 = vld [vmem:[%s1521 + $0x54] sm:$0xf]
      %v1537 = vld [vmem:[%s1521 + $0x58] sm:$0xf]
      %v1538 = vld [vmem:[%s1521 + $0x60] sm:$0xf]
      %v1539 = vld [vmem:[%s1521 + $0x64] sm:$0xf]
      %v1540 = vld [vmem:[%s1521 + $0x6c] sm:$0xf]
      %v1541 = vld [vmem:[%s1521 + $0x70] sm:$0xf]
      %v1542 = vld [vmem:[%s1521 + $0x78] sm:$0xf]
      %v1543 = vld [vmem:[%s1521 + $0x7c] sm:$0xf]
      %v1544 = vld [vmem:[%s1521 + $0x84] sm:$0xf]
      %v1545 = vld [vmem:[%s1521 + $0x88] sm:$0xf]
      %v1546 = vld [vmem:[%s1521 + $0x90] sm:$0xf]
      %v1547 = vld [vmem:[%s1521 + $0x94] sm:$0xf]
      %v1548 = vld [vmem:[%s1521 + $0x9c] sm:$0xf]
      %v1549 = vld [vmem:[%s1521 + $0xa0] sm:$0xf]
      %v1550 = vld [vmem:[%s1521 + $0xa8] sm:$0xf]
      %v1551 = vld [vmem:[%s1521 + $0xac] sm:$0xf]
      %v1552 = vld [vmem:[%s1521 + $0xb4] sm:$0xf]
      %v1553 = vld [vmem:[%s1521 + $0xb8] sm:$0xf]
      %s1554 = scalar_lea.vmem %s1, 6
      %v1555 = vld [vmem:[%s1554] sm:$0x3]
      %v1588 = vunpack.c.l.b16 %v1522
      %v1589 = vunpack.c.l.b16 %v1523
      %v1590 = vunpack.c.l.b16 %v1524
      %v1591 = vunpack.c.l.b16 %v1525
      %v1592 = vunpack.c.l.b16 %v1526
      %v1593 = vunpack.c.l.b16 %v1527
      %v1594 = vunpack.c.l.b16 %v1528
      %v1595 = vunpack.c.l.b16 %v1529
      %v1596 = vunpack.c.l.b16 %v1530
      %v1597 = vunpack.c.l.b16 %v1531
      %v1598 = vunpack.c.l.b16 %v1532
      %v1599 = vunpack.c.l.b16 %v1533
      %v1600 = vunpack.c.l.b16 %v1534
      %v1601 = vunpack.c.l.b16 %v1535
      %v1602 = vunpack.c.l.b16 %v1536
      %v1603 = vunpack.c.l.b16 %v1537
      %v1604 = vunpack.c.l.b16 %v1538
      %v1605 = vunpack.c.l.b16 %v1539
      %v1606 = vunpack.c.l.b16 %v1540
      %v1607 = vunpack.c.l.b16 %v1541
      %v1608 = vunpack.c.l.b16 %v1542
      %v1609 = vunpack.c.l.b16 %v1543
      %v1610 = vunpack.c.l.b16 %v1544
      %v1611 = vunpack.c.l.b16 %v1545
      %v1612 = vunpack.c.l.b16 %v1546
      %v1613 = vunpack.c.l.b16 %v1547
      %v1614 = vunpack.c.l.b16 %v1548
      %v1615 = vunpack.c.l.b16 %v1549
      %v1616 = vunpack.c.l.b16 %v1550
      %v1617 = vunpack.c.l.b16 %v1551
      %v1618 = vunpack.c.l.b16 %v1552
      %v1619 = vunpack.c.l.b16 %v1553
      %v1620 = vpack.c.b16 %v1589, %v1588
      %v1621 = vpack.c.b16 %v1591, %v1590
      %v1622 = vpack.c.b16 %v1593, %v1592
      %v1623 = vpack.c.b16 %v1595, %v1594
      %v1624 = vpack.c.b16 %v1597, %v1596
      %v1625 = vpack.c.b16 %v1599, %v1598
      %v1626 = vpack.c.b16 %v1601, %v1600
      %v1627 = vpack.c.b16 %v1603, %v1602
      %v1628 = vpack.c.b16 %v1605, %v1604
      %v1629 = vpack.c.b16 %v1607, %v1606
      %v1630 = vpack.c.b16 %v1609, %v1608
      %v1631 = vpack.c.b16 %v1611, %v1610
      %v1632 = vpack.c.b16 %v1613, %v1612
      %v1633 = vpack.c.b16 %v1615, %v1614
      %v1634 = vpack.c.b16 %v1617, %v1616
      %v1635 = vpack.c.b16 %v1619, %v1618
      %v1637 = vsel %vm289, %v1620, 0
      %v1640 = vsel %vm289, %v1621, 0
      %v1643 = vsel %vm289, %v1622, 0
      %v1646 = vsel %vm289, %v1623, 0
      %v1649 = vsel %vm289, %v1624, 0
      %v1652 = vsel %vm289, %v1625, 0
      %v1655 = vsel %vm289, %v1626, 0
      %v1658 = vsel %vm289, %v1627, 0
      %v1661 = vsel %vm289, %v1628, 0
      %v1664 = vsel %vm289, %v1629, 0
      %v1667 = vsel %vm289, %v1630, 0
      %v1670 = vsel %vm289, %v1631, 0
      %v1673 = vsel %vm289, %v1632, 0
      %v1676 = vsel %vm289, %v1633, 0
      %v1679 = vsel %vm289, %v1634, 0
      %v1682 = vsel %vm289, %v1635, 0
      %v1685 = vsel %vm338, %v1555, 0
      %1687 = vmatpush.bf16.msra.mxu0 0
      %1688 = vmatpush.bf16.msra.mxu0 0
      %1689 = vmatpush.bf16.msra.mxu0 0
      %1690 = vmatpush.bf16.msra.mxu0 0
      %1691 = vmatpush.bf16.msra.mxu0 0
      %1692 = vmatpush.bf16.msra.mxu0 0
      %1693 = vmatpush.bf16.msra.mxu0 0
      %1694 = vmatpush.bf16.msra.mxu0 %v1685
      %1695 = vmatmul.bf16.gmra.mxu0 %v1637
      %v1696 = vpop.f32.mrf.mxu0
      %v1697 = vadd.f32 0.0, %v1696
      %v1698 = vpop.f32.mrf.mxu0
      %v1699 = vadd.f32 0.0, %v1698
      %1700 = vmatmul.bf16.gmra.mxu0 %v1640
      %v1701 = vpop.f32.mrf.mxu0
      %v1702 = vadd.f32 0.0, %v1701
      %v1703 = vpop.f32.mrf.mxu0
      %v1704 = vadd.f32 0.0, %v1703
      %1705 = vmatmul.bf16.gmra.mxu0 %v1643
      %v1706 = vpop.f32.mrf.mxu0
      %v1707 = vadd.f32 0.0, %v1706
      %v1708 = vpop.f32.mrf.mxu0
      %v1709 = vadd.f32 0.0, %v1708
      %1710 = vmatmul.bf16.gmra.mxu0 %v1646
      %v1711 = vpop.f32.mrf.mxu0
      %v1712 = vadd.f32 0.0, %v1711
      %v1713 = vpop.f32.mrf.mxu0
      %v1714 = vadd.f32 0.0, %v1713
      %1715 = vmatmul.bf16.gmra.mxu0 %v1649
      %v1716 = vpop.f32.mrf.mxu0
      %v1717 = vadd.f32 0.0, %v1716
      %v1718 = vpop.f32.mrf.mxu0
      %v1719 = vadd.f32 0.0, %v1718
      %1720 = vmatmul.bf16.gmra.mxu0 %v1652
      %v1721 = vpop.f32.mrf.mxu0
      %v1722 = vadd.f32 0.0, %v1721
      %v1723 = vpop.f32.mrf.mxu0
      %v1724 = vadd.f32 0.0, %v1723
      %1725 = vmatmul.bf16.gmra.mxu0 %v1655
      %v1726 = vpop.f32.mrf.mxu0
      %v1727 = vadd.f32 0.0, %v1726
      %v1728 = vpop.f32.mrf.mxu0
      %v1729 = vadd.f32 0.0, %v1728
      %1730 = vmatmul.bf16.gmra.mxu0 %v1658
      %v1731 = vpop.f32.mrf.mxu0
      %v1732 = vadd.f32 0.0, %v1731
      %v1733 = vpop.f32.mrf.mxu0
      %v1734 = vadd.f32 0.0, %v1733
      %1735 = vmatmul.bf16.gmra.mxu0 %v1661
      %v1736 = vpop.f32.mrf.mxu0
      %v1737 = vadd.f32 0.0, %v1736
      %v1738 = vpop.f32.mrf.mxu0
      %v1739 = vadd.f32 0.0, %v1738
      %1740 = vmatmul.bf16.gmra.mxu0 %v1664
      %v1741 = vpop.f32.mrf.mxu0
      %v1742 = vadd.f32 0.0, %v1741
      %v1743 = vpop.f32.mrf.mxu0
      %v1744 = vadd.f32 0.0, %v1743
      %1745 = vmatmul.bf16.gmra.mxu0 %v1667
      %v1746 = vpop.f32.mrf.mxu0
      %v1747 = vadd.f32 0.0, %v1746
      %v1748 = vpop.f32.mrf.mxu0
      %v1749 = vadd.f32 0.0, %v1748
      %1750 = vmatmul.bf16.gmra.mxu0 %v1670
      %v1751 = vpop.f32.mrf.mxu0
      %v1752 = vadd.f32 0.0, %v1751
      %v1753 = vpop.f32.mrf.mxu0
      %v1754 = vadd.f32 0.0, %v1753
      %1755 = vmatmul.bf16.gmra.mxu0 %v1673
      %v1756 = vpop.f32.mrf.mxu0
      %v1757 = vadd.f32 0.0, %v1756
      %v1758 = vpop.f32.mrf.mxu0
      %v1759 = vadd.f32 0.0, %v1758
      %1760 = vmatmul.bf16.gmra.mxu0 %v1676
      %v1761 = vpop.f32.mrf.mxu0
      %v1762 = vadd.f32 0.0, %v1761
      %v1763 = vpop.f32.mrf.mxu0
      %v1764 = vadd.f32 0.0, %v1763
      %1765 = vmatmul.bf16.gmra.mxu0 %v1679
      %v1766 = vpop.f32.mrf.mxu0
      %v1767 = vadd.f32 0.0, %v1766
      %v1768 = vpop.f32.mrf.mxu0
      %v1769 = vadd.f32 0.0, %v1768
      %1770 = vmatmul.bf16.gmra.mxu0 %v1682
      %v1771 = vpop.f32.mrf.mxu0
      %v1772 = vadd.f32 0.0, %v1771
      %v1773 = vpop.f32.mrf.mxu0
      %v1774 = vadd.f32 0.0, %v1773
      %1775 = vdwg.mxu0
      %v1776 = vadd.f32 %v1489, %v1697
      %v1777 = vadd.f32 %v1490, %v1699
      %v1778 = vadd.f32 %v1491, %v1702
      %v1779 = vadd.f32 %v1492, %v1704
      %v1780 = vadd.f32 %v1493, %v1707
      %v1781 = vadd.f32 %v1494, %v1709
      %v1782 = vadd.f32 %v1495, %v1712
      %v1783 = vadd.f32 %v1496, %v1714
      %v1784 = vadd.f32 %v1497, %v1717
      %v1785 = vadd.f32 %v1498, %v1719
      %v1786 = vadd.f32 %v1499, %v1722
      %v1787 = vadd.f32 %v1500, %v1724
      %v1788 = vadd.f32 %v1501, %v1727
      %v1789 = vadd.f32 %v1502, %v1729
      %v1790 = vadd.f32 %v1503, %v1732
      %v1791 = vadd.f32 %v1504, %v1734
      %v1792 = vadd.f32 %v1505, %v1737
      %v1793 = vadd.f32 %v1506, %v1739
      %v1794 = vadd.f32 %v1507, %v1742
      %v1795 = vadd.f32 %v1508, %v1744
      %v1796 = vadd.f32 %v1509, %v1747
      %v1797 = vadd.f32 %v1510, %v1749
      %v1798 = vadd.f32 %v1511, %v1752
      %v1799 = vadd.f32 %v1512, %v1754
      %v1800 = vadd.f32 %v1513, %v1757
      %v1801 = vadd.f32 %v1514, %v1759
      %v1802 = vadd.f32 %v1515, %v1762
      %v1803 = vadd.f32 %v1516, %v1764
      %v1804 = vadd.f32 %v1517, %v1767
      %v1805 = vadd.f32 %v1518, %v1769
      %v1806 = vadd.f32 %v1519, %v1772
      %v1807 = vadd.f32 %v1520, %v1774
      %v1808 = vld [vmem:[%s1521] sm:$0xf]
      %v1809 = vld [vmem:[%s1521 + $0x4] sm:$0xf]
      %v1810 = vld [vmem:[%s1521 + $0x8] sm:$0x1]
      %v1811 = vld [vmem:[%s1521 + $0xc] sm:$0xf]
      %v1812 = vld [vmem:[%s1521 + $0x10] sm:$0xf]
      %v1813 = vld [vmem:[%s1521 + $0x14] sm:$0x1]
      %v1814 = vld [vmem:[%s1521 + $0x18] sm:$0xf]
      %v1815 = vld [vmem:[%s1521 + $0x1c] sm:$0xf]
      %v1816 = vld [vmem:[%s1521 + $0x20] sm:$0x1]
      %v1817 = vld [vmem:[%s1521 + $0x24] sm:$0xf]
      %v1818 = vld [vmem:[%s1521 + $0x28] sm:$0xf]
      %v1819 = vld [vmem:[%s1521 + $0x2c] sm:$0x1]
      %v1820 = vld [vmem:[%s1521 + $0x30] sm:$0xf]
      %v1821 = vld [vmem:[%s1521 + $0x34] sm:$0xf]
      %v1822 = vld [vmem:[%s1521 + $0x38] sm:$0x1]
      %v1823 = vld [vmem:[%s1521 + $0x3c] sm:$0xf]
      %v1824 = vld [vmem:[%s1521 + $0x40] sm:$0xf]
      %v1825 = vld [vmem:[%s1521 + $0x44] sm:$0x1]
      %v1826 = vld [vmem:[%s1521 + $0x48] sm:$0xf]
      %v1827 = vld [vmem:[%s1521 + $0x4c] sm:$0xf]
      %v1828 = vld [vmem:[%s1521 + $0x50] sm:$0x1]
      %v1829 = vld [vmem:[%s1521 + $0x54] sm:$0xf]
      %v1830 = vld [vmem:[%s1521 + $0x58] sm:$0xf]
      %v1831 = vld [vmem:[%s1521 + $0x5c] sm:$0x1]
      %v1832 = vld [vmem:[%s1521 + $0x60] sm:$0xf]
      %v1833 = vld [vmem:[%s1521 + $0x64] sm:$0xf]
      %v1834 = vld [vmem:[%s1521 + $0x68] sm:$0x1]
      %v1835 = vld [vmem:[%s1521 + $0x6c] sm:$0xf]
      %v1836 = vld [vmem:[%s1521 + $0x70] sm:$0xf]
      %v1837 = vld [vmem:[%s1521 + $0x74] sm:$0x1]
      %v1838 = vld [vmem:[%s1521 + $0x78] sm:$0xf]
      %v1839 = vld [vmem:[%s1521 + $0x7c] sm:$0xf]
      %v1840 = vld [vmem:[%s1521 + $0x80] sm:$0x1]
      %v1841 = vld [vmem:[%s1521 + $0x84] sm:$0xf]
      %v1842 = vld [vmem:[%s1521 + $0x88] sm:$0xf]
      %v1843 = vld [vmem:[%s1521 + $0x8c] sm:$0x1]
      %v1844 = vld [vmem:[%s1521 + $0x90] sm:$0xf]
      %v1845 = vld [vmem:[%s1521 + $0x94] sm:$0xf]
      %v1846 = vld [vmem:[%s1521 + $0x98] sm:$0x1]
      %v1847 = vld [vmem:[%s1521 + $0x9c] sm:$0xf]
      %v1848 = vld [vmem:[%s1521 + $0xa0] sm:$0xf]
      %v1849 = vld [vmem:[%s1521 + $0xa4] sm:$0x1]
      %v1850 = vld [vmem:[%s1521 + $0xa8] sm:$0xf]
      %v1851 = vld [vmem:[%s1521 + $0xac] sm:$0xf]
      %v1852 = vld [vmem:[%s1521 + $0xb0] sm:$0x1]
      %v1853 = vld [vmem:[%s1521 + $0xb4] sm:$0xf]
      %v1854 = vld [vmem:[%s1521 + $0xb8] sm:$0xf]
      %v1855 = vld [vmem:[%s1521 + $0xbc] sm:$0x1]
      %v1857 = vshrl.u32 %v1808, 16
      %v1859 = vrot.slane %v1857, 4
      %v1860 = vshll.u32 %v1808, 16
      %v1862 = vrot.slane %v1860, 5
      %v1863 = vor.u32 %v1859, %v1862
      %v1864 = vrot.slane %v1863, 4
      %v1866 = vshll.u32 %v1809, 16
      %v1868 = vrot.slane %v1866, 5
      %v1869 = vsel %vm513, %v1864, %v1868
      %v1870 = vshrl.u32 %v1809, 16
      %v1872 = vrot.slane %v1870, 4
      %v1873 = vor.u32 %v1872, %v1868
      %v1874 = vrot.slane %v1873, 4
      %v1876 = vshll.u32 %v1810, 16
      %v1878 = vrot.slane %v1876, 5
      %v1879 = vsel %vm513, %v1874, %v1878
      %v1881 = vshrl.u32 %v1811, 16
      %v1883 = vrot.slane %v1881, 4
      %v1884 = vshll.u32 %v1811, 16
      %v1886 = vrot.slane %v1884, 5
      %v1887 = vor.u32 %v1883, %v1886
      %v1888 = vrot.slane %v1887, 4
      %v1890 = vshll.u32 %v1812, 16
      %v1892 = vrot.slane %v1890, 5
      %v1893 = vsel %vm513, %v1888, %v1892
      %v1894 = vshrl.u32 %v1812, 16
      %v1896 = vrot.slane %v1894, 4
      %v1897 = vor.u32 %v1896, %v1892
      %v1898 = vrot.slane %v1897, 4
      %v1900 = vshll.u32 %v1813, 16
      %v1902 = vrot.slane %v1900, 5
      %v1903 = vsel %vm513, %v1898, %v1902
      %v1905 = vshrl.u32 %v1814, 16
      %v1907 = vrot.slane %v1905, 4
      %v1908 = vshll.u32 %v1814, 16
      %v1910 = vrot.slane %v1908, 5
      %v1911 = vor.u32 %v1907, %v1910
      %v1912 = vrot.slane %v1911, 4
      %v1914 = vshll.u32 %v1815, 16
      %v1916 = vrot.slane %v1914, 5
      %v1917 = vsel %vm513, %v1912, %v1916
      %v1918 = vshrl.u32 %v1815, 16
      %v1920 = vrot.slane %v1918, 4
      %v1921 = vor.u32 %v1920, %v1916
      %v1922 = vrot.slane %v1921, 4
      %v1924 = vshll.u32 %v1816, 16
      %v1926 = vrot.slane %v1924, 5
      %v1927 = vsel %vm513, %v1922, %v1926
      %v1929 = vshrl.u32 %v1817, 16
      %v1931 = vrot.slane %v1929, 4
      %v1932 = vshll.u32 %v1817, 16
      %v1934 = vrot.slane %v1932, 5
      %v1935 = vor.u32 %v1931, %v1934
      %v1936 = vrot.slane %v1935, 4
      %v1938 = vshll.u32 %v1818, 16
      %v1940 = vrot.slane %v1938, 5
      %v1941 = vsel %vm513, %v1936, %v1940
      %v1942 = vshrl.u32 %v1818, 16
      %v1944 = vrot.slane %v1942, 4
      %v1945 = vor.u32 %v1944, %v1940
      %v1946 = vrot.slane %v1945, 4
      %v1948 = vshll.u32 %v1819, 16
      %v1950 = vrot.slane %v1948, 5
      %v1951 = vsel %vm513, %v1946, %v1950
      %v1953 = vshrl.u32 %v1820, 16
      %v1955 = vrot.slane %v1953, 4
      %v1956 = vshll.u32 %v1820, 16
      %v1958 = vrot.slane %v1956, 5
      %v1959 = vor.u32 %v1955, %v1958
      %v1960 = vrot.slane %v1959, 4
      %v1962 = vshll.u32 %v1821, 16
      %v1964 = vrot.slane %v1962, 5
      %v1965 = vsel %vm513, %v1960, %v1964
      %v1966 = vshrl.u32 %v1821, 16
      %v1968 = vrot.slane %v1966, 4
      %v1969 = vor.u32 %v1968, %v1964
      %v1970 = vrot.slane %v1969, 4
      %v1972 = vshll.u32 %v1822, 16
      %v1974 = vrot.slane %v1972, 5
      %v1975 = vsel %vm513, %v1970, %v1974
      %v1977 = vshrl.u32 %v1823, 16
      %v1979 = vrot.slane %v1977, 4
      %v1980 = vshll.u32 %v1823, 16
      %v1982 = vrot.slane %v1980, 5
      %v1983 = vor.u32 %v1979, %v1982
      %v1984 = vrot.slane %v1983, 4
      %v1986 = vshll.u32 %v1824, 16
      %v1988 = vrot.slane %v1986, 5
      %v1989 = vsel %vm513, %v1984, %v1988
      %v1990 = vshrl.u32 %v1824, 16
      %v1992 = vrot.slane %v1990, 4
      %v1993 = vor.u32 %v1992, %v1988
      %v1994 = vrot.slane %v1993, 4
      %v1996 = vshll.u32 %v1825, 16
      %v1998 = vrot.slane %v1996, 5
      %v1999 = vsel %vm513, %v1994, %v1998
      %v2001 = vshrl.u32 %v1826, 16
      %v2003 = vrot.slane %v2001, 4
      %v2004 = vshll.u32 %v1826, 16
      %v2006 = vrot.slane %v2004, 5
      %v2007 = vor.u32 %v2003, %v2006
      %v2008 = vrot.slane %v2007, 4
      %v2010 = vshll.u32 %v1827, 16
      %v2012 = vrot.slane %v2010, 5
      %v2013 = vsel %vm513, %v2008, %v2012
      %v2014 = vshrl.u32 %v1827, 16
      %v2016 = vrot.slane %v2014, 4
      %v2017 = vor.u32 %v2016, %v2012
      %v2018 = vrot.slane %v2017, 4
      %v2020 = vshll.u32 %v1828, 16
      %v2022 = vrot.slane %v2020, 5
      %v2023 = vsel %vm513, %v2018, %v2022
      %v2025 = vshrl.u32 %v1829, 16
      %v2027 = vrot.slane %v2025, 4
      %v2028 = vshll.u32 %v1829, 16
      %v2030 = vrot.slane %v2028, 5
      %v2031 = vor.u32 %v2027, %v2030
      %v2032 = vrot.slane %v2031, 4
      %v2034 = vshll.u32 %v1830, 16
      %v2036 = vrot.slane %v2034, 5
      %v2037 = vsel %vm513, %v2032, %v2036
      %v2038 = vshrl.u32 %v1830, 16
      %v2040 = vrot.slane %v2038, 4
      %v2041 = vor.u32 %v2040, %v2036
      %v2042 = vrot.slane %v2041, 4
      %v2044 = vshll.u32 %v1831, 16
      %v2046 = vrot.slane %v2044, 5
      %v2047 = vsel %vm513, %v2042, %v2046
      %v2049 = vshrl.u32 %v1832, 16
      %v2051 = vrot.slane %v2049, 4
      %v2052 = vshll.u32 %v1832, 16
      %v2054 = vrot.slane %v2052, 5
      %v2055 = vor.u32 %v2051, %v2054
      %v2056 = vrot.slane %v2055, 4
      %v2058 = vshll.u32 %v1833, 16
      %v2060 = vrot.slane %v2058, 5
      %v2061 = vsel %vm513, %v2056, %v2060
      %v2062 = vshrl.u32 %v1833, 16
      %v2064 = vrot.slane %v2062, 4
      %v2065 = vor.u32 %v2064, %v2060
      %v2066 = vrot.slane %v2065, 4
      %v2068 = vshll.u32 %v1834, 16
      %v2070 = vrot.slane %v2068, 5
      %v2071 = vsel %vm513, %v2066, %v2070
      %v2073 = vshrl.u32 %v1835, 16
      %v2075 = vrot.slane %v2073, 4
      %v2076 = vshll.u32 %v1835, 16
      %v2078 = vrot.slane %v2076, 5
      %v2079 = vor.u32 %v2075, %v2078
      %v2080 = vrot.slane %v2079, 4
      %v2082 = vshll.u32 %v1836, 16
      %v2084 = vrot.slane %v2082, 5
      %v2085 = vsel %vm513, %v2080, %v2084
      %v2086 = vshrl.u32 %v1836, 16
      %v2088 = vrot.slane %v2086, 4
      %v2089 = vor.u32 %v2088, %v2084
      %v2090 = vrot.slane %v2089, 4
      %v2092 = vshll.u32 %v1837, 16
      %v2094 = vrot.slane %v2092, 5
      %v2095 = vsel %vm513, %v2090, %v2094
      %v2097 = vshrl.u32 %v1838, 16
      %v2099 = vrot.slane %v2097, 4
      %v2100 = vshll.u32 %v1838, 16
      %v2102 = vrot.slane %v2100, 5
      %v2103 = vor.u32 %v2099, %v2102
      %v2104 = vrot.slane %v2103, 4
      %v2106 = vshll.u32 %v1839, 16
      %v2108 = vrot.slane %v2106, 5
      %v2109 = vsel %vm513, %v2104, %v2108
      %v2110 = vshrl.u32 %v1839, 16
      %v2112 = vrot.slane %v2110, 4
      %v2113 = vor.u32 %v2112, %v2108
      %v2114 = vrot.slane %v2113, 4
      %v2116 = vshll.u32 %v1840, 16
      %v2118 = vrot.slane %v2116, 5
      %v2119 = vsel %vm513, %v2114, %v2118
      %v2121 = vshrl.u32 %v1841, 16
      %v2123 = vrot.slane %v2121, 4
      %v2124 = vshll.u32 %v1841, 16
      %v2126 = vrot.slane %v2124, 5
      %v2127 = vor.u32 %v2123, %v2126
      %v2128 = vrot.slane %v2127, 4
      %v2130 = vshll.u32 %v1842, 16
      %v2132 = vrot.slane %v2130, 5
      %v2133 = vsel %vm513, %v2128, %v2132
      %v2134 = vshrl.u32 %v1842, 16
      %v2136 = vrot.slane %v2134, 4
      %v2137 = vor.u32 %v2136, %v2132
      %v2138 = vrot.slane %v2137, 4
      %v2140 = vshll.u32 %v1843, 16
      %v2142 = vrot.slane %v2140, 5
      %v2143 = vsel %vm513, %v2138, %v2142
      %v2145 = vshrl.u32 %v1844, 16
      %v2147 = vrot.slane %v2145, 4
      %v2148 = vshll.u32 %v1844, 16
      %v2150 = vrot.slane %v2148, 5
      %v2151 = vor.u32 %v2147, %v2150
      %v2152 = vrot.slane %v2151, 4
      %v2154 = vshll.u32 %v1845, 16
      %v2156 = vrot.slane %v2154, 5
      %v2157 = vsel %vm513, %v2152, %v2156
      %v2158 = vshrl.u32 %v1845, 16
      %v2160 = vrot.slane %v2158, 4
      %v2161 = vor.u32 %v2160, %v2156
      %v2162 = vrot.slane %v2161, 4
      %v2164 = vshll.u32 %v1846, 16
      %v2166 = vrot.slane %v2164, 5
      %v2167 = vsel %vm513, %v2162, %v2166
      %v2169 = vshrl.u32 %v1847, 16
      %v2171 = vrot.slane %v2169, 4
      %v2172 = vshll.u32 %v1847, 16
      %v2174 = vrot.slane %v2172, 5
      %v2175 = vor.u32 %v2171, %v2174
      %v2176 = vrot.slane %v2175, 4
      %v2178 = vshll.u32 %v1848, 16
      %v2180 = vrot.slane %v2178, 5
      %v2181 = vsel %vm513, %v2176, %v2180
      %v2182 = vshrl.u32 %v1848, 16
      %v2184 = vrot.slane %v2182, 4
      %v2185 = vor.u32 %v2184, %v2180
      %v2186 = vrot.slane %v2185, 4
      %v2188 = vshll.u32 %v1849, 16
      %v2190 = vrot.slane %v2188, 5
      %v2191 = vsel %vm513, %v2186, %v2190
      %v2193 = vshrl.u32 %v1850, 16
      %v2195 = vrot.slane %v2193, 4
      %v2196 = vshll.u32 %v1850, 16
      %v2198 = vrot.slane %v2196, 5
      %v2199 = vor.u32 %v2195, %v2198
      %v2200 = vrot.slane %v2199, 4
      %v2202 = vshll.u32 %v1851, 16
      %v2204 = vrot.slane %v2202, 5
      %v2205 = vsel %vm513, %v2200, %v2204
      %v2206 = vshrl.u32 %v1851, 16
      %v2208 = vrot.slane %v2206, 4
      %v2209 = vor.u32 %v2208, %v2204
      %v2210 = vrot.slane %v2209, 4
      %v2212 = vshll.u32 %v1852, 16
      %v2214 = vrot.slane %v2212, 5
      %v2215 = vsel %vm513, %v2210, %v2214
      %v2217 = vshrl.u32 %v1853, 16
      %v2219 = vrot.slane %v2217, 4
      %v2220 = vshll.u32 %v1853, 16
      %v2222 = vrot.slane %v2220, 5
      %v2223 = vor.u32 %v2219, %v2222
      %v2224 = vrot.slane %v2223, 4
      %v2226 = vshll.u32 %v1854, 16
      %v2228 = vrot.slane %v2226, 5
      %v2229 = vsel %vm513, %v2224, %v2228
      %v2230 = vshrl.u32 %v1854, 16
      %v2232 = vrot.slane %v2230, 4
      %v2233 = vor.u32 %v2232, %v2228
      %v2234 = vrot.slane %v2233, 4
      %v2236 = vshll.u32 %v1855, 16
      %v2238 = vrot.slane %v2236, 5
      %v2239 = vsel %vm513, %v2234, %v2238
      %s2240 = scalar_lea.vmem %s1, 8
      %v2241 = vld [vmem:[%s2240] sm:$0x3]
      %v2242 = vunpack.c.l.b16 %v1869
      %v2243 = vunpack.c.l.b16 %v1879
      %v2244 = vunpack.c.l.b16 %v1893
      %v2245 = vunpack.c.l.b16 %v1903
      %v2246 = vunpack.c.l.b16 %v1917
      %v2247 = vunpack.c.l.b16 %v1927
      %v2248 = vunpack.c.l.b16 %v1941
      %v2249 = vunpack.c.l.b16 %v1951
      %v2250 = vunpack.c.l.b16 %v1965
      %v2251 = vunpack.c.l.b16 %v1975
      %v2252 = vunpack.c.l.b16 %v1989
      %v2253 = vunpack.c.l.b16 %v1999
      %v2254 = vunpack.c.l.b16 %v2013
      %v2255 = vunpack.c.l.b16 %v2023
      %v2256 = vunpack.c.l.b16 %v2037
      %v2257 = vunpack.c.l.b16 %v2047
      %v2258 = vunpack.c.l.b16 %v2061
      %v2259 = vunpack.c.l.b16 %v2071
      %v2260 = vunpack.c.l.b16 %v2085
      %v2261 = vunpack.c.l.b16 %v2095
      %v2262 = vunpack.c.l.b16 %v2109
      %v2263 = vunpack.c.l.b16 %v2119
      %v2264 = vunpack.c.l.b16 %v2133
      %v2265 = vunpack.c.l.b16 %v2143
      %v2266 = vunpack.c.l.b16 %v2157
      %v2267 = vunpack.c.l.b16 %v2167
      %v2268 = vunpack.c.l.b16 %v2181
      %v2269 = vunpack.c.l.b16 %v2191
      %v2270 = vunpack.c.l.b16 %v2205
      %v2271 = vunpack.c.l.b16 %v2215
      %v2272 = vunpack.c.l.b16 %v2229
      %v2273 = vunpack.c.l.b16 %v2239
      %v2274 = vpack.c.b16 %v2243, %v2242
      %v2275 = vpack.c.b16 %v2245, %v2244
      %v2276 = vpack.c.b16 %v2247, %v2246
      %v2277 = vpack.c.b16 %v2249, %v2248
      %v2278 = vpack.c.b16 %v2251, %v2250
      %v2279 = vpack.c.b16 %v2253, %v2252
      %v2280 = vpack.c.b16 %v2255, %v2254
      %v2281 = vpack.c.b16 %v2257, %v2256
      %v2282 = vpack.c.b16 %v2259, %v2258
      %v2283 = vpack.c.b16 %v2261, %v2260
      %v2284 = vpack.c.b16 %v2263, %v2262
      %v2285 = vpack.c.b16 %v2265, %v2264
      %v2286 = vpack.c.b16 %v2267, %v2266
      %v2287 = vpack.c.b16 %v2269, %v2268
      %v2288 = vpack.c.b16 %v2271, %v2270
      %v2289 = vpack.c.b16 %v2273, %v2272
      %v2291 = vsel %vm289, %v2274, 0
      %v2294 = vsel %vm289, %v2275, 0
      %v2297 = vsel %vm289, %v2276, 0
      %v2300 = vsel %vm289, %v2277, 0
      %v2303 = vsel %vm289, %v2278, 0
      %v2306 = vsel %vm289, %v2279, 0
      %v2309 = vsel %vm289, %v2280, 0
      %v2312 = vsel %vm289, %v2281, 0
      %v2315 = vsel %vm289, %v2282, 0
      %v2318 = vsel %vm289, %v2283, 0
      %v2321 = vsel %vm289, %v2284, 0
      %v2324 = vsel %vm289, %v2285, 0
      %v2327 = vsel %vm289, %v2286, 0
      %v2330 = vsel %vm289, %v2287, 0
      %v2333 = vsel %vm289, %v2288, 0
      %v2336 = vsel %vm289, %v2289, 0
      %v2339 = vsel %vm338, %v2241, 0
      %2341 = vmatpush.bf16.msra.mxu0 0
      %2342 = vmatpush.bf16.msra.mxu0 0
      %2343 = vmatpush.bf16.msra.mxu0 0
      %2344 = vmatpush.bf16.msra.mxu0 0
      %2345 = vmatpush.bf16.msra.mxu0 0
      %2346 = vmatpush.bf16.msra.mxu0 0
      %2347 = vmatpush.bf16.msra.mxu0 0
      %2348 = vmatpush.bf16.msra.mxu0 %v2339
      %2349 = vmatmul.bf16.gmra.mxu0 %v2291
      %v2350 = vpop.f32.mrf.mxu0
      %v2351 = vadd.f32 0.0, %v2350
      %v2352 = vpop.f32.mrf.mxu0
      %v2353 = vadd.f32 0.0, %v2352
      %2354 = vmatmul.bf16.gmra.mxu0 %v2294
      %v2355 = vpop.f32.mrf.mxu0
      %v2356 = vadd.f32 0.0, %v2355
      %v2357 = vpop.f32.mrf.mxu0
      %v2358 = vadd.f32 0.0, %v2357
      %2359 = vmatmul.bf16.gmra.mxu0 %v2297
      %v2360 = vpop.f32.mrf.mxu0
      %v2361 = vadd.f32 0.0, %v2360
      %v2362 = vpop.f32.mrf.mxu0
      %v2363 = vadd.f32 0.0, %v2362
      %2364 = vmatmul.bf16.gmra.mxu0 %v2300
      %v2365 = vpop.f32.mrf.mxu0
      %v2366 = vadd.f32 0.0, %v2365
      %v2367 = vpop.f32.mrf.mxu0
      %v2368 = vadd.f32 0.0, %v2367
      %2369 = vmatmul.bf16.gmra.mxu0 %v2303
      %v2370 = vpop.f32.mrf.mxu0
      %v2371 = vadd.f32 0.0, %v2370
      %v2372 = vpop.f32.mrf.mxu0
      %v2373 = vadd.f32 0.0, %v2372
      %2374 = vmatmul.bf16.gmra.mxu0 %v2306
      %v2375 = vpop.f32.mrf.mxu0
      %v2376 = vadd.f32 0.0, %v2375
      %v2377 = vpop.f32.mrf.mxu0
      %v2378 = vadd.f32 0.0, %v2377
      %2379 = vmatmul.bf16.gmra.mxu0 %v2309
      %v2380 = vpop.f32.mrf.mxu0
      %v2381 = vadd.f32 0.0, %v2380
      %v2382 = vpop.f32.mrf.mxu0
      %v2383 = vadd.f32 0.0, %v2382
      %2384 = vmatmul.bf16.gmra.mxu0 %v2312
      %v2385 = vpop.f32.mrf.mxu0
      %v2386 = vadd.f32 0.0, %v2385
      %v2387 = vpop.f32.mrf.mxu0
      %v2388 = vadd.f32 0.0, %v2387
      %2389 = vmatmul.bf16.gmra.mxu0 %v2315
      %v2390 = vpop.f32.mrf.mxu0
      %v2391 = vadd.f32 0.0, %v2390
      %v2392 = vpop.f32.mrf.mxu0
      %v2393 = vadd.f32 0.0, %v2392
      %2394 = vmatmul.bf16.gmra.mxu0 %v2318
      %v2395 = vpop.f32.mrf.mxu0
      %v2396 = vadd.f32 0.0, %v2395
      %v2397 = vpop.f32.mrf.mxu0
      %v2398 = vadd.f32 0.0, %v2397
      %2399 = vmatmul.bf16.gmra.mxu0 %v2321
      %v2400 = vpop.f32.mrf.mxu0
      %v2401 = vadd.f32 0.0, %v2400
      %v2402 = vpop.f32.mrf.mxu0
      %v2403 = vadd.f32 0.0, %v2402
      %2404 = vmatmul.bf16.gmra.mxu0 %v2324
      %v2405 = vpop.f32.mrf.mxu0
      %v2406 = vadd.f32 0.0, %v2405
      %v2407 = vpop.f32.mrf.mxu0
      %v2408 = vadd.f32 0.0, %v2407
      %2409 = vmatmul.bf16.gmra.mxu0 %v2327
      %v2410 = vpop.f32.mrf.mxu0
      %v2411 = vadd.f32 0.0, %v2410
      %v2412 = vpop.f32.mrf.mxu0
      %v2413 = vadd.f32 0.0, %v2412
      %2414 = vmatmul.bf16.gmra.mxu0 %v2330
      %v2415 = vpop.f32.mrf.mxu0
      %v2416 = vadd.f32 0.0, %v2415
      %v2417 = vpop.f32.mrf.mxu0
      %v2418 = vadd.f32 0.0, %v2417
      %2419 = vmatmul.bf16.gmra.mxu0 %v2333
      %v2420 = vpop.f32.mrf.mxu0
      %v2421 = vadd.f32 0.0, %v2420
      %v2422 = vpop.f32.mrf.mxu0
      %v2423 = vadd.f32 0.0, %v2422
      %2424 = vmatmul.bf16.gmra.mxu0 %v2336
      %v2425 = vpop.f32.mrf.mxu0
      %v2426 = vadd.f32 0.0, %v2425
      %v2427 = vpop.f32.mrf.mxu0
      %v2428 = vadd.f32 0.0, %v2427
      %2429 = vdwg.mxu0
      %v2430 = vadd.f32 %v1776, %v2351
      %v2431 = vadd.f32 %v1777, %v2353
      %v2432 = vadd.f32 %v1778, %v2356
      %v2433 = vadd.f32 %v1779, %v2358
      %v2434 = vadd.f32 %v1780, %v2361
      %v2435 = vadd.f32 %v1781, %v2363
      %v2436 = vadd.f32 %v1782, %v2366
      %v2437 = vadd.f32 %v1783, %v2368
      %v2438 = vadd.f32 %v1784, %v2371
      %v2439 = vadd.f32 %v1785, %v2373
      %v2440 = vadd.f32 %v1786, %v2376
      %v2441 = vadd.f32 %v1787, %v2378
      %v2442 = vadd.f32 %v1788, %v2381
      %v2443 = vadd.f32 %v1789, %v2383
      %v2444 = vadd.f32 %v1790, %v2386
      %v2445 = vadd.f32 %v1791, %v2388
      %v2446 = vadd.f32 %v1792, %v2391
      %v2447 = vadd.f32 %v1793, %v2393
      %v2448 = vadd.f32 %v1794, %v2396
      %v2449 = vadd.f32 %v1795, %v2398
      %v2450 = vadd.f32 %v1796, %v2401
      %v2451 = vadd.f32 %v1797, %v2403
      %v2452 = vadd.f32 %v1798, %v2406
      %v2453 = vadd.f32 %v1799, %v2408
      %v2454 = vadd.f32 %v1800, %v2411
      %v2455 = vadd.f32 %v1801, %v2413
      %v2456 = vadd.f32 %v1802, %v2416
      %v2457 = vadd.f32 %v1803, %v2418
      %v2458 = vadd.f32 %v1804, %v2421
      %v2459 = vadd.f32 %v1805, %v2423
      %v2460 = vadd.f32 %v1806, %v2426
      %v2461 = vadd.f32 %v1807, %v2428
      %v2462 = vld [vmem:[%s1521] sm:$0xe]
      %v2463 = vld [vmem:[%s1521 + $0xc] sm:$0xe]
      %v2464 = vld [vmem:[%s1521 + $0x18] sm:$0xe]
      %v2465 = vld [vmem:[%s1521 + $0x24] sm:$0xe]
      %v2466 = vld [vmem:[%s1521 + $0x30] sm:$0xe]
      %v2467 = vld [vmem:[%s1521 + $0x3c] sm:$0xe]
      %v2468 = vld [vmem:[%s1521 + $0x48] sm:$0xe]
      %v2469 = vld [vmem:[%s1521 + $0x54] sm:$0xe]
      %v2470 = vld [vmem:[%s1521 + $0x60] sm:$0xe]
      %v2471 = vld [vmem:[%s1521 + $0x6c] sm:$0xe]
      %v2472 = vld [vmem:[%s1521 + $0x78] sm:$0xe]
      %v2473 = vld [vmem:[%s1521 + $0x84] sm:$0xe]
      %v2474 = vld [vmem:[%s1521 + $0x90] sm:$0xe]
      %v2475 = vld [vmem:[%s1521 + $0x9c] sm:$0xe]
      %v2476 = vld [vmem:[%s1521 + $0xa8] sm:$0xe]
      %v2477 = vld [vmem:[%s1521 + $0xb4] sm:$0xe]
      %v2526 = vrot.slane %v2462, 5
      %v2527 = vrot.slane %v2526, 4
      %v2528 = vrot.slane %v1809, 5
      %v2529 = vsel %vm1186, %v2527, %v2528
      %v2530 = vrot.slane %v2528, 4
      %v2531 = vrot.slane %v1810, 5
      %v2532 = vsel %vm1186, %v2530, %v2531
      %v2533 = vrot.slane %v2463, 5
      %v2534 = vrot.slane %v2533, 4
      %v2535 = vrot.slane %v1812, 5
      %v2536 = vsel %vm1186, %v2534, %v2535
      %v2537 = vrot.slane %v2535, 4
      %v2538 = vrot.slane %v1813, 5
      %v2539 = vsel %vm1186, %v2537, %v2538
      %v2540 = vrot.slane %v2464, 5
      %v2541 = vrot.slane %v2540, 4
      %v2542 = vrot.slane %v1815, 5
      %v2543 = vsel %vm1186, %v2541, %v2542
      %v2544 = vrot.slane %v2542, 4
      %v2545 = vrot.slane %v1816, 5
      %v2546 = vsel %vm1186, %v2544, %v2545
      %v2547 = vrot.slane %v2465, 5
      %v2548 = vrot.slane %v2547, 4
      %v2549 = vrot.slane %v1818, 5
      %v2550 = vsel %vm1186, %v2548, %v2549
      %v2551 = vrot.slane %v2549, 4
      %v2552 = vrot.slane %v1819, 5
      %v2553 = vsel %vm1186, %v2551, %v2552
      %v2554 = vrot.slane %v2466, 5
      %v2555 = vrot.slane %v2554, 4
      %v2556 = vrot.slane %v1821, 5
      %v2557 = vsel %vm1186, %v2555, %v2556
      %v2558 = vrot.slane %v2556, 4
      %v2559 = vrot.slane %v1822, 5
      %v2560 = vsel %vm1186, %v2558, %v2559
      %v2561 = vrot.slane %v2467, 5
      %v2562 = vrot.slane %v2561, 4
      %v2563 = vrot.slane %v1824, 5
      %v2564 = vsel %vm1186, %v2562, %v2563
      %v2565 = vrot.slane %v2563, 4
      %v2566 = vrot.slane %v1825, 5
      %v2567 = vsel %vm1186, %v2565, %v2566
      %v2568 = vrot.slane %v2468, 5
      %v2569 = vrot.slane %v2568, 4
      %v2570 = vrot.slane %v1827, 5
      %v2571 = vsel %vm1186, %v2569, %v2570
      %v2572 = vrot.slane %v2570, 4
      %v2573 = vrot.slane %v1828, 5
      %v2574 = vsel %vm1186, %v2572, %v2573
      %v2575 = vrot.slane %v2469, 5
      %v2576 = vrot.slane %v2575, 4
      %v2577 = vrot.slane %v1830, 5
      %v2578 = vsel %vm1186, %v2576, %v2577
      %v2579 = vrot.slane %v2577, 4
      %v2580 = vrot.slane %v1831, 5
      %v2581 = vsel %vm1186, %v2579, %v2580
      %v2582 = vrot.slane %v2470, 5
      %v2583 = vrot.slane %v2582, 4
      %v2584 = vrot.slane %v1833, 5
      %v2585 = vsel %vm1186, %v2583, %v2584
      %v2586 = vrot.slane %v2584, 4
      %v2587 = vrot.slane %v1834, 5
      %v2588 = vsel %vm1186, %v2586, %v2587
      %v2589 = vrot.slane %v2471, 5
      %v2590 = vrot.slane %v2589, 4
      %v2591 = vrot.slane %v1836, 5
      %v2592 = vsel %vm1186, %v2590, %v2591
      %v2593 = vrot.slane %v2591, 4
      %v2594 = vrot.slane %v1837, 5
      %v2595 = vsel %vm1186, %v2593, %v2594
      %v2596 = vrot.slane %v2472, 5
      %v2597 = vrot.slane %v2596, 4
      %v2598 = vrot.slane %v1839, 5
      %v2599 = vsel %vm1186, %v2597, %v2598
      %v2600 = vrot.slane %v2598, 4
      %v2601 = vrot.slane %v1840, 5
      %v2602 = vsel %vm1186, %v2600, %v2601
      %v2603 = vrot.slane %v2473, 5
      %v2604 = vrot.slane %v2603, 4
      %v2605 = vrot.slane %v1842, 5
      %v2606 = vsel %vm1186, %v2604, %v2605
      %v2607 = vrot.slane %v2605, 4
      %v2608 = vrot.slane %v1843, 5
      %v2609 = vsel %vm1186, %v2607, %v2608
      %v2610 = vrot.slane %v2474, 5
      %v2611 = vrot.slane %v2610, 4
      %v2612 = vrot.slane %v1845, 5
      %v2613 = vsel %vm1186, %v2611, %v2612
      %v2614 = vrot.slane %v2612, 4
      %v2615 = vrot.slane %v1846, 5
      %v2616 = vsel %vm1186, %v2614, %v2615
      %v2617 = vrot.slane %v2475, 5
      %v2618 = vrot.slane %v2617, 4
      %v2619 = vrot.slane %v1848, 5
      %v2620 = vsel %vm1186, %v2618, %v2619
      %v2621 = vrot.slane %v2619, 4
      %v2622 = vrot.slane %v1849, 5
      %v2623 = vsel %vm1186, %v2621, %v2622
      %v2624 = vrot.slane %v2476, 5
      %v2625 = vrot.slane %v2624, 4
      %v2626 = vrot.slane %v1851, 5
      %v2627 = vsel %vm1186, %v2625, %v2626
      %v2628 = vrot.slane %v2626, 4
      %v2629 = vrot.slane %v1852, 5
      %v2630 = vsel %vm1186, %v2628, %v2629
      %v2631 = vrot.slane %v2477, 5
      %v2632 = vrot.slane %v2631, 4
      %v2633 = vrot.slane %v1854, 5
      %v2634 = vsel %vm1186, %v2632, %v2633
      %v2635 = vrot.slane %v2633, 4
      %v2636 = vrot.slane %v1855, 5
      %v2637 = vsel %vm1186, %v2635, %v2636
      %s2638 = scalar_lea.vmem %s1, 10
      %v2639 = vld [vmem:[%s2638] sm:$0x3]
      %v2640 = vunpack.c.l.b16 %v2529
      %v2641 = vunpack.c.l.b16 %v2532
      %v2642 = vunpack.c.l.b16 %v2536
      %v2643 = vunpack.c.l.b16 %v2539
      %v2644 = vunpack.c.l.b16 %v2543
      %v2645 = vunpack.c.l.b16 %v2546
      %v2646 = vunpack.c.l.b16 %v2550
      %v2647 = vunpack.c.l.b16 %v2553
      %v2648 = vunpack.c.l.b16 %v2557
      %v2649 = vunpack.c.l.b16 %v2560
      %v2650 = vunpack.c.l.b16 %v2564
      %v2651 = vunpack.c.l.b16 %v2567
      %v2652 = vunpack.c.l.b16 %v2571
      %v2653 = vunpack.c.l.b16 %v2574
      %v2654 = vunpack.c.l.b16 %v2578
      %v2655 = vunpack.c.l.b16 %v2581
      %v2656 = vunpack.c.l.b16 %v2585
      %v2657 = vunpack.c.l.b16 %v2588
      %v2658 = vunpack.c.l.b16 %v2592
      %v2659 = vunpack.c.l.b16 %v2595
      %v2660 = vunpack.c.l.b16 %v2599
      %v2661 = vunpack.c.l.b16 %v2602
      %v2662 = vunpack.c.l.b16 %v2606
      %v2663 = vunpack.c.l.b16 %v2609
      %v2664 = vunpack.c.l.b16 %v2613
      %v2665 = vunpack.c.l.b16 %v2616
      %v2666 = vunpack.c.l.b16 %v2620
      %v2667 = vunpack.c.l.b16 %v2623
      %v2668 = vunpack.c.l.b16 %v2627
      %v2669 = vunpack.c.l.b16 %v2630
      %v2670 = vunpack.c.l.b16 %v2634
      %v2671 = vunpack.c.l.b16 %v2637
      %v2672 = vpack.c.b16 %v2641, %v2640
      %v2673 = vpack.c.b16 %v2643, %v2642
      %v2674 = vpack.c.b16 %v2645, %v2644
      %v2675 = vpack.c.b16 %v2647, %v2646
      %v2676 = vpack.c.b16 %v2649, %v2648
      %v2677 = vpack.c.b16 %v2651, %v2650
      %v2678 = vpack.c.b16 %v2653, %v2652
      %v2679 = vpack.c.b16 %v2655, %v2654
      %v2680 = vpack.c.b16 %v2657, %v2656
      %v2681 = vpack.c.b16 %v2659, %v2658
      %v2682 = vpack.c.b16 %v2661, %v2660
      %v2683 = vpack.c.b16 %v2663, %v2662
      %v2684 = vpack.c.b16 %v2665, %v2664
      %v2685 = vpack.c.b16 %v2667, %v2666
      %v2686 = vpack.c.b16 %v2669, %v2668
      %v2687 = vpack.c.b16 %v2671, %v2670
      %v2689 = vsel %vm289, %v2672, 0
      %v2692 = vsel %vm289, %v2673, 0
      %v2695 = vsel %vm289, %v2674, 0
      %v2698 = vsel %vm289, %v2675, 0
      %v2701 = vsel %vm289, %v2676, 0
      %v2704 = vsel %vm289, %v2677, 0
      %v2707 = vsel %vm289, %v2678, 0
      %v2710 = vsel %vm289, %v2679, 0
      %v2713 = vsel %vm289, %v2680, 0
      %v2716 = vsel %vm289, %v2681, 0
      %v2719 = vsel %vm289, %v2682, 0
      %v2722 = vsel %vm289, %v2683, 0
      %v2725 = vsel %vm289, %v2684, 0
      %v2728 = vsel %vm289, %v2685, 0
      %v2731 = vsel %vm289, %v2686, 0
      %v2734 = vsel %vm289, %v2687, 0
      %v2737 = vsel %vm338, %v2639, 0
      %2739 = vmatpush.bf16.msra.mxu0 0
      %2740 = vmatpush.bf16.msra.mxu0 0
      %2741 = vmatpush.bf16.msra.mxu0 0
      %2742 = vmatpush.bf16.msra.mxu0 0
      %2743 = vmatpush.bf16.msra.mxu0 0
      %2744 = vmatpush.bf16.msra.mxu0 0
      %2745 = vmatpush.bf16.msra.mxu0 0
      %2746 = vmatpush.bf16.msra.mxu0 %v2737
      %2747 = vmatmul.bf16.gmra.mxu0 %v2689
      %v2748 = vpop.f32.mrf.mxu0
      %v2749 = vadd.f32 0.0, %v2748
      %v2750 = vpop.f32.mrf.mxu0
      %v2751 = vadd.f32 0.0, %v2750
      %2752 = vmatmul.bf16.gmra.mxu0 %v2692
      %v2753 = vpop.f32.mrf.mxu0
      %v2754 = vadd.f32 0.0, %v2753
      %v2755 = vpop.f32.mrf.mxu0
      %v2756 = vadd.f32 0.0, %v2755
      %2757 = vmatmul.bf16.gmra.mxu0 %v2695
      %v2758 = vpop.f32.mrf.mxu0
      %v2759 = vadd.f32 0.0, %v2758
      %v2760 = vpop.f32.mrf.mxu0
      %v2761 = vadd.f32 0.0, %v2760
      %2762 = vmatmul.bf16.gmra.mxu0 %v2698
      %v2763 = vpop.f32.mrf.mxu0
      %v2764 = vadd.f32 0.0, %v2763
      %v2765 = vpop.f32.mrf.mxu0
      %v2766 = vadd.f32 0.0, %v2765
      %2767 = vmatmul.bf16.gmra.mxu0 %v2701
      %v2768 = vpop.f32.mrf.mxu0
      %v2769 = vadd.f32 0.0, %v2768
      %v2770 = vpop.f32.mrf.mxu0
      %v2771 = vadd.f32 0.0, %v2770
      %2772 = vmatmul.bf16.gmra.mxu0 %v2704
      %v2773 = vpop.f32.mrf.mxu0
      %v2774 = vadd.f32 0.0, %v2773
      %v2775 = vpop.f32.mrf.mxu0
      %v2776 = vadd.f32 0.0, %v2775
      %2777 = vmatmul.bf16.gmra.mxu0 %v2707
      %v2778 = vpop.f32.mrf.mxu0
      %v2779 = vadd.f32 0.0, %v2778
      %v2780 = vpop.f32.mrf.mxu0
      %v2781 = vadd.f32 0.0, %v2780
      %2782 = vmatmul.bf16.gmra.mxu0 %v2710
      %v2783 = vpop.f32.mrf.mxu0
      %v2784 = vadd.f32 0.0, %v2783
      %v2785 = vpop.f32.mrf.mxu0
      %v2786 = vadd.f32 0.0, %v2785
      %2787 = vmatmul.bf16.gmra.mxu0 %v2713
      %v2788 = vpop.f32.mrf.mxu0
      %v2789 = vadd.f32 0.0, %v2788
      %v2790 = vpop.f32.mrf.mxu0
      %v2791 = vadd.f32 0.0, %v2790
      %2792 = vmatmul.bf16.gmra.mxu0 %v2716
      %v2793 = vpop.f32.mrf.mxu0
      %v2794 = vadd.f32 0.0, %v2793
      %v2795 = vpop.f32.mrf.mxu0
      %v2796 = vadd.f32 0.0, %v2795
      %2797 = vmatmul.bf16.gmra.mxu0 %v2719
      %v2798 = vpop.f32.mrf.mxu0
      %v2799 = vadd.f32 0.0, %v2798
      %v2800 = vpop.f32.mrf.mxu0
      %v2801 = vadd.f32 0.0, %v2800
      %2802 = vmatmul.bf16.gmra.mxu0 %v2722
      %v2803 = vpop.f32.mrf.mxu0
      %v2804 = vadd.f32 0.0, %v2803
      %v2805 = vpop.f32.mrf.mxu0
      %v2806 = vadd.f32 0.0, %v2805
      %2807 = vmatmul.bf16.gmra.mxu0 %v2725
      %v2808 = vpop.f32.mrf.mxu0
      %v2809 = vadd.f32 0.0, %v2808
      %v2810 = vpop.f32.mrf.mxu0
      %v2811 = vadd.f32 0.0, %v2810
      %2812 = vmatmul.bf16.gmra.mxu0 %v2728
      %v2813 = vpop.f32.mrf.mxu0
      %v2814 = vadd.f32 0.0, %v2813
      %v2815 = vpop.f32.mrf.mxu0
      %v2816 = vadd.f32 0.0, %v2815
      %2817 = vmatmul.bf16.gmra.mxu0 %v2731
      %v2818 = vpop.f32.mrf.mxu0
      %v2819 = vadd.f32 0.0, %v2818
      %v2820 = vpop.f32.mrf.mxu0
      %v2821 = vadd.f32 0.0, %v2820
      %2822 = vmatmul.bf16.gmra.mxu0 %v2734
      %v2823 = vpop.f32.mrf.mxu0
      %v2824 = vadd.f32 0.0, %v2823
      %v2825 = vpop.f32.mrf.mxu0
      %v2826 = vadd.f32 0.0, %v2825
      %2827 = vdwg.mxu0
      %v2828 = vadd.f32 %v2430, %v2749
      %v2829 = vadd.f32 %v2431, %v2751
      %v2830 = vadd.f32 %v2432, %v2754
      %v2831 = vadd.f32 %v2433, %v2756
      %v2832 = vadd.f32 %v2434, %v2759
      %v2833 = vadd.f32 %v2435, %v2761
      %v2834 = vadd.f32 %v2436, %v2764
      %v2835 = vadd.f32 %v2437, %v2766
      %v2836 = vadd.f32 %v2438, %v2769
      %v2837 = vadd.f32 %v2439, %v2771
      %v2838 = vadd.f32 %v2440, %v2774
      %v2839 = vadd.f32 %v2441, %v2776
      %v2840 = vadd.f32 %v2442, %v2779
      %v2841 = vadd.f32 %v2443, %v2781
      %v2842 = vadd.f32 %v2444, %v2784
      %v2843 = vadd.f32 %v2445, %v2786
      %v2844 = vadd.f32 %v2446, %v2789
      %v2845 = vadd.f32 %v2447, %v2791
      %v2846 = vadd.f32 %v2448, %v2794
      %v2847 = vadd.f32 %v2449, %v2796
      %v2848 = vadd.f32 %v2450, %v2799
      %v2849 = vadd.f32 %v2451, %v2801
      %v2850 = vadd.f32 %v2452, %v2804
      %v2851 = vadd.f32 %v2453, %v2806
      %v2852 = vadd.f32 %v2454, %v2809
      %v2853 = vadd.f32 %v2455, %v2811
      %v2854 = vadd.f32 %v2456, %v2814
      %v2855 = vadd.f32 %v2457, %v2816
      %v2856 = vadd.f32 %v2458, %v2819
      %v2857 = vadd.f32 %v2459, %v2821
      %v2858 = vadd.f32 %v2460, %v2824
      %v2859 = vadd.f32 %v2461, %v2826
      %s2860 = scalar_lea.vmem %s165, 24
      %v2861 = vld [vmem:[%s2860] sm:$0xf]
      %v2862 = vld [vmem:[%s2860 + $0x4] sm:$0xf]
      %v2863 = vld [vmem:[%s2860 + $0xc] sm:$0xf]
      %v2864 = vld [vmem:[%s2860 + $0x10] sm:$0xf]
      %v2865 = vld [vmem:[%s2860 + $0x18] sm:$0xf]
      %v2866 = vld [vmem:[%s2860 + $0x1c] sm:$0xf]
      %v2867 = vld [vmem:[%s2860 + $0x24] sm:$0xf]
      %v2868 = vld [vmem:[%s2860 + $0x28] sm:$0xf]
      %v2869 = vld [vmem:[%s2860 + $0x30] sm:$0xf]
      %v2870 = vld [vmem:[%s2860 + $0x34] sm:$0xf]
      %v2871 = vld [vmem:[%s2860 + $0x3c] sm:$0xf]
      %v2872 = vld [vmem:[%s2860 + $0x40] sm:$0xf]
      %v2873 = vld [vmem:[%s2860 + $0x48] sm:$0xf]
      %v2874 = vld [vmem:[%s2860 + $0x4c] sm:$0xf]
      %v2875 = vld [vmem:[%s2860 + $0x54] sm:$0xf]
      %v2876 = vld [vmem:[%s2860 + $0x58] sm:$0xf]
      %v2877 = vld [vmem:[%s2860 + $0x60] sm:$0xf]
      %v2878 = vld [vmem:[%s2860 + $0x64] sm:$0xf]
      %v2879 = vld [vmem:[%s2860 + $0x6c] sm:$0xf]
      %v2880 = vld [vmem:[%s2860 + $0x70] sm:$0xf]
      %v2881 = vld [vmem:[%s2860 + $0x78] sm:$0xf]
      %v2882 = vld [vmem:[%s2860 + $0x7c] sm:$0xf]
      %v2883 = vld [vmem:[%s2860 + $0x84] sm:$0xf]
      %v2884 = vld [vmem:[%s2860 + $0x88] sm:$0xf]
      %v2885 = vld [vmem:[%s2860 + $0x90] sm:$0xf]
      %v2886 = vld [vmem:[%s2860 + $0x94] sm:$0xf]
      %v2887 = vld [vmem:[%s2860 + $0x9c] sm:$0xf]
      %v2888 = vld [vmem:[%s2860 + $0xa0] sm:$0xf]
      %v2889 = vld [vmem:[%s2860 + $0xa8] sm:$0xf]
      %v2890 = vld [vmem:[%s2860 + $0xac] sm:$0xf]
      %v2891 = vld [vmem:[%s2860 + $0xb4] sm:$0xf]
      %v2892 = vld [vmem:[%s2860 + $0xb8] sm:$0xf]
      %s2893 = scalar_lea.vmem %s1, 12
      %v2894 = vld [vmem:[%s2893] sm:$0x3]
      %v2927 = vunpack.c.l.b16 %v2861
      %v2928 = vunpack.c.l.b16 %v2862
      %v2929 = vunpack.c.l.b16 %v2863
      %v2930 = vunpack.c.l.b16 %v2864
      %v2931 = vunpack.c.l.b16 %v2865
      %v2932 = vunpack.c.l.b16 %v2866
      %v2933 = vunpack.c.l.b16 %v2867
      %v2934 = vunpack.c.l.b16 %v2868
      %v2935 = vunpack.c.l.b16 %v2869
      %v2936 = vunpack.c.l.b16 %v2870
      %v2937 = vunpack.c.l.b16 %v2871
      %v2938 = vunpack.c.l.b16 %v2872
      %v2939 = vunpack.c.l.b16 %v2873
      %v2940 = vunpack.c.l.b16 %v2874
      %v2941 = vunpack.c.l.b16 %v2875
      %v2942 = vunpack.c.l.b16 %v2876
      %v2943 = vunpack.c.l.b16 %v2877
      %v2944 = vunpack.c.l.b16 %v2878
      %v2945 = vunpack.c.l.b16 %v2879
      %v2946 = vunpack.c.l.b16 %v2880
      %v2947 = vunpack.c.l.b16 %v2881
      %v2948 = vunpack.c.l.b16 %v2882
      %v2949 = vunpack.c.l.b16 %v2883
      %v2950 = vunpack.c.l.b16 %v2884
      %v2951 = vunpack.c.l.b16 %v2885
      %v2952 = vunpack.c.l.b16 %v2886
      %v2953 = vunpack.c.l.b16 %v2887
      %v2954 = vunpack.c.l.b16 %v2888
      %v2955 = vunpack.c.l.b16 %v2889
      %v2956 = vunpack.c.l.b16 %v2890
      %v2957 = vunpack.c.l.b16 %v2891
      %v2958 = vunpack.c.l.b16 %v2892
      %v2959 = vpack.c.b16 %v2928, %v2927
      %v2960 = vpack.c.b16 %v2930, %v2929
      %v2961 = vpack.c.b16 %v2932, %v2931
      %v2962 = vpack.c.b16 %v2934, %v2933
      %v2963 = vpack.c.b16 %v2936, %v2935
      %v2964 = vpack.c.b16 %v2938, %v2937
      %v2965 = vpack.c.b16 %v2940, %v2939
      %v2966 = vpack.c.b16 %v2942, %v2941
      %v2967 = vpack.c.b16 %v2944, %v2943
      %v2968 = vpack.c.b16 %v2946, %v2945
      %v2969 = vpack.c.b16 %v2948, %v2947
      %v2970 = vpack.c.b16 %v2950, %v2949
      %v2971 = vpack.c.b16 %v2952, %v2951
      %v2972 = vpack.c.b16 %v2954, %v2953
      %v2973 = vpack.c.b16 %v2956, %v2955
      %v2974 = vpack.c.b16 %v2958, %v2957
      %v2976 = vsel %vm289, %v2959, 0
      %v2979 = vsel %vm289, %v2960, 0
      %v2982 = vsel %vm289, %v2961, 0
      %v2985 = vsel %vm289, %v2962, 0
      %v2988 = vsel %vm289, %v2963, 0
      %v2991 = vsel %vm289, %v2964, 0
      %v2994 = vsel %vm289, %v2965, 0
      %v2997 = vsel %vm289, %v2966, 0
      %v3000 = vsel %vm289, %v2967, 0
      %v3003 = vsel %vm289, %v2968, 0
      %v3006 = vsel %vm289, %v2969, 0
      %v3009 = vsel %vm289, %v2970, 0
      %v3012 = vsel %vm289, %v2971, 0
      %v3015 = vsel %vm289, %v2972, 0
      %v3018 = vsel %vm289, %v2973, 0
      %v3021 = vsel %vm289, %v2974, 0
      %v3024 = vsel %vm338, %v2894, 0
      %3026 = vmatpush.bf16.msra.mxu0 0
      %3027 = vmatpush.bf16.msra.mxu0 0
      %3028 = vmatpush.bf16.msra.mxu0 0
      %3029 = vmatpush.bf16.msra.mxu0 0
      %3030 = vmatpush.bf16.msra.mxu0 0
      %3031 = vmatpush.bf16.msra.mxu0 0
      %3032 = vmatpush.bf16.msra.mxu0 0
      %3033 = vmatpush.bf16.msra.mxu0 %v3024
      %3034 = vmatmul.bf16.gmra.mxu0 %v2976
      %v3035 = vpop.f32.mrf.mxu0
      %v3036 = vadd.f32 0.0, %v3035
      %v3037 = vpop.f32.mrf.mxu0
      %v3038 = vadd.f32 0.0, %v3037
      %3039 = vmatmul.bf16.gmra.mxu0 %v2979
      %v3040 = vpop.f32.mrf.mxu0
      %v3041 = vadd.f32 0.0, %v3040
      %v3042 = vpop.f32.mrf.mxu0
      %v3043 = vadd.f32 0.0, %v3042
      %3044 = vmatmul.bf16.gmra.mxu0 %v2982
      %v3045 = vpop.f32.mrf.mxu0
      %v3046 = vadd.f32 0.0, %v3045
      %v3047 = vpop.f32.mrf.mxu0
      %v3048 = vadd.f32 0.0, %v3047
      %3049 = vmatmul.bf16.gmra.mxu0 %v2985
      %v3050 = vpop.f32.mrf.mxu0
      %v3051 = vadd.f32 0.0, %v3050
      %v3052 = vpop.f32.mrf.mxu0
      %v3053 = vadd.f32 0.0, %v3052
      %3054 = vmatmul.bf16.gmra.mxu0 %v2988
      %v3055 = vpop.f32.mrf.mxu0
      %v3056 = vadd.f32 0.0, %v3055
      %v3057 = vpop.f32.mrf.mxu0
      %v3058 = vadd.f32 0.0, %v3057
      %3059 = vmatmul.bf16.gmra.mxu0 %v2991
      %v3060 = vpop.f32.mrf.mxu0
      %v3061 = vadd.f32 0.0, %v3060
      %v3062 = vpop.f32.mrf.mxu0
      %v3063 = vadd.f32 0.0, %v3062
      %3064 = vmatmul.bf16.gmra.mxu0 %v2994
      %v3065 = vpop.f32.mrf.mxu0
      %v3066 = vadd.f32 0.0, %v3065
      %v3067 = vpop.f32.mrf.mxu0
      %v3068 = vadd.f32 0.0, %v3067
      %3069 = vmatmul.bf16.gmra.mxu0 %v2997
      %v3070 = vpop.f32.mrf.mxu0
      %v3071 = vadd.f32 0.0, %v3070
      %v3072 = vpop.f32.mrf.mxu0
      %v3073 = vadd.f32 0.0, %v3072
      %3074 = vmatmul.bf16.gmra.mxu0 %v3000
      %v3075 = vpop.f32.mrf.mxu0
      %v3076 = vadd.f32 0.0, %v3075
      %v3077 = vpop.f32.mrf.mxu0
      %v3078 = vadd.f32 0.0, %v3077
      %3079 = vmatmul.bf16.gmra.mxu0 %v3003
      %v3080 = vpop.f32.mrf.mxu0
      %v3081 = vadd.f32 0.0, %v3080
      %v3082 = vpop.f32.mrf.mxu0
      %v3083 = vadd.f32 0.0, %v3082
      %3084 = vmatmul.bf16.gmra.mxu0 %v3006
      %v3085 = vpop.f32.mrf.mxu0
      %v3086 = vadd.f32 0.0, %v3085
      %v3087 = vpop.f32.mrf.mxu0
      %v3088 = vadd.f32 0.0, %v3087
      %3089 = vmatmul.bf16.gmra.mxu0 %v3009
      %v3090 = vpop.f32.mrf.mxu0
      %v3091 = vadd.f32 0.0, %v3090
      %v3092 = vpop.f32.mrf.mxu0
      %v3093 = vadd.f32 0.0, %v3092
      %3094 = vmatmul.bf16.gmra.mxu0 %v3012
      %v3095 = vpop.f32.mrf.mxu0
      %v3096 = vadd.f32 0.0, %v3095
      %v3097 = vpop.f32.mrf.mxu0
      %v3098 = vadd.f32 0.0, %v3097
      %3099 = vmatmul.bf16.gmra.mxu0 %v3015
      %v3100 = vpop.f32.mrf.mxu0
      %v3101 = vadd.f32 0.0, %v3100
      %v3102 = vpop.f32.mrf.mxu0
      %v3103 = vadd.f32 0.0, %v3102
      %3104 = vmatmul.bf16.gmra.mxu0 %v3018
      %v3105 = vpop.f32.mrf.mxu0
      %v3106 = vadd.f32 0.0, %v3105
      %v3107 = vpop.f32.mrf.mxu0
      %v3108 = vadd.f32 0.0, %v3107
      %3109 = vmatmul.bf16.gmra.mxu0 %v3021
      %v3110 = vpop.f32.mrf.mxu0
      %v3111 = vadd.f32 0.0, %v3110
      %v3112 = vpop.f32.mrf.mxu0
      %v3113 = vadd.f32 0.0, %v3112
      %3114 = vdwg.mxu0
      %v3115 = vadd.f32 %v2828, %v3036
      %v3116 = vadd.f32 %v2829, %v3038
      %v3117 = vadd.f32 %v2830, %v3041
      %v3118 = vadd.f32 %v2831, %v3043
      %v3119 = vadd.f32 %v2832, %v3046
      %v3120 = vadd.f32 %v2833, %v3048
      %v3121 = vadd.f32 %v2834, %v3051
      %v3122 = vadd.f32 %v2835, %v3053
      %v3123 = vadd.f32 %v2836, %v3056
      %v3124 = vadd.f32 %v2837, %v3058
      %v3125 = vadd.f32 %v2838, %v3061
      %v3126 = vadd.f32 %v2839, %v3063
      %v3127 = vadd.f32 %v2840, %v3066
      %v3128 = vadd.f32 %v2841, %v3068
      %v3129 = vadd.f32 %v2842, %v3071
      %v3130 = vadd.f32 %v2843, %v3073
      %v3131 = vadd.f32 %v2844, %v3076
      %v3132 = vadd.f32 %v2845, %v3078
      %v3133 = vadd.f32 %v2846, %v3081
      %v3134 = vadd.f32 %v2847, %v3083
      %v3135 = vadd.f32 %v2848, %v3086
      %v3136 = vadd.f32 %v2849, %v3088
      %v3137 = vadd.f32 %v2850, %v3091
      %v3138 = vadd.f32 %v2851, %v3093
      %v3139 = vadd.f32 %v2852, %v3096
      %v3140 = vadd.f32 %v2853, %v3098
      %v3141 = vadd.f32 %v2854, %v3101
      %v3142 = vadd.f32 %v2855, %v3103
      %v3143 = vadd.f32 %v2856, %v3106
      %v3144 = vadd.f32 %v2857, %v3108
      %v3145 = vadd.f32 %v2858, %v3111
      %v3146 = vadd.f32 %v2859, %v3113
      %v3147 = vld [vmem:[%s2860] sm:$0xf]
      %v3148 = vld [vmem:[%s2860 + $0x4] sm:$0xf]
      %v3149 = vld [vmem:[%s2860 + $0x8] sm:$0x1]
      %v3150 = vld [vmem:[%s2860 + $0xc] sm:$0xf]
      %v3151 = vld [vmem:[%s2860 + $0x10] sm:$0xf]
      %v3152 = vld [vmem:[%s2860 + $0x14] sm:$0x1]
      %v3153 = vld [vmem:[%s2860 + $0x18] sm:$0xf]
      %v3154 = vld [vmem:[%s2860 + $0x1c] sm:$0xf]
      %v3155 = vld [vmem:[%s2860 + $0x20] sm:$0x1]
      %v3156 = vld [vmem:[%s2860 + $0x24] sm:$0xf]
      %v3157 = vld [vmem:[%s2860 + $0x28] sm:$0xf]
      %v3158 = vld [vmem:[%s2860 + $0x2c] sm:$0x1]
      %v3159 = vld [vmem:[%s2860 + $0x30] sm:$0xf]
      %v3160 = vld [vmem:[%s2860 + $0x34] sm:$0xf]
      %v3161 = vld [vmem:[%s2860 + $0x38] sm:$0x1]
      %v3162 = vld [vmem:[%s2860 + $0x3c] sm:$0xf]
      %v3163 = vld [vmem:[%s2860 + $0x40] sm:$0xf]
      %v3164 = vld [vmem:[%s2860 + $0x44] sm:$0x1]
      %v3165 = vld [vmem:[%s2860 + $0x48] sm:$0xf]
      %v3166 = vld [vmem:[%s2860 + $0x4c] sm:$0xf]
      %v3167 = vld [vmem:[%s2860 + $0x50] sm:$0x1]
      %v3168 = vld [vmem:[%s2860 + $0x54] sm:$0xf]
      %v3169 = vld [vmem:[%s2860 + $0x58] sm:$0xf]
      %v3170 = vld [vmem:[%s2860 + $0x5c] sm:$0x1]
      %v3171 = vld [vmem:[%s2860 + $0x60] sm:$0xf]
      %v3172 = vld [vmem:[%s2860 + $0x64] sm:$0xf]
      %v3173 = vld [vmem:[%s2860 + $0x68] sm:$0x1]
      %v3174 = vld [vmem:[%s2860 + $0x6c] sm:$0xf]
      %v3175 = vld [vmem:[%s2860 + $0x70] sm:$0xf]
      %v3176 = vld [vmem:[%s2860 + $0x74] sm:$0x1]
      %v3177 = vld [vmem:[%s2860 + $0x78] sm:$0xf]
      %v3178 = vld [vmem:[%s2860 + $0x7c] sm:$0xf]
      %v3179 = vld [vmem:[%s2860 + $0x80] sm:$0x1]
      %v3180 = vld [vmem:[%s2860 + $0x84] sm:$0xf]
      %v3181 = vld [vmem:[%s2860 + $0x88] sm:$0xf]
      %v3182 = vld [vmem:[%s2860 + $0x8c] sm:$0x1]
      %v3183 = vld [vmem:[%s2860 + $0x90] sm:$0xf]
      %v3184 = vld [vmem:[%s2860 + $0x94] sm:$0xf]
      %v3185 = vld [vmem:[%s2860 + $0x98] sm:$0x1]
      %v3186 = vld [vmem:[%s2860 + $0x9c] sm:$0xf]
      %v3187 = vld [vmem:[%s2860 + $0xa0] sm:$0xf]
      %v3188 = vld [vmem:[%s2860 + $0xa4] sm:$0x1]
      %v3189 = vld [vmem:[%s2860 + $0xa8] sm:$0xf]
      %v3190 = vld [vmem:[%s2860 + $0xac] sm:$0xf]
      %v3191 = vld [vmem:[%s2860 + $0xb0] sm:$0x1]
      %v3192 = vld [vmem:[%s2860 + $0xb4] sm:$0xf]
      %v3193 = vld [vmem:[%s2860 + $0xb8] sm:$0xf]
      %v3194 = vld [vmem:[%s2860 + $0xbc] sm:$0x1]
      %v3196 = vshrl.u32 %v3147, 16
      %v3198 = vrot.slane %v3196, 4
      %v3199 = vshll.u32 %v3147, 16
      %v3201 = vrot.slane %v3199, 5
      %v3202 = vor.u32 %v3198, %v3201
      %v3203 = vrot.slane %v3202, 4
      %v3205 = vshll.u32 %v3148, 16
      %v3207 = vrot.slane %v3205, 5
      %v3208 = vsel %vm513, %v3203, %v3207
      %v3209 = vshrl.u32 %v3148, 16
      %v3211 = vrot.slane %v3209, 4
      %v3212 = vor.u32 %v3211, %v3207
      %v3213 = vrot.slane %v3212, 4
      %v3215 = vshll.u32 %v3149, 16
      %v3217 = vrot.slane %v3215, 5
      %v3218 = vsel %vm513, %v3213, %v3217
      %v3220 = vshrl.u32 %v3150, 16
      %v3222 = vrot.slane %v3220, 4
      %v3223 = vshll.u32 %v3150, 16
      %v3225 = vrot.slane %v3223, 5
      %v3226 = vor.u32 %v3222, %v3225
      %v3227 = vrot.slane %v3226, 4
      %v3229 = vshll.u32 %v3151, 16
      %v3231 = vrot.slane %v3229, 5
      %v3232 = vsel %vm513, %v3227, %v3231
      %v3233 = vshrl.u32 %v3151, 16
      %v3235 = vrot.slane %v3233, 4
      %v3236 = vor.u32 %v3235, %v3231
      %v3237 = vrot.slane %v3236, 4
      %v3239 = vshll.u32 %v3152, 16
      %v3241 = vrot.slane %v3239, 5
      %v3242 = vsel %vm513, %v3237, %v3241
      %v3244 = vshrl.u32 %v3153, 16
      %v3246 = vrot.slane %v3244, 4
      %v3247 = vshll.u32 %v3153, 16
      %v3249 = vrot.slane %v3247, 5
      %v3250 = vor.u32 %v3246, %v3249
      %v3251 = vrot.slane %v3250, 4
      %v3253 = vshll.u32 %v3154, 16
      %v3255 = vrot.slane %v3253, 5
      %v3256 = vsel %vm513, %v3251, %v3255
      %v3257 = vshrl.u32 %v3154, 16
      %v3259 = vrot.slane %v3257, 4
      %v3260 = vor.u32 %v3259, %v3255
      %v3261 = vrot.slane %v3260, 4
      %v3263 = vshll.u32 %v3155, 16
      %v3265 = vrot.slane %v3263, 5
      %v3266 = vsel %vm513, %v3261, %v3265
      %v3268 = vshrl.u32 %v3156, 16
      %v3270 = vrot.slane %v3268, 4
      %v3271 = vshll.u32 %v3156, 16
      %v3273 = vrot.slane %v3271, 5
      %v3274 = vor.u32 %v3270, %v3273
      %v3275 = vrot.slane %v3274, 4
      %v3277 = vshll.u32 %v3157, 16
      %v3279 = vrot.slane %v3277, 5
      %v3280 = vsel %vm513, %v3275, %v3279
      %v3281 = vshrl.u32 %v3157, 16
      %v3283 = vrot.slane %v3281, 4
      %v3284 = vor.u32 %v3283, %v3279
      %v3285 = vrot.slane %v3284, 4
      %v3287 = vshll.u32 %v3158, 16
      %v3289 = vrot.slane %v3287, 5
      %v3290 = vsel %vm513, %v3285, %v3289
      %v3292 = vshrl.u32 %v3159, 16
      %v3294 = vrot.slane %v3292, 4
      %v3295 = vshll.u32 %v3159, 16
      %v3297 = vrot.slane %v3295, 5
      %v3298 = vor.u32 %v3294, %v3297
      %v3299 = vrot.slane %v3298, 4
      %v3301 = vshll.u32 %v3160, 16
      %v3303 = vrot.slane %v3301, 5
      %v3304 = vsel %vm513, %v3299, %v3303
      %v3305 = vshrl.u32 %v3160, 16
      %v3307 = vrot.slane %v3305, 4
      %v3308 = vor.u32 %v3307, %v3303
      %v3309 = vrot.slane %v3308, 4
      %v3311 = vshll.u32 %v3161, 16
      %v3313 = vrot.slane %v3311, 5
      %v3314 = vsel %vm513, %v3309, %v3313
      %v3316 = vshrl.u32 %v3162, 16
      %v3318 = vrot.slane %v3316, 4
      %v3319 = vshll.u32 %v3162, 16
      %v3321 = vrot.slane %v3319, 5
      %v3322 = vor.u32 %v3318, %v3321
      %v3323 = vrot.slane %v3322, 4
      %v3325 = vshll.u32 %v3163, 16
      %v3327 = vrot.slane %v3325, 5
      %v3328 = vsel %vm513, %v3323, %v3327
      %v3329 = vshrl.u32 %v3163, 16
      %v3331 = vrot.slane %v3329, 4
      %v3332 = vor.u32 %v3331, %v3327
      %v3333 = vrot.slane %v3332, 4
      %v3335 = vshll.u32 %v3164, 16
      %v3337 = vrot.slane %v3335, 5
      %v3338 = vsel %vm513, %v3333, %v3337
      %v3340 = vshrl.u32 %v3165, 16
      %v3342 = vrot.slane %v3340, 4
      %v3343 = vshll.u32 %v3165, 16
      %v3345 = vrot.slane %v3343, 5
      %v3346 = vor.u32 %v3342, %v3345
      %v3347 = vrot.slane %v3346, 4
      %v3349 = vshll.u32 %v3166, 16
      %v3351 = vrot.slane %v3349, 5
      %v3352 = vsel %vm513, %v3347, %v3351
      %v3353 = vshrl.u32 %v3166, 16
      %v3355 = vrot.slane %v3353, 4
      %v3356 = vor.u32 %v3355, %v3351
      %v3357 = vrot.slane %v3356, 4
      %v3359 = vshll.u32 %v3167, 16
      %v3361 = vrot.slane %v3359, 5
      %v3362 = vsel %vm513, %v3357, %v3361
      %v3364 = vshrl.u32 %v3168, 16
      %v3366 = vrot.slane %v3364, 4
      %v3367 = vshll.u32 %v3168, 16
      %v3369 = vrot.slane %v3367, 5
      %v3370 = vor.u32 %v3366, %v3369
      %v3371 = vrot.slane %v3370, 4
      %v3373 = vshll.u32 %v3169, 16
      %v3375 = vrot.slane %v3373, 5
      %v3376 = vsel %vm513, %v3371, %v3375
      %v3377 = vshrl.u32 %v3169, 16
      %v3379 = vrot.slane %v3377, 4
      %v3380 = vor.u32 %v3379, %v3375
      %v3381 = vrot.slane %v3380, 4
      %v3383 = vshll.u32 %v3170, 16
      %v3385 = vrot.slane %v3383, 5
      %v3386 = vsel %vm513, %v3381, %v3385
      %v3388 = vshrl.u32 %v3171, 16
      %v3390 = vrot.slane %v3388, 4
      %v3391 = vshll.u32 %v3171, 16
      %v3393 = vrot.slane %v3391, 5
      %v3394 = vor.u32 %v3390, %v3393
      %v3395 = vrot.slane %v3394, 4
      %v3397 = vshll.u32 %v3172, 16
      %v3399 = vrot.slane %v3397, 5
      %v3400 = vsel %vm513, %v3395, %v3399
      %v3401 = vshrl.u32 %v3172, 16
      %v3403 = vrot.slane %v3401, 4
      %v3404 = vor.u32 %v3403, %v3399
      %v3405 = vrot.slane %v3404, 4
      %v3407 = vshll.u32 %v3173, 16
      %v3409 = vrot.slane %v3407, 5
      %v3410 = vsel %vm513, %v3405, %v3409
      %v3412 = vshrl.u32 %v3174, 16
      %v3414 = vrot.slane %v3412, 4
      %v3415 = vshll.u32 %v3174, 16
      %v3417 = vrot.slane %v3415, 5
      %v3418 = vor.u32 %v3414, %v3417
      %v3419 = vrot.slane %v3418, 4
      %v3421 = vshll.u32 %v3175, 16
      %v3423 = vrot.slane %v3421, 5
      %v3424 = vsel %vm513, %v3419, %v3423
      %v3425 = vshrl.u32 %v3175, 16
      %v3427 = vrot.slane %v3425, 4
      %v3428 = vor.u32 %v3427, %v3423
      %v3429 = vrot.slane %v3428, 4
      %v3431 = vshll.u32 %v3176, 16
      %v3433 = vrot.slane %v3431, 5
      %v3434 = vsel %vm513, %v3429, %v3433
      %v3436 = vshrl.u32 %v3177, 16
      %v3438 = vrot.slane %v3436, 4
      %v3439 = vshll.u32 %v3177, 16
      %v3441 = vrot.slane %v3439, 5
      %v3442 = vor.u32 %v3438, %v3441
      %v3443 = vrot.slane %v3442, 4
      %v3445 = vshll.u32 %v3178, 16
      %v3447 = vrot.slane %v3445, 5
      %v3448 = vsel %vm513, %v3443, %v3447
      %v3449 = vshrl.u32 %v3178, 16
      %v3451 = vrot.slane %v3449, 4
      %v3452 = vor.u32 %v3451, %v3447
      %v3453 = vrot.slane %v3452, 4
      %v3455 = vshll.u32 %v3179, 16
      %v3457 = vrot.slane %v3455, 5
      %v3458 = vsel %vm513, %v3453, %v3457
      %v3460 = vshrl.u32 %v3180, 16
      %v3462 = vrot.slane %v3460, 4
      %v3463 = vshll.u32 %v3180, 16
      %v3465 = vrot.slane %v3463, 5
      %v3466 = vor.u32 %v3462, %v3465
      %v3467 = vrot.slane %v3466, 4
      %v3469 = vshll.u32 %v3181, 16
      %v3471 = vrot.slane %v3469, 5
      %v3472 = vsel %vm513, %v3467, %v3471
      %v3473 = vshrl.u32 %v3181, 16
      %v3475 = vrot.slane %v3473, 4
      %v3476 = vor.u32 %v3475, %v3471
      %v3477 = vrot.slane %v3476, 4
      %v3479 = vshll.u32 %v3182, 16
      %v3481 = vrot.slane %v3479, 5
      %v3482 = vsel %vm513, %v3477, %v3481
      %v3484 = vshrl.u32 %v3183, 16
      %v3486 = vrot.slane %v3484, 4
      %v3487 = vshll.u32 %v3183, 16
      %v3489 = vrot.slane %v3487, 5
      %v3490 = vor.u32 %v3486, %v3489
      %v3491 = vrot.slane %v3490, 4
      %v3493 = vshll.u32 %v3184, 16
      %v3495 = vrot.slane %v3493, 5
      %v3496 = vsel %vm513, %v3491, %v3495
      %v3497 = vshrl.u32 %v3184, 16
      %v3499 = vrot.slane %v3497, 4
      %v3500 = vor.u32 %v3499, %v3495
      %v3501 = vrot.slane %v3500, 4
      %v3503 = vshll.u32 %v3185, 16
      %v3505 = vrot.slane %v3503, 5
      %v3506 = vsel %vm513, %v3501, %v3505
      %v3508 = vshrl.u32 %v3186, 16
      %v3510 = vrot.slane %v3508, 4
      %v3511 = vshll.u32 %v3186, 16
      %v3513 = vrot.slane %v3511, 5
      %v3514 = vor.u32 %v3510, %v3513
      %v3515 = vrot.slane %v3514, 4
      %v3517 = vshll.u32 %v3187, 16
      %v3519 = vrot.slane %v3517, 5
      %v3520 = vsel %vm513, %v3515, %v3519
      %v3521 = vshrl.u32 %v3187, 16
      %v3523 = vrot.slane %v3521, 4
      %v3524 = vor.u32 %v3523, %v3519
      %v3525 = vrot.slane %v3524, 4
      %v3527 = vshll.u32 %v3188, 16
      %v3529 = vrot.slane %v3527, 5
      %v3530 = vsel %vm513, %v3525, %v3529
      %v3532 = vshrl.u32 %v3189, 16
      %v3534 = vrot.slane %v3532, 4
      %v3535 = vshll.u32 %v3189, 16
      %v3537 = vrot.slane %v3535, 5
      %v3538 = vor.u32 %v3534, %v3537
      %v3539 = vrot.slane %v3538, 4
      %v3541 = vshll.u32 %v3190, 16
      %v3543 = vrot.slane %v3541, 5
      %v3544 = vsel %vm513, %v3539, %v3543
      %v3545 = vshrl.u32 %v3190, 16
      %v3547 = vrot.slane %v3545, 4
      %v3548 = vor.u32 %v3547, %v3543
      %v3549 = vrot.slane %v3548, 4
      %v3551 = vshll.u32 %v3191, 16
      %v3553 = vrot.slane %v3551, 5
      %v3554 = vsel %vm513, %v3549, %v3553
      %v3556 = vshrl.u32 %v3192, 16
      %v3558 = vrot.slane %v3556, 4
      %v3559 = vshll.u32 %v3192, 16
      %v3561 = vrot.slane %v3559, 5
      %v3562 = vor.u32 %v3558, %v3561
      %v3563 = vrot.slane %v3562, 4
      %v3565 = vshll.u32 %v3193, 16
      %v3567 = vrot.slane %v3565, 5
      %v3568 = vsel %vm513, %v3563, %v3567
      %v3569 = vshrl.u32 %v3193, 16
      %v3571 = vrot.slane %v3569, 4
      %v3572 = vor.u32 %v3571, %v3567
      %v3573 = vrot.slane %v3572, 4
      %v3575 = vshll.u32 %v3194, 16
      %v3577 = vrot.slane %v3575, 5
      %v3578 = vsel %vm513, %v3573, %v3577
      %s3579 = scalar_lea.vmem %s1, 14
      %v3580 = vld [vmem:[%s3579] sm:$0x3]
      %v3581 = vunpack.c.l.b16 %v3208
      %v3582 = vunpack.c.l.b16 %v3218
      %v3583 = vunpack.c.l.b16 %v3232
      %v3584 = vunpack.c.l.b16 %v3242
      %v3585 = vunpack.c.l.b16 %v3256
      %v3586 = vunpack.c.l.b16 %v3266
      %v3587 = vunpack.c.l.b16 %v3280
      %v3588 = vunpack.c.l.b16 %v3290
      %v3589 = vunpack.c.l.b16 %v3304
      %v3590 = vunpack.c.l.b16 %v3314
      %v3591 = vunpack.c.l.b16 %v3328
      %v3592 = vunpack.c.l.b16 %v3338
      %v3593 = vunpack.c.l.b16 %v3352
      %v3594 = vunpack.c.l.b16 %v3362
      %v3595 = vunpack.c.l.b16 %v3376
      %v3596 = vunpack.c.l.b16 %v3386
      %v3597 = vunpack.c.l.b16 %v3400
      %v3598 = vunpack.c.l.b16 %v3410
      %v3599 = vunpack.c.l.b16 %v3424
      %v3600 = vunpack.c.l.b16 %v3434
      %v3601 = vunpack.c.l.b16 %v3448
      %v3602 = vunpack.c.l.b16 %v3458
      %v3603 = vunpack.c.l.b16 %v3472
      %v3604 = vunpack.c.l.b16 %v3482
      %v3605 = vunpack.c.l.b16 %v3496
      %v3606 = vunpack.c.l.b16 %v3506
      %v3607 = vunpack.c.l.b16 %v3520
      %v3608 = vunpack.c.l.b16 %v3530
      %v3609 = vunpack.c.l.b16 %v3544
      %v3610 = vunpack.c.l.b16 %v3554
      %v3611 = vunpack.c.l.b16 %v3568
      %v3612 = vunpack.c.l.b16 %v3578
      %v3613 = vpack.c.b16 %v3582, %v3581
      %v3614 = vpack.c.b16 %v3584, %v3583
      %v3615 = vpack.c.b16 %v3586, %v3585
      %v3616 = vpack.c.b16 %v3588, %v3587
      %v3617 = vpack.c.b16 %v3590, %v3589
      %v3618 = vpack.c.b16 %v3592, %v3591
      %v3619 = vpack.c.b16 %v3594, %v3593
      %v3620 = vpack.c.b16 %v3596, %v3595
      %v3621 = vpack.c.b16 %v3598, %v3597
      %v3622 = vpack.c.b16 %v3600, %v3599
      %v3623 = vpack.c.b16 %v3602, %v3601
      %v3624 = vpack.c.b16 %v3604, %v3603
      %v3625 = vpack.c.b16 %v3606, %v3605
      %v3626 = vpack.c.b16 %v3608, %v3607
      %v3627 = vpack.c.b16 %v3610, %v3609
      %v3628 = vpack.c.b16 %v3612, %v3611
      %v3630 = vsel %vm289, %v3613, 0
      %v3633 = vsel %vm289, %v3614, 0
      %v3636 = vsel %vm289, %v3615, 0
      %v3639 = vsel %vm289, %v3616, 0
      %v3642 = vsel %vm289, %v3617, 0
      %v3645 = vsel %vm289, %v3618, 0
      %v3648 = vsel %vm289, %v3619, 0
      %v3651 = vsel %vm289, %v3620, 0
      %v3654 = vsel %vm289, %v3621, 0
      %v3657 = vsel %vm289, %v3622, 0
      %v3660 = vsel %vm289, %v3623, 0
      %v3663 = vsel %vm289, %v3624, 0
      %v3666 = vsel %vm289, %v3625, 0
      %v3669 = vsel %vm289, %v3626, 0
      %v3672 = vsel %vm289, %v3627, 0
      %v3675 = vsel %vm289, %v3628, 0
      %v3678 = vsel %vm338, %v3580, 0
      %3680 = vmatpush.bf16.msra.mxu0 0
      %3681 = vmatpush.bf16.msra.mxu0 0
      %3682 = vmatpush.bf16.msra.mxu0 0
      %3683 = vmatpush.bf16.msra.mxu0 0
      %3684 = vmatpush.bf16.msra.mxu0 0
      %3685 = vmatpush.bf16.msra.mxu0 0
      %3686 = vmatpush.bf16.msra.mxu0 0
      %3687 = vmatpush.bf16.msra.mxu0 %v3678
      %3688 = vmatmul.bf16.gmra.mxu0 %v3630
      %v3689 = vpop.f32.mrf.mxu0
      %v3690 = vadd.f32 0.0, %v3689
      %v3691 = vpop.f32.mrf.mxu0
      %v3692 = vadd.f32 0.0, %v3691
      %3693 = vmatmul.bf16.gmra.mxu0 %v3633
      %v3694 = vpop.f32.mrf.mxu0
      %v3695 = vadd.f32 0.0, %v3694
      %v3696 = vpop.f32.mrf.mxu0
      %v3697 = vadd.f32 0.0, %v3696
      %3698 = vmatmul.bf16.gmra.mxu0 %v3636
      %v3699 = vpop.f32.mrf.mxu0
      %v3700 = vadd.f32 0.0, %v3699
      %v3701 = vpop.f32.mrf.mxu0
      %v3702 = vadd.f32 0.0, %v3701
      %3703 = vmatmul.bf16.gmra.mxu0 %v3639
      %v3704 = vpop.f32.mrf.mxu0
      %v3705 = vadd.f32 0.0, %v3704
      %v3706 = vpop.f32.mrf.mxu0
      %v3707 = vadd.f32 0.0, %v3706
      %3708 = vmatmul.bf16.gmra.mxu0 %v3642
      %v3709 = vpop.f32.mrf.mxu0
      %v3710 = vadd.f32 0.0, %v3709
      %v3711 = vpop.f32.mrf.mxu0
      %v3712 = vadd.f32 0.0, %v3711
      %3713 = vmatmul.bf16.gmra.mxu0 %v3645
      %v3714 = vpop.f32.mrf.mxu0
      %v3715 = vadd.f32 0.0, %v3714
      %v3716 = vpop.f32.mrf.mxu0
      %v3717 = vadd.f32 0.0, %v3716
      %3718 = vmatmul.bf16.gmra.mxu0 %v3648
      %v3719 = vpop.f32.mrf.mxu0
      %v3720 = vadd.f32 0.0, %v3719
      %v3721 = vpop.f32.mrf.mxu0
      %v3722 = vadd.f32 0.0, %v3721
      %3723 = vmatmul.bf16.gmra.mxu0 %v3651
      %v3724 = vpop.f32.mrf.mxu0
      %v3725 = vadd.f32 0.0, %v3724
      %v3726 = vpop.f32.mrf.mxu0
      %v3727 = vadd.f32 0.0, %v3726
      %3728 = vmatmul.bf16.gmra.mxu0 %v3654
      %v3729 = vpop.f32.mrf.mxu0
      %v3730 = vadd.f32 0.0, %v3729
      %v3731 = vpop.f32.mrf.mxu0
      %v3732 = vadd.f32 0.0, %v3731
      %3733 = vmatmul.bf16.gmra.mxu0 %v3657
      %v3734 = vpop.f32.mrf.mxu0
      %v3735 = vadd.f32 0.0, %v3734
      %v3736 = vpop.f32.mrf.mxu0
      %v3737 = vadd.f32 0.0, %v3736
      %3738 = vmatmul.bf16.gmra.mxu0 %v3660
      %v3739 = vpop.f32.mrf.mxu0
      %v3740 = vadd.f32 0.0, %v3739
      %v3741 = vpop.f32.mrf.mxu0
      %v3742 = vadd.f32 0.0, %v3741
      %3743 = vmatmul.bf16.gmra.mxu0 %v3663
      %v3744 = vpop.f32.mrf.mxu0
      %v3745 = vadd.f32 0.0, %v3744
      %v3746 = vpop.f32.mrf.mxu0
      %v3747 = vadd.f32 0.0, %v3746
      %3748 = vmatmul.bf16.gmra.mxu0 %v3666
      %v3749 = vpop.f32.mrf.mxu0
      %v3750 = vadd.f32 0.0, %v3749
      %v3751 = vpop.f32.mrf.mxu0
      %v3752 = vadd.f32 0.0, %v3751
      %3753 = vmatmul.bf16.gmra.mxu0 %v3669
      %v3754 = vpop.f32.mrf.mxu0
      %v3755 = vadd.f32 0.0, %v3754
      %v3756 = vpop.f32.mrf.mxu0
      %v3757 = vadd.f32 0.0, %v3756
      %3758 = vmatmul.bf16.gmra.mxu0 %v3672
      %v3759 = vpop.f32.mrf.mxu0
      %v3760 = vadd.f32 0.0, %v3759
      %v3761 = vpop.f32.mrf.mxu0
      %v3762 = vadd.f32 0.0, %v3761
      %3763 = vmatmul.bf16.gmra.mxu0 %v3675
      %v3764 = vpop.f32.mrf.mxu0
      %v3765 = vadd.f32 0.0, %v3764
      %v3766 = vpop.f32.mrf.mxu0
      %v3767 = vadd.f32 0.0, %v3766
      %3768 = vdwg.mxu0
      %v3769 = vadd.f32 %v3115, %v3690
      %v3770 = vadd.f32 %v3116, %v3692
      %v3771 = vadd.f32 %v3117, %v3695
      %v3772 = vadd.f32 %v3118, %v3697
      %v3773 = vadd.f32 %v3119, %v3700
      %v3774 = vadd.f32 %v3120, %v3702
      %v3775 = vadd.f32 %v3121, %v3705
      %v3776 = vadd.f32 %v3122, %v3707
      %v3777 = vadd.f32 %v3123, %v3710
      %v3778 = vadd.f32 %v3124, %v3712
      %v3779 = vadd.f32 %v3125, %v3715
      %v3780 = vadd.f32 %v3126, %v3717
      %v3781 = vadd.f32 %v3127, %v3720
      %v3782 = vadd.f32 %v3128, %v3722
      %v3783 = vadd.f32 %v3129, %v3725
      %v3784 = vadd.f32 %v3130, %v3727
      %v3785 = vadd.f32 %v3131, %v3730
      %v3786 = vadd.f32 %v3132, %v3732
      %v3787 = vadd.f32 %v3133, %v3735
      %v3788 = vadd.f32 %v3134, %v3737
      %v3789 = vadd.f32 %v3135, %v3740
      %v3790 = vadd.f32 %v3136, %v3742
      %v3791 = vadd.f32 %v3137, %v3745
      %v3792 = vadd.f32 %v3138, %v3747
      %v3793 = vadd.f32 %v3139, %v3750
      %v3794 = vadd.f32 %v3140, %v3752
      %v3795 = vadd.f32 %v3141, %v3755
      %v3796 = vadd.f32 %v3142, %v3757
      %v3797 = vadd.f32 %v3143, %v3760
      %v3798 = vadd.f32 %v3144, %v3762
      %v3799 = vadd.f32 %v3145, %v3765
      %v3800 = vadd.f32 %v3146, %v3767
      %v3801 = vld [vmem:[%s2860] sm:$0xe]
      %v3802 = vld [vmem:[%s2860 + $0xc] sm:$0xe]
      %v3803 = vld [vmem:[%s2860 + $0x18] sm:$0xe]
      %v3804 = vld [vmem:[%s2860 + $0x24] sm:$0xe]
      %v3805 = vld [vmem:[%s2860 + $0x30] sm:$0xe]
      %v3806 = vld [vmem:[%s2860 + $0x3c] sm:$0xe]
      %v3807 = vld [vmem:[%s2860 + $0x48] sm:$0xe]
      %v3808 = vld [vmem:[%s2860 + $0x54] sm:$0xe]
      %v3809 = vld [vmem:[%s2860 + $0x60] sm:$0xe]
      %v3810 = vld [vmem:[%s2860 + $0x6c] sm:$0xe]
      %v3811 = vld [vmem:[%s2860 + $0x78] sm:$0xe]
      %v3812 = vld [vmem:[%s2860 + $0x84] sm:$0xe]
      %v3813 = vld [vmem:[%s2860 + $0x90] sm:$0xe]
      %v3814 = vld [vmem:[%s2860 + $0x9c] sm:$0xe]
      %v3815 = vld [vmem:[%s2860 + $0xa8] sm:$0xe]
      %v3816 = vld [vmem:[%s2860 + $0xb4] sm:$0xe]
      %v3865 = vrot.slane %v3801, 5
      %v3866 = vrot.slane %v3865, 4
      %v3867 = vrot.slane %v3148, 5
      %v3868 = vsel %vm1186, %v3866, %v3867
      %v3869 = vrot.slane %v3867, 4
      %v3870 = vrot.slane %v3149, 5
      %v3871 = vsel %vm1186, %v3869, %v3870
      %v3872 = vrot.slane %v3802, 5
      %v3873 = vrot.slane %v3872, 4
      %v3874 = vrot.slane %v3151, 5
      %v3875 = vsel %vm1186, %v3873, %v3874
      %v3876 = vrot.slane %v3874, 4
      %v3877 = vrot.slane %v3152, 5
      %v3878 = vsel %vm1186, %v3876, %v3877
      %v3879 = vrot.slane %v3803, 5
      %v3880 = vrot.slane %v3879, 4
      %v3881 = vrot.slane %v3154, 5
      %v3882 = vsel %vm1186, %v3880, %v3881
      %v3883 = vrot.slane %v3881, 4
      %v3884 = vrot.slane %v3155, 5
      %v3885 = vsel %vm1186, %v3883, %v3884
      %v3886 = vrot.slane %v3804, 5
      %v3887 = vrot.slane %v3886, 4
      %v3888 = vrot.slane %v3157, 5
      %v3889 = vsel %vm1186, %v3887, %v3888
      %v3890 = vrot.slane %v3888, 4
      %v3891 = vrot.slane %v3158, 5
      %v3892 = vsel %vm1186, %v3890, %v3891
      %v3893 = vrot.slane %v3805, 5
      %v3894 = vrot.slane %v3893, 4
      %v3895 = vrot.slane %v3160, 5
      %v3896 = vsel %vm1186, %v3894, %v3895
      %v3897 = vrot.slane %v3895, 4
      %v3898 = vrot.slane %v3161, 5
      %v3899 = vsel %vm1186, %v3897, %v3898
      %v3900 = vrot.slane %v3806, 5
      %v3901 = vrot.slane %v3900, 4
      %v3902 = vrot.slane %v3163, 5
      %v3903 = vsel %vm1186, %v3901, %v3902
      %v3904 = vrot.slane %v3902, 4
      %v3905 = vrot.slane %v3164, 5
      %v3906 = vsel %vm1186, %v3904, %v3905
      %v3907 = vrot.slane %v3807, 5
      %v3908 = vrot.slane %v3907, 4
      %v3909 = vrot.slane %v3166, 5
      %v3910 = vsel %vm1186, %v3908, %v3909
      %v3911 = vrot.slane %v3909, 4
      %v3912 = vrot.slane %v3167, 5
      %v3913 = vsel %vm1186, %v3911, %v3912
      %v3914 = vrot.slane %v3808, 5
      %v3915 = vrot.slane %v3914, 4
      %v3916 = vrot.slane %v3169, 5
      %v3917 = vsel %vm1186, %v3915, %v3916
      %v3918 = vrot.slane %v3916, 4
      %v3919 = vrot.slane %v3170, 5
      %v3920 = vsel %vm1186, %v3918, %v3919
      %v3921 = vrot.slane %v3809, 5
      %v3922 = vrot.slane %v3921, 4
      %v3923 = vrot.slane %v3172, 5
      %v3924 = vsel %vm1186, %v3922, %v3923
      %v3925 = vrot.slane %v3923, 4
      %v3926 = vrot.slane %v3173, 5
      %v3927 = vsel %vm1186, %v3925, %v3926
      %v3928 = vrot.slane %v3810, 5
      %v3929 = vrot.slane %v3928, 4
      %v3930 = vrot.slane %v3175, 5
      %v3931 = vsel %vm1186, %v3929, %v3930
      %v3932 = vrot.slane %v3930, 4
      %v3933 = vrot.slane %v3176, 5
      %v3934 = vsel %vm1186, %v3932, %v3933
      %v3935 = vrot.slane %v3811, 5
      %v3936 = vrot.slane %v3935, 4
      %v3937 = vrot.slane %v3178, 5
      %v3938 = vsel %vm1186, %v3936, %v3937
      %v3939 = vrot.slane %v3937, 4
      %v3940 = vrot.slane %v3179, 5
      %v3941 = vsel %vm1186, %v3939, %v3940
      %v3942 = vrot.slane %v3812, 5
      %v3943 = vrot.slane %v3942, 4
      %v3944 = vrot.slane %v3181, 5
      %v3945 = vsel %vm1186, %v3943, %v3944
      %v3946 = vrot.slane %v3944, 4
      %v3947 = vrot.slane %v3182, 5
      %v3948 = vsel %vm1186, %v3946, %v3947
      %v3949 = vrot.slane %v3813, 5
      %v3950 = vrot.slane %v3949, 4
      %v3951 = vrot.slane %v3184, 5
      %v3952 = vsel %vm1186, %v3950, %v3951
      %v3953 = vrot.slane %v3951, 4
      %v3954 = vrot.slane %v3185, 5
      %v3955 = vsel %vm1186, %v3953, %v3954
      %v3956 = vrot.slane %v3814, 5
      %v3957 = vrot.slane %v3956, 4
      %v3958 = vrot.slane %v3187, 5
      %v3959 = vsel %vm1186, %v3957, %v3958
      %v3960 = vrot.slane %v3958, 4
      %v3961 = vrot.slane %v3188, 5
      %v3962 = vsel %vm1186, %v3960, %v3961
      %v3963 = vrot.slane %v3815, 5
      %v3964 = vrot.slane %v3963, 4
      %v3965 = vrot.slane %v3190, 5
      %v3966 = vsel %vm1186, %v3964, %v3965
      %v3967 = vrot.slane %v3965, 4
      %v3968 = vrot.slane %v3191, 5
      %v3969 = vsel %vm1186, %v3967, %v3968
      %v3970 = vrot.slane %v3816, 5
      %v3971 = vrot.slane %v3970, 4
      %v3972 = vrot.slane %v3193, 5
      %v3973 = vsel %vm1186, %v3971, %v3972
      %v3974 = vrot.slane %v3972, 4
      %v3975 = vrot.slane %v3194, 5
      %v3976 = vsel %vm1186, %v3974, %v3975
      %s3977 = scalar_lea.vmem %s1, 16
      %v3978 = vld [vmem:[%s3977] sm:$0x3]
      %v3979 = vunpack.c.l.b16 %v3868
      %v3980 = vunpack.c.l.b16 %v3871
      %v3981 = vunpack.c.l.b16 %v3875
      %v3982 = vunpack.c.l.b16 %v3878
      %v3983 = vunpack.c.l.b16 %v3882
      %v3984 = vunpack.c.l.b16 %v3885
      %v3985 = vunpack.c.l.b16 %v3889
      %v3986 = vunpack.c.l.b16 %v3892
      %v3987 = vunpack.c.l.b16 %v3896
      %v3988 = vunpack.c.l.b16 %v3899
      %v3989 = vunpack.c.l.b16 %v3903
      %v3990 = vunpack.c.l.b16 %v3906
      %v3991 = vunpack.c.l.b16 %v3910
      %v3992 = vunpack.c.l.b16 %v3913
      %v3993 = vunpack.c.l.b16 %v3917
      %v3994 = vunpack.c.l.b16 %v3920
      %v3995 = vunpack.c.l.b16 %v3924
      %v3996 = vunpack.c.l.b16 %v3927
      %v3997 = vunpack.c.l.b16 %v3931
      %v3998 = vunpack.c.l.b16 %v3934
      %v3999 = vunpack.c.l.b16 %v3938
      %v4000 = vunpack.c.l.b16 %v3941
      %v4001 = vunpack.c.l.b16 %v3945
      %v4002 = vunpack.c.l.b16 %v3948
      %v4003 = vunpack.c.l.b16 %v3952
      %v4004 = vunpack.c.l.b16 %v3955
      %v4005 = vunpack.c.l.b16 %v3959
      %v4006 = vunpack.c.l.b16 %v3962
      %v4007 = vunpack.c.l.b16 %v3966
      %v4008 = vunpack.c.l.b16 %v3969
      %v4009 = vunpack.c.l.b16 %v3973
      %v4010 = vunpack.c.l.b16 %v3976
      %v4011 = vpack.c.b16 %v3980, %v3979
      %v4012 = vpack.c.b16 %v3982, %v3981
      %v4013 = vpack.c.b16 %v3984, %v3983
      %v4014 = vpack.c.b16 %v3986, %v3985
      %v4015 = vpack.c.b16 %v3988, %v3987
      %v4016 = vpack.c.b16 %v3990, %v3989
      %v4017 = vpack.c.b16 %v3992, %v3991
      %v4018 = vpack.c.b16 %v3994, %v3993
      %v4019 = vpack.c.b16 %v3996, %v3995
      %v4020 = vpack.c.b16 %v3998, %v3997
      %v4021 = vpack.c.b16 %v4000, %v3999
      %v4022 = vpack.c.b16 %v4002, %v4001
      %v4023 = vpack.c.b16 %v4004, %v4003
      %v4024 = vpack.c.b16 %v4006, %v4005
      %v4025 = vpack.c.b16 %v4008, %v4007
      %v4026 = vpack.c.b16 %v4010, %v4009
      %v4028 = vsel %vm289, %v4011, 0
      %v4031 = vsel %vm289, %v4012, 0
      %v4034 = vsel %vm289, %v4013, 0
      %v4037 = vsel %vm289, %v4014, 0
      %v4040 = vsel %vm289, %v4015, 0
      %v4043 = vsel %vm289, %v4016, 0
      %v4046 = vsel %vm289, %v4017, 0
      %v4049 = vsel %vm289, %v4018, 0
      %v4052 = vsel %vm289, %v4019, 0
      %v4055 = vsel %vm289, %v4020, 0
      %v4058 = vsel %vm289, %v4021, 0
      %v4061 = vsel %vm289, %v4022, 0
      %v4064 = vsel %vm289, %v4023, 0
      %v4067 = vsel %vm289, %v4024, 0
      %v4070 = vsel %vm289, %v4025, 0
      %v4073 = vsel %vm289, %v4026, 0
      %v4076 = vsel %vm338, %v3978, 0
      %4078 = vmatpush.bf16.msra.mxu0 0
      %4079 = vmatpush.bf16.msra.mxu0 0
      %4080 = vmatpush.bf16.msra.mxu0 0
      %4081 = vmatpush.bf16.msra.mxu0 0
      %4082 = vmatpush.bf16.msra.mxu0 0
      %4083 = vmatpush.bf16.msra.mxu0 0
      %4084 = vmatpush.bf16.msra.mxu0 0
      %4085 = vmatpush.bf16.msra.mxu0 %v4076
      %4086 = vmatmul.bf16.gmra.mxu0 %v4028
      %v4087 = vpop.f32.mrf.mxu0
      %v4088 = vadd.f32 0.0, %v4087
      %v4089 = vpop.f32.mrf.mxu0
      %v4090 = vadd.f32 0.0, %v4089
      %4091 = vmatmul.bf16.gmra.mxu0 %v4031
      %v4092 = vpop.f32.mrf.mxu0
      %v4093 = vadd.f32 0.0, %v4092
      %v4094 = vpop.f32.mrf.mxu0
      %v4095 = vadd.f32 0.0, %v4094
      %4096 = vmatmul.bf16.gmra.mxu0 %v4034
      %v4097 = vpop.f32.mrf.mxu0
      %v4098 = vadd.f32 0.0, %v4097
      %v4099 = vpop.f32.mrf.mxu0
      %v4100 = vadd.f32 0.0, %v4099
      %4101 = vmatmul.bf16.gmra.mxu0 %v4037
      %v4102 = vpop.f32.mrf.mxu0
      %v4103 = vadd.f32 0.0, %v4102
      %v4104 = vpop.f32.mrf.mxu0
      %v4105 = vadd.f32 0.0, %v4104
      %4106 = vmatmul.bf16.gmra.mxu0 %v4040
      %v4107 = vpop.f32.mrf.mxu0
      %v4108 = vadd.f32 0.0, %v4107
      %v4109 = vpop.f32.mrf.mxu0
      %v4110 = vadd.f32 0.0, %v4109
      %4111 = vmatmul.bf16.gmra.mxu0 %v4043
      %v4112 = vpop.f32.mrf.mxu0
      %v4113 = vadd.f32 0.0, %v4112
      %v4114 = vpop.f32.mrf.mxu0
      %v4115 = vadd.f32 0.0, %v4114
      %4116 = vmatmul.bf16.gmra.mxu0 %v4046
      %v4117 = vpop.f32.mrf.mxu0
      %v4118 = vadd.f32 0.0, %v4117
      %v4119 = vpop.f32.mrf.mxu0
      %v4120 = vadd.f32 0.0, %v4119
      %4121 = vmatmul.bf16.gmra.mxu0 %v4049
      %v4122 = vpop.f32.mrf.mxu0
      %v4123 = vadd.f32 0.0, %v4122
      %v4124 = vpop.f32.mrf.mxu0
      %v4125 = vadd.f32 0.0, %v4124
      %4126 = vmatmul.bf16.gmra.mxu0 %v4052
      %v4127 = vpop.f32.mrf.mxu0
      %v4128 = vadd.f32 0.0, %v4127
      %v4129 = vpop.f32.mrf.mxu0
      %v4130 = vadd.f32 0.0, %v4129
      %4131 = vmatmul.bf16.gmra.mxu0 %v4055
      %v4132 = vpop.f32.mrf.mxu0
      %v4133 = vadd.f32 0.0, %v4132
      %v4134 = vpop.f32.mrf.mxu0
      %v4135 = vadd.f32 0.0, %v4134
      %4136 = vmatmul.bf16.gmra.mxu0 %v4058
      %v4137 = vpop.f32.mrf.mxu0
      %v4138 = vadd.f32 0.0, %v4137
      %v4139 = vpop.f32.mrf.mxu0
      %v4140 = vadd.f32 0.0, %v4139
      %4141 = vmatmul.bf16.gmra.mxu0 %v4061
      %v4142 = vpop.f32.mrf.mxu0
      %v4143 = vadd.f32 0.0, %v4142
      %v4144 = vpop.f32.mrf.mxu0
      %v4145 = vadd.f32 0.0, %v4144
      %4146 = vmatmul.bf16.gmra.mxu0 %v4064
      %v4147 = vpop.f32.mrf.mxu0
      %v4148 = vadd.f32 0.0, %v4147
      %v4149 = vpop.f32.mrf.mxu0
      %v4150 = vadd.f32 0.0, %v4149
      %4151 = vmatmul.bf16.gmra.mxu0 %v4067
      %v4152 = vpop.f32.mrf.mxu0
      %v4153 = vadd.f32 0.0, %v4152
      %v4154 = vpop.f32.mrf.mxu0
      %v4155 = vadd.f32 0.0, %v4154
      %4156 = vmatmul.bf16.gmra.mxu0 %v4070
      %v4157 = vpop.f32.mrf.mxu0
      %v4158 = vadd.f32 0.0, %v4157
      %v4159 = vpop.f32.mrf.mxu0
      %v4160 = vadd.f32 0.0, %v4159
      %4161 = vmatmul.bf16.gmra.mxu0 %v4073
      %v4162 = vpop.f32.mrf.mxu0
      %v4163 = vadd.f32 0.0, %v4162
      %v4164 = vpop.f32.mrf.mxu0
      %v4165 = vadd.f32 0.0, %v4164
      %4166 = vdwg.mxu0
      %v4167 = vadd.f32 %v3769, %v4088
      %v4168 = vadd.f32 %v3770, %v4090
      %v4169 = vadd.f32 %v3771, %v4093
      %v4170 = vadd.f32 %v3772, %v4095
      %v4171 = vadd.f32 %v3773, %v4098
      %v4172 = vadd.f32 %v3774, %v4100
      %v4173 = vadd.f32 %v3775, %v4103
      %v4174 = vadd.f32 %v3776, %v4105
      %v4175 = vadd.f32 %v3777, %v4108
      %v4176 = vadd.f32 %v3778, %v4110
      %v4177 = vadd.f32 %v3779, %v4113
      %v4178 = vadd.f32 %v3780, %v4115
      %v4179 = vadd.f32 %v3781, %v4118
      %v4180 = vadd.f32 %v3782, %v4120
      %v4181 = vadd.f32 %v3783, %v4123
      %v4182 = vadd.f32 %v3784, %v4125
      %v4183 = vadd.f32 %v3785, %v4128
      %v4184 = vadd.f32 %v3786, %v4130
      %v4185 = vadd.f32 %v3787, %v4133
      %v4186 = vadd.f32 %v3788, %v4135
      %v4187 = vadd.f32 %v3789, %v4138
      %v4188 = vadd.f32 %v3790, %v4140
      %v4189 = vadd.f32 %v3791, %v4143
      %v4190 = vadd.f32 %v3792, %v4145
      %v4191 = vadd.f32 %v3793, %v4148
      %v4192 = vadd.f32 %v3794, %v4150
      %v4193 = vadd.f32 %v3795, %v4153
      %v4194 = vadd.f32 %v3796, %v4155
      %v4195 = vadd.f32 %v3797, %v4158
      %v4196 = vadd.f32 %v3798, %v4160
      %v4197 = vadd.f32 %v3799, %v4163
      %v4198 = vadd.f32 %v3800, %v4165
      %v4199 = vmax.f32 %v4167, 0.0
      %v4200 = vmax.f32 %v4168, 0.0
      %v4201 = vmax.f32 %v4169, 0.0
      %v4202 = vmax.f32 %v4170, 0.0
      %v4203 = vmax.f32 %v4171, 0.0
      %v4204 = vmax.f32 %v4172, 0.0
      %v4205 = vmax.f32 %v4173, 0.0
      %v4206 = vmax.f32 %v4174, 0.0
      %v4207 = vmax.f32 %v4175, 0.0
      %v4208 = vmax.f32 %v4176, 0.0
      %v4209 = vmax.f32 %v4177, 0.0
      %v4210 = vmax.f32 %v4178, 0.0
      %v4211 = vmax.f32 %v4179, 0.0
      %v4212 = vmax.f32 %v4180, 0.0
      %v4213 = vmax.f32 %v4181, 0.0
      %v4214 = vmax.f32 %v4182, 0.0
      %v4215 = vmax.f32 %v4183, 0.0
      %v4216 = vmax.f32 %v4184, 0.0
      %v4217 = vmax.f32 %v4185, 0.0
      %v4218 = vmax.f32 %v4186, 0.0
      %v4219 = vmax.f32 %v4187, 0.0
      %v4220 = vmax.f32 %v4188, 0.0
      %v4221 = vmax.f32 %v4189, 0.0
      %v4222 = vmax.f32 %v4190, 0.0
      %v4223 = vmax.f32 %v4191, 0.0
      %v4224 = vmax.f32 %v4192, 0.0
      %v4225 = vmax.f32 %v4193, 0.0
      %v4226 = vmax.f32 %v4194, 0.0
      %v4227 = vmax.f32 %v4195, 0.0
      %v4228 = vmax.f32 %v4196, 0.0
      %v4229 = vmax.f32 %v4197, 0.0
      %v4230 = vmax.f32 %v4198, 0.0
      %4231 = vst [vmem:[%s170] sm:$0xff] %v4199
      %4232 = vst [vmem:[%s170 + $0x8] sm:$0xff] %v4200
      %4233 = vst [vmem:[%s170 + $0x10] sm:$0xff] %v4201
      %4234 = vst [vmem:[%s170 + $0x18] sm:$0xff] %v4202
      %4235 = vst [vmem:[%s170 + $0x20] sm:$0xff] %v4203
      %4236 = vst [vmem:[%s170 + $0x28] sm:$0xff] %v4204
      %4237 = vst [vmem:[%s170 + $0x30] sm:$0xff] %v4205
      %4238 = vst [vmem:[%s170 + $0x38] sm:$0xff] %v4206
      %4239 = vst [vmem:[%s170 + $0x40] sm:$0xff] %v4207
      %4240 = vst [vmem:[%s170 + $0x48] sm:$0xff] %v4208
      %4241 = vst [vmem:[%s170 + $0x50] sm:$0xff] %v4209
      %4242 = vst [vmem:[%s170 + $0x58] sm:$0xff] %v4210
      %4243 = vst [vmem:[%s170 + $0x60] sm:$0xff] %v4211
      %4244 = vst [vmem:[%s170 + $0x68] sm:$0xff] %v4212
      %4245 = vst [vmem:[%s170 + $0x70] sm:$0xff] %v4213
      %4246 = vst [vmem:[%s170 + $0x78] sm:$0xff] %v4214
      %4247 = vst [vmem:[%s170 + $0x80] sm:$0xff] %v4215
      %4248 = vst [vmem:[%s170 + $0x88] sm:$0xff] %v4216
      %4249 = vst [vmem:[%s170 + $0x90] sm:$0xff] %v4217
      %4250 = vst [vmem:[%s170 + $0x98] sm:$0xff] %v4218
      %4251 = vst [vmem:[%s170 + $0xa0] sm:$0xff] %v4219
      %4252 = vst [vmem:[%s170 + $0xa8] sm:$0xff] %v4220
      %4253 = vst [vmem:[%s170 + $0xb0] sm:$0xff] %v4221
      %4254 = vst [vmem:[%s170 + $0xb8] sm:$0xff] %v4222
      %4255 = vst [vmem:[%s170 + $0xc0] sm:$0xff] %v4223
      %4256 = vst [vmem:[%s170 + $0xc8] sm:$0xff] %v4224
      %4257 = vst [vmem:[%s170 + $0xd0] sm:$0xff] %v4225
      %4258 = vst [vmem:[%s170 + $0xd8] sm:$0xff] %v4226
      %4259 = vst [vmem:[%s170 + $0xe0] sm:$0xff] %v4227
      %4260 = vst [vmem:[%s170 + $0xe8] sm:$0xff] %v4228
      %4261 = vst [vmem:[%s170 + $0xf0] sm:$0xff] %v4229
      %4262 = vst [vmem:[%s170 + $0xf8] sm:$0xff] %v4230
      %p4263 = scmp.lt.s32.totalorder %s14, 1
      %s4264 = scalar_select %p4263, %s14, 1
      %s4265 = smul.addr %s4264, 32
      %s4266 = smul.addr %s4265, 8
      %s4267 = scalar_lea.vmem %s3, %s4266
      // Predicated region
      $region33: #{basic_conv2d.1} parent=31 // pred_check
        %p4268 = pneg %p100
      $region34: #{basic_conv2d.1} parent=31 // pred_check_branch
        %4270 = sbr.rel (%p4268) target = $region36
      $region35: #{basic_conv2d.1} parent=31 // pred_region
        _
      $region36: #{basic_conv2d.1} parent=31 // pred_fallthru
        _
    $region32: #{basic_conv2d.1} parent=5 // pred_fallthru
      _
    %p4271 = scmp.le.s32.totalorder 2, %s9
    // Predicated region
    $region37: #{basic_conv2d.1} parent=5 // pred_check
      %p4272 = pneg %p4271
    $region38: #{basic_conv2d.1} parent=5 // pred_check_branch
      %4274 = sbr.rel (%p4272) target = $region40
    $region39: #{basic_conv2d.1} parent=5 // pred_region
      %s4275 = ssub.s32 %s9, 2
      // Predicated region
      $region41: #{basic_conv2d.1} parent=39 // pred_check
        %p4276 = pneg %p106
      $region42: #{basic_conv2d.1} parent=39 // pred_check_branch
        %4278 = sbr.rel (%p4276) target = $region44
      $region43: #{basic_conv2d.1} parent=39 // pred_region
        %p4279 = scmp.lt.s32.totalorder %s15, 1
        %s4280 = scalar_select %p4279, %s15, 1
        %s4281 = smul.addr %s4280, 32
        %s4282 = smul.addr %s4281, 8
        %s4283 = scalar_lea.vmem %s3, %s4282
      $region44: #{basic_conv2d.1} parent=39 // pred_fallthru
        _
    $region40: #{basic_conv2d.1} parent=5 // pred_fallthru
      _
  $region6: #{basic_conv2d.1} parent=0 // loop_footer
    %s13 = sadd.s32 1, %s9
  $region7: #{basic_conv2d.1} parent=0 // loop_footer_branch
    %8 = sbr.rel target = $region3
  $region8: #{basic_conv2d.1} parent=0 // loop_exit
    _

</llo_original>
